<compile_context>
chip_gen: v6e
topology: v6e:2x2x1
jax: 0.10.0
libtpu: 0.0.40
codegen_flags: <defaults>
</compile_context>

<pallas_src>
import jax
import jax.numpy as jnp
from jax.experimental import pallas as pl
from jax.experimental.pallas import tpu as pltpu

n_embd = 60
block_size = 128            # max context; T <= block_size
n_head = 6
head_size = n_embd // n_head    # 10
LN_EPS = 1e-5

C_PAD = 128                 # lane-dense padded embedding dim
F_PAD = 256                 # lane-dense padded FFN hidden dim (4*60=240 -> 256)

SOFTMAX_APPROX_RECIP = True  # EUP vrcp for the softmax denominator


# ------------------------------ Pallas kernel -------------------------------

def _make_kernel(*, T, batches_per_block):
    """Kernel closure over the static tile geometry."""
    C = n_embd
    Hs = head_size
    inv_c = 1.0 / float(C)

    def kernel(x_ref, g1_ref, b1_ref, wqkv_ref, wp_ref, bp_ref,
               w1_ref, c1_ref, w2_ref, c2_ref, o_ref):
        x = x_ref[...]                                     # (M, Cp); lanes >= 60 are zero
        M, Cp = x.shape

        lane = jax.lax.broadcasted_iota(jnp.int32, (M, Cp), 1)
        feat = lane < C                                    # real-feature lane mask

        # ---- LayerNorm 1 (fixed divisor 60; padded lanes stay exactly 0) ----
        mu = jnp.sum(x, axis=-1, keepdims=True) * inv_c
        xc = jnp.where(feat, x - mu, 0.0)
        var = jnp.sum(xc * xc, axis=-1, keepdims=True) * inv_c
        xn = xc * jax.lax.rsqrt(var + LN_EPS) * g1_ref[...] + b1_ref[...]

        # ---- fused QKV: one (M,128)@(128,384) matmul; q already carries the
        # C**-0.5 scale (folded into wqkv at prep time).  Slices are
        # 128-lane aligned (q at 0, k at 128, v at 256). ----
        qkv = jnp.dot(xn, wqkv_ref[...], preferred_element_type=jnp.float32)
        q_all = qkv[:, 0 * Cp:1 * Cp]
        k_all = qkv[:, 1 * Cp:2 * Cp]
        v_all = qkv[:, 2 * Cp:3 * Cp]

        row = jax.lax.broadcasted_iota(jnp.int32, (T, T), 0)
        col = jax.lax.broadcasted_iota(jnp.int32, (T, T), 1)
        causal = col <= row

        # ---- per-(batch, head) causal attention; heads go into a concat
        # buffer, then ONE (M,60)@(60,128) output projection. ----
        # TODO(synk): at T == block_size (128) the statically unrolled loop
        # below approaches the 64-vreg budget; stage q/k/v in VMEM scratch or
        # switch to lax.fori_loop if the bundle shows spills.
        rows = []
        for b in range(batches_per_block):
            r0 = b * T
            outs = []
            for h in range(n_head):
                lo = h * Hs
                qh = q_all[r0:r0 + T, lo:lo + Hs]
                kh = k_all[r0:r0 + T, lo:lo + Hs]
                vh = v_all[r0:r0 + T, lo:lo + Hs]
                s = jax.lax.dot_general(qh, kh, (((1,), (1,)), ((), ())),
                                        preferred_element_type=jnp.float32)  # (T, T)
                s = jnp.where(causal, s, -jnp.inf)
                s = s - jnp.max(s, axis=-1, keepdims=True)
                p = jnp.exp(s)
                p = p * pl.reciprocal(jnp.sum(p, axis=-1, keepdims=True),
                                      approx=SOFTMAX_APPROX_RECIP)
                # dropout = 0.0 -> identity
                outs.append(jnp.dot(p, vh, preferred_element_type=jnp.float32))
            rows.append(jnp.concatenate(outs, axis=-1))    # (T, 60)
        cat = rows[0] if batches_per_block == 1 else jnp.concatenate(rows, axis=0)

        sa = jnp.dot(cat, wp_ref[...], preferred_element_type=jnp.float32) + bp_ref[...]
        x1 = x + sa                                        # residual 1 (padded lanes stay 0)

        # ---- LayerNorm 2 (affine folded into w1/c1) + FeedForward ----
        mu2 = jnp.sum(x1, axis=-1, keepdims=True) * inv_c
        xc2 = jnp.where(feat, x1 - mu2, 0.0)
        var2 = jnp.sum(xc2 * xc2, axis=-1, keepdims=True) * inv_c
        xn2 = xc2 * jax.lax.rsqrt(var2 + LN_EPS)

        hid = jnp.dot(xn2, w1_ref[...], preferred_element_type=jnp.float32) + c1_ref[...]
        hid = jnp.maximum(hid, 0.0)
        ff = jnp.dot(hid, w2_ref[...], preferred_element_type=jnp.float32) + c2_ref[...]

        o_ref[...] = x1 + ff                               # residual 2, lane-dense store

    return kernel


# --------------------------- parameter preparation ---------------------------

def prepare_params(params):
    """One-time host-side transform: pad to lane-dense shapes, fuse QKV,
    fold the attention scale into wq and LN2's affine into w1/c1."""
    (g1, b1, wq, wk, wv, wp, bp, g2, b2, w1, c1, w2, c2) = params
    C, Cp, F, Fp = n_embd, C_PAD, 4 * n_embd, F_PAD
    scale = float(C) ** -0.5

    f32 = jnp.float32
    wqkv = jnp.zeros((Cp, 3 * Cp), f32)
    wqkv = wqkv.at[:C, 0 * Cp:0 * Cp + C].set(wq.astype(f32) * scale)   # scale folded into q
    wqkv = wqkv.at[:C, 1 * Cp:1 * Cp + C].set(wk.astype(f32))
    wqkv = wqkv.at[:C, 2 * Cp:2 * Cp + C].set(wv.astype(f32))

    g1_p = jnp.zeros((1, Cp), f32).at[0, :C].set(g1)
    b1_p = jnp.zeros((1, Cp), f32).at[0, :C].set(b1)

    wp_p = jnp.zeros((C, Cp), f32).at[:, :C].set(wp)
    bp_p = jnp.zeros((1, Cp), f32).at[0, :C].set(bp)

    # Fold LN2's affine into the first FFN linear (exact):
    #   (xhat*g2 + b2) @ w1 + c1 == xhat @ (g2[:,None]*w1) + (b2 @ w1 + c1)
    w1f = g2[:, None] * w1
    c1f = b2 @ w1 + c1
    w1_p = jnp.zeros((Cp, Fp), f32).at[:C, :F].set(w1f)
    c1_p = jnp.zeros((1, Fp), f32).at[0, :F].set(c1f)
    w2_p = jnp.zeros((Fp, Cp), f32).at[:F, :C].set(w2)
    c2_p = jnp.zeros((1, Cp), f32).at[0, :C].set(c2)

    return (g1_p, b1_p, wqkv, wp_p, bp_p, w1_p, c1_p, w2_p, c2_p)


# --------------------------------- wrapper ----------------------------------

def _full_spec(shape):
    n = len(shape)
    return pl.BlockSpec(shape, lambda i, _n=n: (0,) * _n)


def _choose_grid(B, T):
    # v7x has 2 TensorCores/chip: give each half the batch (parallel axis).
    # v5e/v6e have 1 TC: a single big step maximizes MXU M-fill and minimizes
    # per-step pipeline overhead (~0.35 us/step).
    try:
        kind = jax.devices()[0].device_kind.lower()
    except Exception:
        kind = ""
    if ("v7" in kind or "7x" in kind) and B % 2 == 0 and ((B * T) // 2) % 8 == 0:
        return 2
    return 1


def transformer_block(x, prepped_params):
    """
    x: (B, T, n_embd) float32
    prepped_params: output of prepare_params(...)
    """
    B, T, C = x.shape
    assert C == n_embd and T <= block_size

    G = _choose_grid(B, T)
    m_blk = (B * T) // G

    # Lane-dense input: pad the 60-wide embedding to 128 and fold (B,T)->M.
    x_p = jnp.pad(x.astype(jnp.float32), ((0, 0), (0, 0), (0, C_PAD - C)))
    x2d = x_p.reshape(B * T, C_PAD)

    kernel = _make_kernel(T=T, batches_per_block=B // G)

    out2d = pl.pallas_call(
        kernel,
        out_shape=jax.ShapeDtypeStruct((B * T, C_PAD), jnp.float32),
        grid=(G,),
        in_specs=[pl.BlockSpec((m_blk, C_PAD), lambda i: (i, 0))]
                 + [_full_spec(a.shape) for a in prepped_params],
        out_specs=pl.BlockSpec((m_blk, C_PAD), lambda i: (i, 0)),
        compiler_params=pltpu.CompilerParams(
            dimension_semantics=("parallel",)),            # v7x: shard grid across TCs
    )(x2d, *prepped_params)

    return out2d.reshape(B, T, C_PAD)[:, :, :C]


# --------------------------- reference (pure JAX) ----------------------------

def _reference(x, params):
    (g1, b1, wq, wk, wv, wp, bp, g2, b2, w1, c1, w2, c2) = params

    def ln(z, g, bb):
        mu = z.mean(-1, keepdims=True)
        var = ((z - mu) ** 2).mean(-1, keepdims=True)
        return (z - mu) / jnp.sqrt(var + LN_EPS) * g + bb

    B, T, C = x.shape
    xn = ln(x, g1, b1)
    mask = jnp.tril(jnp.ones((T, T), dtype=bool))
    outs = []
    for h in range(n_head):
        lo, hi = h * head_size, (h + 1) * head_size
        q = xn @ wq[:, lo:hi]
        k = xn @ wk[:, lo:hi]
        v = xn @ wv[:, lo:hi]
        s = (q @ jnp.swapaxes(k, -1, -2)) * (C ** -0.5)
        s = jnp.where(mask, s, -jnp.inf)
        p = jax.nn.softmax(s, axis=-1)
        outs.append(p @ v)
    sa_out = jnp.concatenate(outs, axis=-1) @ wp + bp
    x1 = x + sa_out
    xn2 = ln(x1, g2, b2)
    ff = jnp.maximum(xn2 @ w1 + c1, 0.0) @ w2 + c2
    return x1 + ff


# ----------------------------------- main ------------------------------------

if __name__ == "__main__":
    B, T = 2, 16

    key = jax.random.PRNGKey(0)
    ks = jax.random.split(key, 14)
    lim = 1.0 / (n_embd ** 0.5)
    lim2 = 1.0 / ((4 * n_embd) ** 0.5)

    x = jax.random.normal(ks[0], (B, T, n_embd), dtype=jnp.float32)
    g1 = 1.0 + 0.1 * jax.random.normal(ks[1], (n_embd,), jnp.float32)
    b1 = 0.1 * jax.random.normal(ks[2], (n_embd,), jnp.float32)
    wq = jax.random.uniform(ks[3], (n_embd, n_embd), jnp.float32, -lim, lim)
    wk = jax.random.uniform(ks[4], (n_embd, n_embd), jnp.float32, -lim, lim)
    wv = jax.random.uniform(ks[5], (n_embd, n_embd), jnp.float32, -lim, lim)
    wp = jax.random.uniform(ks[6], (n_embd, n_embd), jnp.float32, -lim, lim)
    bp = jax.random.uniform(ks[7], (n_embd,), jnp.float32, -lim, lim)
    g2 = 1.0 + 0.1 * jax.random.normal(ks[8], (n_embd,), jnp.float32)
    b2 = 0.1 * jax.random.normal(ks[9], (n_embd,), jnp.float32)
    w1 = jax.random.uniform(ks[10], (n_embd, 4 * n_embd), jnp.float32, -lim, lim)
    c1 = jax.random.uniform(ks[11], (4 * n_embd,), jnp.float32, -lim, lim)
    w2 = jax.random.uniform(ks[12], (4 * n_embd, n_embd), jnp.float32, -lim2, lim2)
    c2 = jax.random.uniform(ks[13], (n_embd,), jnp.float32, -lim2, lim2)

    params = (g1, b1, wq, wk, wv, wp, bp, g2, b2, w1, c1, w2, c2)
    prepped = prepare_params(params)     # one-time host-side prep (pad/fuse/fold)

    out = jax.block_until_ready(transformer_block(x, prepped))
    ref = _reference(x, params)

    assert out.shape == (B, T, n_embd)
    # Tolerance is 1e-4 with an exact softmax reciprocal; it is loosened to
    # 5e-3 solely to accommodate the ~12-bit EUP approx reciprocal suggested
    # by the perf review (SOFTMAX_APPROX_RECIP = False restores <1e-4 match).
    tol = 5e-3 if SOFTMAX_APPROX_RECIP else 1e-4
    assert jnp.allclose(out, ref, atol=tol, rtol=tol), "mismatch vs reference"

    print("KERNEL_OK")
</pallas_src>

<mosaic_0001>
module attributes {stable_mosaic.version = 11 : i64} {
  func.func @kernel(%arg0: i32, %arg1: memref<32x128xf32, #tpu.memory_space<vmem>>, %arg2: memref<1x128xf32, #tpu.memory_space<vmem>>, %arg3: memref<1x128xf32, #tpu.memory_space<vmem>>, %arg4: memref<128x384xf32, #tpu.memory_space<vmem>>, %arg5: memref<60x128xf32, #tpu.memory_space<vmem>>, %arg6: memref<1x128xf32, #tpu.memory_space<vmem>>, %arg7: memref<128x256xf32, #tpu.memory_space<vmem>>, %arg8: memref<1x256xf32, #tpu.memory_space<vmem>>, %arg9: memref<256x128xf32, #tpu.memory_space<vmem>>, %arg10: memref<1x128xf32, #tpu.memory_space<vmem>>, %arg11: memref<32x128xf32, #tpu.memory_space<vmem>>) attributes {dimension_semantics = [#tpu.dimension_semantics<parallel>], iteration_bounds = array<i64: 1>, scalar_prefetch = 0 : i64, scratch_operands = 0 : i64, tpu.core_type = #tpu.core_type<tc>, window_params = [{transform_indices = @transform_0, window_bounds = array<i64: 32, 128>}, {pipeline_mode = #tpu.pipeline_mode<synchronous>, transform_indices = @transform_1, window_bounds = array<i64: 1, 128>}, {pipeline_mode = #tpu.pipeline_mode<synchronous>, transform_indices = @transform_2, window_bounds = array<i64: 1, 128>}, {pipeline_mode = #tpu.pipeline_mode<synchronous>, transform_indices = @transform_3, window_bounds = array<i64: 128, 384>}, {pipeline_mode = #tpu.pipeline_mode<synchronous>, transform_indices = @transform_4, window_bounds = array<i64: 60, 128>}, {pipeline_mode = #tpu.pipeline_mode<synchronous>, transform_indices = @transform_5, window_bounds = array<i64: 1, 128>}, {pipeline_mode = #tpu.pipeline_mode<synchronous>, transform_indices = @transform_6, window_bounds = array<i64: 128, 256>}, {pipeline_mode = #tpu.pipeline_mode<synchronous>, transform_indices = @transform_7, window_bounds = array<i64: 1, 256>}, {pipeline_mode = #tpu.pipeline_mode<synchronous>, transform_indices = @transform_8, window_bounds = array<i64: 256, 128>}, {pipeline_mode = #tpu.pipeline_mode<synchronous>, transform_indices = @transform_9, window_bounds = array<i64: 1, 128>}, {transform_indices = @transform_10, window_bounds = array<i64: 32, 128>}]} {
    %c0 = arith.constant 0 : index
    %c0_0 = arith.constant 0 : index
    %0 = vector.load %arg1[%c0, %c0_0] : memref<32x128xf32, #tpu.memory_space<vmem>>, vector<32x128xf32>
    %1 = tpu.iota {dimensions = array<i32: 1>} : vector<32x128xi32>
    %c60_i32 = arith.constant 60 : i32
    %2 = vector.broadcast %c60_i32 : i32 to vector<32x128xi32>
    %3 = arith.cmpi slt, %1, %2 : vector<32x128xi32>
    %cst = arith.constant dense<0.000000e+00> : vector<32xf32>
    %4 = vector.multi_reduction <add>, %0, %cst [1] : vector<32x128xf32> to vector<32xf32>
    %5 = vector.shape_cast %4 : vector<32xf32> to vector<32x1xf32>
    %cst_1 = arith.constant 0.0166666675 : f32
    %6 = vector.broadcast %cst_1 : f32 to vector<32x1xf32>
    %7 = arith.mulf %5, %6 : vector<32x1xf32>
    %8 = vector.broadcast %7 : vector<32x1xf32> to vector<32x128xf32>
    %9 = arith.subf %0, %8 : vector<32x128xf32>
    %cst_2 = arith.constant 0.000000e+00 : f32
    %10 = vector.broadcast %cst_2 : f32 to vector<32x128xf32>
    %11 = arith.select %3, %9, %10 : vector<32x128xi1>, vector<32x128xf32>
    %12 = arith.mulf %11, %11 : vector<32x128xf32>
    %cst_3 = arith.constant dense<0.000000e+00> : vector<32xf32>
    %13 = vector.multi_reduction <add>, %12, %cst_3 [1] : vector<32x128xf32> to vector<32xf32>
    %14 = vector.shape_cast %13 : vector<32xf32> to vector<32x1xf32>
    %cst_4 = arith.constant 0.0166666675 : f32
    %15 = vector.broadcast %cst_4 : f32 to vector<32x1xf32>
    %16 = arith.mulf %14, %15 : vector<32x1xf32>
    %cst_5 = arith.constant 9.99999974E-6 : f32
    %17 = vector.broadcast %cst_5 : f32 to vector<32x1xf32>
    %18 = arith.addf %16, %17 : vector<32x1xf32>
    %19 = math.rsqrt %18 : vector<32x1xf32>
    %20 = vector.broadcast %19 : vector<32x1xf32> to vector<32x128xf32>
    %21 = arith.mulf %11, %20 : vector<32x128xf32>
    %c0_6 = arith.constant 0 : index
    %c0_7 = arith.constant 0 : index
    %22 = vector.load %arg2[%c0_6, %c0_7] : memref<1x128xf32, #tpu.memory_space<vmem>>, vector<1x128xf32>
    %23 = vector.broadcast %22 : vector<1x128xf32> to vector<32x128xf32>
    %24 = arith.mulf %21, %23 : vector<32x128xf32>
    %c0_8 = arith.constant 0 : index
    %c0_9 = arith.constant 0 : index
    %25 = vector.load %arg3[%c0_8, %c0_9] : memref<1x128xf32, #tpu.memory_space<vmem>>, vector<1x128xf32>
    %26 = vector.broadcast %25 : vector<1x128xf32> to vector<32x128xf32>
    %27 = arith.addf %24, %26 : vector<32x128xf32>
    %c0_10 = arith.constant 0 : index
    %c0_11 = arith.constant 0 : index
    %28 = vector.load %arg4[%c0_10, %c0_11] : memref<128x384xf32, #tpu.memory_space<vmem>>, vector<128x384xf32>
    %cst_12 = arith.constant dense<0.000000e+00> : vector<32x384xf32>
    %29 = tpu.matmul %27, %28, %cst_12 {dimension_numbers = #tpu.dot_dimension_numbers<[1], [0], [0], [1], [0, 0, 1, 1], [], []>} : vector<32x128xf32>, vector<128x384xf32>, vector<32x384xf32> -> vector<32x384xf32>
    %30 = vector.extract_strided_slice %29 {offsets = [0, 0], sizes = [32, 128], strides = [1, 1]} : vector<32x384xf32> to vector<32x128xf32>
    %31 = vector.extract_strided_slice %29 {offsets = [0, 128], sizes = [32, 128], strides = [1, 1]} : vector<32x384xf32> to vector<32x128xf32>
    %32 = vector.extract_strided_slice %29 {offsets = [0, 256], sizes = [32, 128], strides = [1, 1]} : vector<32x384xf32> to vector<32x128xf32>
    %33 = tpu.iota {dimensions = array<i32: 0>} : vector<16x16xi32>
    %34 = tpu.iota {dimensions = array<i32: 1>} : vector<16x16xi32>
    %35 = arith.cmpi sle, %34, %33 : vector<16x16xi32>
    %36 = vector.extract_strided_slice %30 {offsets = [0, 0], sizes = [16, 10], strides = [1, 1]} : vector<32x128xf32> to vector<16x10xf32>
    %37 = vector.extract_strided_slice %31 {offsets = [0, 0], sizes = [16, 10], strides = [1, 1]} : vector<32x128xf32> to vector<16x10xf32>
    %38 = vector.extract_strided_slice %32 {offsets = [0, 0], sizes = [16, 10], strides = [1, 1]} : vector<32x128xf32> to vector<16x10xf32>
    %cst_13 = arith.constant dense<0.000000e+00> : vector<16x16xf32>
    %39 = tpu.matmul %36, %37, %cst_13 {dimension_numbers = #tpu.dot_dimension_numbers<[1], [1], [0], [0], [0, 0, 1, 0], [], []>} : vector<16x10xf32>, vector<16x10xf32>, vector<16x16xf32> -> vector<16x16xf32>
    %cst_14 = arith.constant 0xFF800000 : f32
    %40 = vector.broadcast %cst_14 : f32 to vector<16x16xf32>
    %41 = arith.select %35, %39, %40 : vector<16x16xi1>, vector<16x16xf32>
    %cst_15 = arith.constant dense<0xFF800000> : vector<16xf32>
    %42 = vector.multi_reduction <maximumf>, %41, %cst_15 [1] : vector<16x16xf32> to vector<16xf32>
    %43 = vector.shape_cast %42 : vector<16xf32> to vector<16x1xf32>
    %44 = vector.broadcast %43 : vector<16x1xf32> to vector<16x16xf32>
    %45 = arith.subf %41, %44 : vector<16x16xf32>
    %46 = math.exp %45 : vector<16x16xf32>
    %cst_16 = arith.constant dense<0.000000e+00> : vector<16xf32>
    %47 = vector.multi_reduction <add>, %46, %cst_16 [1] : vector<16x16xf32> to vector<16xf32>
    %48 = vector.shape_cast %47 : vector<16xf32> to vector<16x1xf32>
    %49 = tpu.reciprocal %48 {approx = true} : vector<16x1xf32> -> vector<16x1xf32>
    %50 = vector.broadcast %49 : vector<16x1xf32> to vector<16x16xf32>
    %51 = arith.mulf %46, %50 : vector<16x16xf32>
    %cst_17 = arith.constant dense<0.000000e+00> : vector<16x10xf32>
    %52 = tpu.matmul %51, %38, %cst_17 {dimension_numbers = #tpu.dot_dimension_numbers<[1], [0], [0], [1], [0, 0, 1, 1], [], []>} : vector<16x16xf32>, vector<16x10xf32>, vector<16x10xf32> -> vector<16x10xf32>
    %53 = vector.extract_strided_slice %30 {offsets = [0, 10], sizes = [16, 10], strides = [1, 1]} : vector<32x128xf32> to vector<16x10xf32>
    %54 = vector.extract_strided_slice %31 {offsets = [0, 10], sizes = [16, 10], strides = [1, 1]} : vector<32x128xf32> to vector<16x10xf32>
    %55 = vector.extract_strided_slice %32 {offsets = [0, 10], sizes = [16, 10], strides = [1, 1]} : vector<32x128xf32> to vector<16x10xf32>
    %cst_18 = arith.constant dense<0.000000e+00> : vector<16x16xf32>
    %56 = tpu.matmul %53, %54, %cst_18 {dimension_numbers = #tpu.dot_dimension_numbers<[1], [1], [0], [0], [0, 0, 1, 0], [], []>} : vector<16x10xf32>, vector<16x10xf32>, vector<16x16xf32> -> vector<16x16xf32>
    %cst_19 = arith.constant 0xFF800000 : f32
    %57 = vector.broadcast %cst_19 : f32 to vector<16x16xf32>
    %58 = arith.select %35, %56, %57 : vector<16x16xi1>, vector<16x16xf32>
    %cst_20 = arith.constant dense<0xFF800000> : vector<16xf32>
    %59 = vector.multi_reduction <maximumf>, %58, %cst_20 [1] : vector<16x16xf32> to vector<16xf32>
    %60 = vector.shape_cast %59 : vector<16xf32> to vector<16x1xf32>
    %61 = vector.broadcast %60 : vector<16x1xf32> to vector<16x16xf32>
    %62 = arith.subf %58, %61 : vector<16x16xf32>
    %63 = math.exp %62 : vector<16x16xf32>
    %cst_21 = arith.constant dense<0.000000e+00> : vector<16xf32>
    %64 = vector.multi_reduction <add>, %63, %cst_21 [1] : vector<16x16xf32> to vector<16xf32>
    %65 = vector.shape_cast %64 : vector<16xf32> to vector<16x1xf32>
    %66 = tpu.reciprocal %65 {approx = true} : vector<16x1xf32> -> vector<16x1xf32>
    %67 = vector.broadcast %66 : vector<16x1xf32> to vector<16x16xf32>
    %68 = arith.mulf %63, %67 : vector<16x16xf32>
    %cst_22 = arith.constant dense<0.000000e+00> : vector<16x10xf32>
    %69 = tpu.matmul %68, %55, %cst_22 {dimension_numbers = #tpu.dot_dimension_numbers<[1], [0], [0], [1], [0, 0, 1, 1], [], []>} : vector<16x16xf32>, vector<16x10xf32>, vector<16x10xf32> -> vector<16x10xf32>
    %70 = vector.extract_strided_slice %30 {offsets = [0, 20], sizes = [16, 10], strides = [1, 1]} : vector<32x128xf32> to vector<16x10xf32>
    %71 = vector.extract_strided_slice %31 {offsets = [0, 20], sizes = [16, 10], strides = [1, 1]} : vector<32x128xf32> to vector<16x10xf32>
    %72 = vector.extract_strided_slice %32 {offsets = [0, 20], sizes = [16, 10], strides = [1, 1]} : vector<32x128xf32> to vector<16x10xf32>
    %cst_23 = arith.constant dense<0.000000e+00> : vector<16x16xf32>
    %73 = tpu.matmul %70, %71, %cst_23 {dimension_numbers = #tpu.dot_dimension_numbers<[1], [1], [0], [0], [0, 0, 1, 0], [], []>} : vector<16x10xf32>, vector<16x10xf32>, vector<16x16xf32> -> vector<16x16xf32>
    %cst_24 = arith.constant 0xFF800000 : f32
    %74 = vector.broadcast %cst_24 : f32 to vector<16x16xf32>
    %75 = arith.select %35, %73, %74 : vector<16x16xi1>, vector<16x16xf32>
    %cst_25 = arith.constant dense<0xFF800000> : vector<16xf32>
    %76 = vector.multi_reduction <maximumf>, %75, %cst_25 [1] : vector<16x16xf32> to vector<16xf32>
    %77 = vector.shape_cast %76 : vector<16xf32> to vector<16x1xf32>
    %78 = vector.broadcast %77 : vector<16x1xf32> to vector<16x16xf32>
    %79 = arith.subf %75, %78 : vector<16x16xf32>
    %80 = math.exp %79 : vector<16x16xf32>
    %cst_26 = arith.constant dense<0.000000e+00> : vector<16xf32>
    %81 = vector.multi_reduction <add>, %80, %cst_26 [1] : vector<16x16xf32> to vector<16xf32>
    %82 = vector.shape_cast %81 : vector<16xf32> to vector<16x1xf32>
    %83 = tpu.reciprocal %82 {approx = true} : vector<16x1xf32> -> vector<16x1xf32>
    %84 = vector.broadcast %83 : vector<16x1xf32> to vector<16x16xf32>
    %85 = arith.mulf %80, %84 : vector<16x16xf32>
    %cst_27 = arith.constant dense<0.000000e+00> : vector<16x10xf32>
    %86 = tpu.matmul %85, %72, %cst_27 {dimension_numbers = #tpu.dot_dimension_numbers<[1], [0], [0], [1], [0, 0, 1, 1], [], []>} : vector<16x16xf32>, vector<16x10xf32>, vector<16x10xf32> -> vector<16x10xf32>
    %87 = vector.extract_strided_slice %30 {offsets = [0, 30], sizes = [16, 10], strides = [1, 1]} : vector<32x128xf32> to vector<16x10xf32>
    %88 = vector.extract_strided_slice %31 {offsets = [0, 30], sizes = [16, 10], strides = [1, 1]} : vector<32x128xf32> to vector<16x10xf32>
    %89 = vector.extract_strided_slice %32 {offsets = [0, 30], sizes = [16, 10], strides = [1, 1]} : vector<32x128xf32> to vector<16x10xf32>
    %cst_28 = arith.constant dense<0.000000e+00> : vector<16x16xf32>
    %90 = tpu.matmul %87, %88, %cst_28 {dimension_numbers = #tpu.dot_dimension_numbers<[1], [1], [0], [0], [0, 0, 1, 0], [], []>} : vector<16x10xf32>, vector<16x10xf32>, vector<16x16xf32> -> vector<16x16xf32>
    %cst_29 = arith.constant 0xFF800000 : f32
    %91 = vector.broadcast %cst_29 : f32 to vector<16x16xf32>
    %92 = arith.select %35, %90, %91 : vector<16x16xi1>, vector<16x16xf32>
    %cst_30 = arith.constant dense<0xFF800000> : vector<16xf32>
    %93 = vector.multi_reduction <maximumf>, %92, %cst_30 [1] : vector<16x16xf32> to vector<16xf32>
    %94 = vector.shape_cast %93 : vector<16xf32> to vector<16x1xf32>
    %95 = vector.broadcast %94 : vector<16x1xf32> to vector<16x16xf32>
    %96 = arith.subf %92, %95 : vector<16x16xf32>
    %97 = math.exp %96 : vector<16x16xf32>
    %cst_31 = arith.constant dense<0.000000e+00> : vector<16xf32>
    %98 = vector.multi_reduction <add>, %97, %cst_31 [1] : vector<16x16xf32> to vector<16xf32>
    %99 = vector.shape_cast %98 : vector<16xf32> to vector<16x1xf32>
    %100 = tpu.reciprocal %99 {approx = true} : vector<16x1xf32> -> vector<16x1xf32>
    %101 = vector.broadcast %100 : vector<16x1xf32> to vector<16x16xf32>
    %102 = arith.mulf %97, %101 : vector<16x16xf32>
    %cst_32 = arith.constant dense<0.000000e+00> : vector<16x10xf32>
    %103 = tpu.matmul %102, %89, %cst_32 {dimension_numbers = #tpu.dot_dimension_numbers<[1], [0], [0], [1], [0, 0, 1, 1], [], []>} : vector<16x16xf32>, vector<16x10xf32>, vector<16x10xf32> -> vector<16x10xf32>
    %104 = vector.extract_strided_slice %30 {offsets = [0, 40], sizes = [16, 10], strides = [1, 1]} : vector<32x128xf32> to vector<16x10xf32>
    %105 = vector.extract_strided_slice %31 {offsets = [0, 40], sizes = [16, 10], strides = [1, 1]} : vector<32x128xf32> to vector<16x10xf32>
    %106 = vector.extract_strided_slice %32 {offsets = [0, 40], sizes = [16, 10], strides = [1, 1]} : vector<32x128xf32> to vector<16x10xf32>
    %cst_33 = arith.constant dense<0.000000e+00> : vector<16x16xf32>
    %107 = tpu.matmul %104, %105, %cst_33 {dimension_numbers = #tpu.dot_dimension_numbers<[1], [1], [0], [0], [0, 0, 1, 0], [], []>} : vector<16x10xf32>, vector<16x10xf32>, vector<16x16xf32> -> vector<16x16xf32>
    %cst_34 = arith.constant 0xFF800000 : f32
    %108 = vector.broadcast %cst_34 : f32 to vector<16x16xf32>
    %109 = arith.select %35, %107, %108 : vector<16x16xi1>, vector<16x16xf32>
    %cst_35 = arith.constant dense<0xFF800000> : vector<16xf32>
    %110 = vector.multi_reduction <maximumf>, %109, %cst_35 [1] : vector<16x16xf32> to vector<16xf32>
    %111 = vector.shape_cast %110 : vector<16xf32> to vector<16x1xf32>
    %112 = vector.broadcast %111 : vector<16x1xf32> to vector<16x16xf32>
    %113 = arith.subf %109, %112 : vector<16x16xf32>
    %114 = math.exp %113 : vector<16x16xf32>
    %cst_36 = arith.constant dense<0.000000e+00> : vector<16xf32>
    %115 = vector.multi_reduction <add>, %114, %cst_36 [1] : vector<16x16xf32> to vector<16xf32>
    %116 = vector.shape_cast %115 : vector<16xf32> to vector<16x1xf32>
    %117 = tpu.reciprocal %116 {approx = true} : vector<16x1xf32> -> vector<16x1xf32>
    %118 = vector.broadcast %117 : vector<16x1xf32> to vector<16x16xf32>
    %119 = arith.mulf %114, %118 : vector<16x16xf32>
    %cst_37 = arith.constant dense<0.000000e+00> : vector<16x10xf32>
    %120 = tpu.matmul %119, %106, %cst_37 {dimension_numbers = #tpu.dot_dimension_numbers<[1], [0], [0], [1], [0, 0, 1, 1], [], []>} : vector<16x16xf32>, vector<16x10xf32>, vector<16x10xf32> -> vector<16x10xf32>
    %121 = vector.extract_strided_slice %30 {offsets = [0, 50], sizes = [16, 10], strides = [1, 1]} : vector<32x128xf32> to vector<16x10xf32>
    %122 = vector.extract_strided_slice %31 {offsets = [0, 50], sizes = [16, 10], strides = [1, 1]} : vector<32x128xf32> to vector<16x10xf32>
    %123 = vector.extract_strided_slice %32 {offsets = [0, 50], sizes = [16, 10], strides = [1, 1]} : vector<32x128xf32> to vector<16x10xf32>
    %cst_38 = arith.constant dense<0.000000e+00> : vector<16x16xf32>
    %124 = tpu.matmul %121, %122, %cst_38 {dimension_numbers = #tpu.dot_dimension_numbers<[1], [1], [0], [0], [0, 0, 1, 0], [], []>} : vector<16x10xf32>, vector<16x10xf32>, vector<16x16xf32> -> vector<16x16xf32>
    %cst_39 = arith.constant 0xFF800000 : f32
    %125 = vector.broadcast %cst_39 : f32 to vector<16x16xf32>
    %126 = arith.select %35, %124, %125 : vector<16x16xi1>, vector<16x16xf32>
    %cst_40 = arith.constant dense<0xFF800000> : vector<16xf32>
    %127 = vector.multi_reduction <maximumf>, %126, %cst_40 [1] : vector<16x16xf32> to vector<16xf32>
    %128 = vector.shape_cast %127 : vector<16xf32> to vector<16x1xf32>
    %129 = vector.broadcast %128 : vector<16x1xf32> to vector<16x16xf32>
    %130 = arith.subf %126, %129 : vector<16x16xf32>
    %131 = math.exp %130 : vector<16x16xf32>
    %cst_41 = arith.constant dense<0.000000e+00> : vector<16xf32>
    %132 = vector.multi_reduction <add>, %131, %cst_41 [1] : vector<16x16xf32> to vector<16xf32>
    %133 = vector.shape_cast %132 : vector<16xf32> to vector<16x1xf32>
    %134 = tpu.reciprocal %133 {approx = true} : vector<16x1xf32> -> vector<16x1xf32>
    %135 = vector.broadcast %134 : vector<16x1xf32> to vector<16x16xf32>
    %136 = arith.mulf %131, %135 : vector<16x16xf32>
    %cst_42 = arith.constant dense<0.000000e+00> : vector<16x10xf32>
    %137 = tpu.matmul %136, %123, %cst_42 {dimension_numbers = #tpu.dot_dimension_numbers<[1], [0], [0], [1], [0, 0, 1, 1], [], []>} : vector<16x16xf32>, vector<16x10xf32>, vector<16x10xf32> -> vector<16x10xf32>
    %138 = tpu.concatenate %52, %69, %86, %103, %120, %137 in 1 : vector<16x10xf32>, vector<16x10xf32>, vector<16x10xf32>, vector<16x10xf32>, vector<16x10xf32>, vector<16x10xf32> -> vector<16x60xf32>
    %139 = vector.extract_strided_slice %30 {offsets = [16, 0], sizes = [16, 10], strides = [1, 1]} : vector<32x128xf32> to vector<16x10xf32>
    %140 = vector.extract_strided_slice %31 {offsets = [16, 0], sizes = [16, 10], strides = [1, 1]} : vector<32x128xf32> to vector<16x10xf32>
    %141 = vector.extract_strided_slice %32 {offsets = [16, 0], sizes = [16, 10], strides = [1, 1]} : vector<32x128xf32> to vector<16x10xf32>
    %cst_43 = arith.constant dense<0.000000e+00> : vector<16x16xf32>
    %142 = tpu.matmul %139, %140, %cst_43 {dimension_numbers = #tpu.dot_dimension_numbers<[1], [1], [0], [0], [0, 0, 1, 0], [], []>} : vector<16x10xf32>, vector<16x10xf32>, vector<16x16xf32> -> vector<16x16xf32>
    %cst_44 = arith.constant 0xFF800000 : f32
    %143 = vector.broadcast %cst_44 : f32 to vector<16x16xf32>
    %144 = arith.select %35, %142, %143 : vector<16x16xi1>, vector<16x16xf32>
    %cst_45 = arith.constant dense<0xFF800000> : vector<16xf32>
    %145 = vector.multi_reduction <maximumf>, %144, %cst_45 [1] : vector<16x16xf32> to vector<16xf32>
    %146 = vector.shape_cast %145 : vector<16xf32> to vector<16x1xf32>
    %147 = vector.broadcast %146 : vector<16x1xf32> to vector<16x16xf32>
    %148 = arith.subf %144, %147 : vector<16x16xf32>
    %149 = math.exp %148 : vector<16x16xf32>
    %cst_46 = arith.constant dense<0.000000e+00> : vector<16xf32>
    %150 = vector.multi_reduction <add>, %149, %cst_46 [1] : vector<16x16xf32> to vector<16xf32>
    %151 = vector.shape_cast %150 : vector<16xf32> to vector<16x1xf32>
    %152 = tpu.reciprocal %151 {approx = true} : vector<16x1xf32> -> vector<16x1xf32>
    %153 = vector.broadcast %152 : vector<16x1xf32> to vector<16x16xf32>
    %154 = arith.mulf %149, %153 : vector<16x16xf32>
    %cst_47 = arith.constant dense<0.000000e+00> : vector<16x10xf32>
    %155 = tpu.matmul %154, %141, %cst_47 {dimension_numbers = #tpu.dot_dimension_numbers<[1], [0], [0], [1], [0, 0, 1, 1], [], []>} : vector<16x16xf32>, vector<16x10xf32>, vector<16x10xf32> -> vector<16x10xf32>
    %156 = vector.extract_strided_slice %30 {offsets = [16, 10], sizes = [16, 10], strides = [1, 1]} : vector<32x128xf32> to vector<16x10xf32>
    %157 = vector.extract_strided_slice %31 {offsets = [16, 10], sizes = [16, 10], strides = [1, 1]} : vector<32x128xf32> to vector<16x10xf32>
    %158 = vector.extract_strided_slice %32 {offsets = [16, 10], sizes = [16, 10], strides = [1, 1]} : vector<32x128xf32> to vector<16x10xf32>
    %cst_48 = arith.constant dense<0.000000e+00> : vector<16x16xf32>
    %159 = tpu.matmul %156, %157, %cst_48 {dimension_numbers = #tpu.dot_dimension_numbers<[1], [1], [0], [0], [0, 0, 1, 0], [], []>} : vector<16x10xf32>, vector<16x10xf32>, vector<16x16xf32> -> vector<16x16xf32>
    %cst_49 = arith.constant 0xFF800000 : f32
    %160 = vector.broadcast %cst_49 : f32 to vector<16x16xf32>
    %161 = arith.select %35, %159, %160 : vector<16x16xi1>, vector<16x16xf32>
    %cst_50 = arith.constant dense<0xFF800000> : vector<16xf32>
    %162 = vector.multi_reduction <maximumf>, %161, %cst_50 [1] : vector<16x16xf32> to vector<16xf32>
    %163 = vector.shape_cast %162 : vector<16xf32> to vector<16x1xf32>
    %164 = vector.broadcast %163 : vector<16x1xf32> to vector<16x16xf32>
    %165 = arith.subf %161, %164 : vector<16x16xf32>
    %166 = math.exp %165 : vector<16x16xf32>
    %cst_51 = arith.constant dense<0.000000e+00> : vector<16xf32>
    %167 = vector.multi_reduction <add>, %166, %cst_51 [1] : vector<16x16xf32> to vector<16xf32>
    %168 = vector.shape_cast %167 : vector<16xf32> to vector<16x1xf32>
    %169 = tpu.reciprocal %168 {approx = true} : vector<16x1xf32> -> vector<16x1xf32>
    %170 = vector.broadcast %169 : vector<16x1xf32> to vector<16x16xf32>
    %171 = arith.mulf %166, %170 : vector<16x16xf32>
    %cst_52 = arith.constant dense<0.000000e+00> : vector<16x10xf32>
    %172 = tpu.matmul %171, %158, %cst_52 {dimension_numbers = #tpu.dot_dimension_numbers<[1], [0], [0], [1], [0, 0, 1, 1], [], []>} : vector<16x16xf32>, vector<16x10xf32>, vector<16x10xf32> -> vector<16x10xf32>
    %173 = vector.extract_strided_slice %30 {offsets = [16, 20], sizes = [16, 10], strides = [1, 1]} : vector<32x128xf32> to vector<16x10xf32>
    %174 = vector.extract_strided_slice %31 {offsets = [16, 20], sizes = [16, 10], strides = [1, 1]} : vector<32x128xf32> to vector<16x10xf32>
    %175 = vector.extract_strided_slice %32 {offsets = [16, 20], sizes = [16, 10], strides = [1, 1]} : vector<32x128xf32> to vector<16x10xf32>
    %cst_53 = arith.constant dense<0.000000e+00> : vector<16x16xf32>
    %176 = tpu.matmul %173, %174, %cst_53 {dimension_numbers = #tpu.dot_dimension_numbers<[1], [1], [0], [0], [0, 0, 1, 0], [], []>} : vector<16x10xf32>, vector<16x10xf32>, vector<16x16xf32> -> vector<16x16xf32>
    %cst_54 = arith.constant 0xFF800000 : f32
    %177 = vector.broadcast %cst_54 : f32 to vector<16x16xf32>
    %178 = arith.select %35, %176, %177 : vector<16x16xi1>, vector<16x16xf32>
    %cst_55 = arith.constant dense<0xFF800000> : vector<16xf32>
    %179 = vector.multi_reduction <maximumf>, %178, %cst_55 [1] : vector<16x16xf32> to vector<16xf32>
    %180 = vector.shape_cast %179 : vector<16xf32> to vector<16x1xf32>
    %181 = vector.broadcast %180 : vector<16x1xf32> to vector<16x16xf32>
    %182 = arith.subf %178, %181 : vector<16x16xf32>
    %183 = math.exp %182 : vector<16x16xf32>
    %cst_56 = arith.constant dense<0.000000e+00> : vector<16xf32>
    %184 = vector.multi_reduction <add>, %183, %cst_56 [1] : vector<16x16xf32> to vector<16xf32>
    %185 = vector.shape_cast %184 : vector<16xf32> to vector<16x1xf32>
    %186 = tpu.reciprocal %185 {approx = true} : vector<16x1xf32> -> vector<16x1xf32>
    %187 = vector.broadcast %186 : vector<16x1xf32> to vector<16x16xf32>
    %188 = arith.mulf %183, %187 : vector<16x16xf32>
    %cst_57 = arith.constant dense<0.000000e+00> : vector<16x10xf32>
    %189 = tpu.matmul %188, %175, %cst_57 {dimension_numbers = #tpu.dot_dimension_numbers<[1], [0], [0], [1], [0, 0, 1, 1], [], []>} : vector<16x16xf32>, vector<16x10xf32>, vector<16x10xf32> -> vector<16x10xf32>
    %190 = vector.extract_strided_slice %30 {offsets = [16, 30], sizes = [16, 10], strides = [1, 1]} : vector<32x128xf32> to vector<16x10xf32>
    %191 = vector.extract_strided_slice %31 {offsets = [16, 30], sizes = [16, 10], strides = [1, 1]} : vector<32x128xf32> to vector<16x10xf32>
    %192 = vector.extract_strided_slice %32 {offsets = [16, 30], sizes = [16, 10], strides = [1, 1]} : vector<32x128xf32> to vector<16x10xf32>
    %cst_58 = arith.constant dense<0.000000e+00> : vector<16x16xf32>
    %193 = tpu.matmul %190, %191, %cst_58 {dimension_numbers = #tpu.dot_dimension_numbers<[1], [1], [0], [0], [0, 0, 1, 0], [], []>} : vector<16x10xf32>, vector<16x10xf32>, vector<16x16xf32> -> vector<16x16xf32>
    %cst_59 = arith.constant 0xFF800000 : f32
    %194 = vector.broadcast %cst_59 : f32 to vector<16x16xf32>
    %195 = arith.select %35, %193, %194 : vector<16x16xi1>, vector<16x16xf32>
    %cst_60 = arith.constant dense<0xFF800000> : vector<16xf32>
    %196 = vector.multi_reduction <maximumf>, %195, %cst_60 [1] : vector<16x16xf32> to vector<16xf32>
    %197 = vector.shape_cast %196 : vector<16xf32> to vector<16x1xf32>
    %198 = vector.broadcast %197 : vector<16x1xf32> to vector<16x16xf32>
    %199 = arith.subf %195, %198 : vector<16x16xf32>
    %200 = math.exp %199 : vector<16x16xf32>
    %cst_61 = arith.constant dense<0.000000e+00> : vector<16xf32>
    %201 = vector.multi_reduction <add>, %200, %cst_61 [1] : vector<16x16xf32> to vector<16xf32>
    %202 = vector.shape_cast %201 : vector<16xf32> to vector<16x1xf32>
    %203 = tpu.reciprocal %202 {approx = true} : vector<16x1xf32> -> vector<16x1xf32>
    %204 = vector.broadcast %203 : vector<16x1xf32> to vector<16x16xf32>
    %205 = arith.mulf %200, %204 : vector<16x16xf32>
    %cst_62 = arith.constant dense<0.000000e+00> : vector<16x10xf32>
    %206 = tpu.matmul %205, %192, %cst_62 {dimension_numbers = #tpu.dot_dimension_numbers<[1], [0], [0], [1], [0, 0, 1, 1], [], []>} : vector<16x16xf32>, vector<16x10xf32>, vector<16x10xf32> -> vector<16x10xf32>
    %207 = vector.extract_strided_slice %30 {offsets = [16, 40], sizes = [16, 10], strides = [1, 1]} : vector<32x128xf32> to vector<16x10xf32>
    %208 = vector.extract_strided_slice %31 {offsets = [16, 40], sizes = [16, 10], strides = [1, 1]} : vector<32x128xf32> to vector<16x10xf32>
    %209 = vector.extract_strided_slice %32 {offsets = [16, 40], sizes = [16, 10], strides = [1, 1]} : vector<32x128xf32> to vector<16x10xf32>
    %cst_63 = arith.constant dense<0.000000e+00> : vector<16x16xf32>
    %210 = tpu.matmul %207, %208, %cst_63 {dimension_numbers = #tpu.dot_dimension_numbers<[1], [1], [0], [0], [0, 0, 1, 0], [], []>} : vector<16x10xf32>, vector<16x10xf32>, vector<16x16xf32> -> vector<16x16xf32>
    %cst_64 = arith.constant 0xFF800000 : f32
    %211 = vector.broadcast %cst_64 : f32 to vector<16x16xf32>
    %212 = arith.select %35, %210, %211 : vector<16x16xi1>, vector<16x16xf32>
    %cst_65 = arith.constant dense<0xFF800000> : vector<16xf32>
    %213 = vector.multi_reduction <maximumf>, %212, %cst_65 [1] : vector<16x16xf32> to vector<16xf32>
    %214 = vector.shape_cast %213 : vector<16xf32> to vector<16x1xf32>
    %215 = vector.broadcast %214 : vector<16x1xf32> to vector<16x16xf32>
    %216 = arith.subf %212, %215 : vector<16x16xf32>
    %217 = math.exp %216 : vector<16x16xf32>
    %cst_66 = arith.constant dense<0.000000e+00> : vector<16xf32>
    %218 = vector.multi_reduction <add>, %217, %cst_66 [1] : vector<16x16xf32> to vector<16xf32>
    %219 = vector.shape_cast %218 : vector<16xf32> to vector<16x1xf32>
    %220 = tpu.reciprocal %219 {approx = true} : vector<16x1xf32> -> vector<16x1xf32>
    %221 = vector.broadcast %220 : vector<16x1xf32> to vector<16x16xf32>
    %222 = arith.mulf %217, %221 : vector<16x16xf32>
    %cst_67 = arith.constant dense<0.000000e+00> : vector<16x10xf32>
    %223 = tpu.matmul %222, %209, %cst_67 {dimension_numbers = #tpu.dot_dimension_numbers<[1], [0], [0], [1], [0, 0, 1, 1], [], []>} : vector<16x16xf32>, vector<16x10xf32>, vector<16x10xf32> -> vector<16x10xf32>
    %224 = vector.extract_strided_slice %30 {offsets = [16, 50], sizes = [16, 10], strides = [1, 1]} : vector<32x128xf32> to vector<16x10xf32>
    %225 = vector.extract_strided_slice %31 {offsets = [16, 50], sizes = [16, 10], strides = [1, 1]} : vector<32x128xf32> to vector<16x10xf32>
    %226 = vector.extract_strided_slice %32 {offsets = [16, 50], sizes = [16, 10], strides = [1, 1]} : vector<32x128xf32> to vector<16x10xf32>
    %cst_68 = arith.constant dense<0.000000e+00> : vector<16x16xf32>
    %227 = tpu.matmul %224, %225, %cst_68 {dimension_numbers = #tpu.dot_dimension_numbers<[1], [1], [0], [0], [0, 0, 1, 0], [], []>} : vector<16x10xf32>, vector<16x10xf32>, vector<16x16xf32> -> vector<16x16xf32>
    %cst_69 = arith.constant 0xFF800000 : f32
    %228 = vector.broadcast %cst_69 : f32 to vector<16x16xf32>
    %229 = arith.select %35, %227, %228 : vector<16x16xi1>, vector<16x16xf32>
    %cst_70 = arith.constant dense<0xFF800000> : vector<16xf32>
    %230 = vector.multi_reduction <maximumf>, %229, %cst_70 [1] : vector<16x16xf32> to vector<16xf32>
    %231 = vector.shape_cast %230 : vector<16xf32> to vector<16x1xf32>
    %232 = vector.broadcast %231 : vector<16x1xf32> to vector<16x16xf32>
    %233 = arith.subf %229, %232 : vector<16x16xf32>
    %234 = math.exp %233 : vector<16x16xf32>
    %cst_71 = arith.constant dense<0.000000e+00> : vector<16xf32>
    %235 = vector.multi_reduction <add>, %234, %cst_71 [1] : vector<16x16xf32> to vector<16xf32>
    %236 = vector.shape_cast %235 : vector<16xf32> to vector<16x1xf32>
    %237 = tpu.reciprocal %236 {approx = true} : vector<16x1xf32> -> vector<16x1xf32>
    %238 = vector.broadcast %237 : vector<16x1xf32> to vector<16x16xf32>
    %239 = arith.mulf %234, %238 : vector<16x16xf32>
    %cst_72 = arith.constant dense<0.000000e+00> : vector<16x10xf32>
    %240 = tpu.matmul %239, %226, %cst_72 {dimension_numbers = #tpu.dot_dimension_numbers<[1], [0], [0], [1], [0, 0, 1, 1], [], []>} : vector<16x16xf32>, vector<16x10xf32>, vector<16x10xf32> -> vector<16x10xf32>
    %241 = tpu.concatenate %155, %172, %189, %206, %223, %240 in 1 : vector<16x10xf32>, vector<16x10xf32>, vector<16x10xf32>, vector<16x10xf32>, vector<16x10xf32>, vector<16x10xf32> -> vector<16x60xf32>
    %242 = tpu.concatenate %138, %241 in 0 : vector<16x60xf32>, vector<16x60xf32> -> vector<32x60xf32>
    %c0_73 = arith.constant 0 : index
    %c0_74 = arith.constant 0 : index
    %243 = vector.load %arg5[%c0_73, %c0_74] : memref<60x128xf32, #tpu.memory_space<vmem>>, vector<60x128xf32>
    %cst_75 = arith.constant dense<0.000000e+00> : vector<32x128xf32>
    %244 = tpu.matmul %242, %243, %cst_75 {dimension_numbers = #tpu.dot_dimension_numbers<[1], [0], [0], [1], [0, 0, 1, 1], [], []>} : vector<32x60xf32>, vector<60x128xf32>, vector<32x128xf32> -> vector<32x128xf32>
    %c0_76 = arith.constant 0 : index
    %c0_77 = arith.constant 0 : index
    %245 = vector.load %arg6[%c0_76, %c0_77] : memref<1x128xf32, #tpu.memory_space<vmem>>, vector<1x128xf32>
    %246 = vector.broadcast %245 : vector<1x128xf32> to vector<32x128xf32>
    %247 = arith.addf %244, %246 : vector<32x128xf32>
    %248 = arith.addf %0, %247 : vector<32x128xf32>
    %cst_78 = arith.constant dense<0.000000e+00> : vector<32xf32>
    %249 = vector.multi_reduction <add>, %248, %cst_78 [1] : vector<32x128xf32> to vector<32xf32>
    %250 = vector.shape_cast %249 : vector<32xf32> to vector<32x1xf32>
    %cst_79 = arith.constant 0.0166666675 : f32
    %251 = vector.broadcast %cst_79 : f32 to vector<32x1xf32>
    %252 = arith.mulf %250, %251 : vector<32x1xf32>
    %253 = vector.broadcast %252 : vector<32x1xf32> to vector<32x128xf32>
    %254 = arith.subf %248, %253 : vector<32x128xf32>
    %cst_80 = arith.constant 0.000000e+00 : f32
    %255 = vector.broadcast %cst_80 : f32 to vector<32x128xf32>
    %256 = arith.select %3, %254, %255 : vector<32x128xi1>, vector<32x128xf32>
    %257 = arith.mulf %256, %256 : vector<32x128xf32>
    %cst_81 = arith.constant dense<0.000000e+00> : vector<32xf32>
    %258 = vector.multi_reduction <add>, %257, %cst_81 [1] : vector<32x128xf32> to vector<32xf32>
    %259 = vector.shape_cast %258 : vector<32xf32> to vector<32x1xf32>
    %cst_82 = arith.constant 0.0166666675 : f32
    %260 = vector.broadcast %cst_82 : f32 to vector<32x1xf32>
    %261 = arith.mulf %259, %260 : vector<32x1xf32>
    %cst_83 = arith.constant 9.99999974E-6 : f32
    %262 = vector.broadcast %cst_83 : f32 to vector<32x1xf32>
    %263 = arith.addf %261, %262 : vector<32x1xf32>
    %264 = math.rsqrt %263 : vector<32x1xf32>
    %265 = vector.broadcast %264 : vector<32x1xf32> to vector<32x128xf32>
    %266 = arith.mulf %256, %265 : vector<32x128xf32>
    %c0_84 = arith.constant 0 : index
    %c0_85 = arith.constant 0 : index
    %267 = vector.load %arg7[%c0_84, %c0_85] : memref<128x256xf32, #tpu.memory_space<vmem>>, vector<128x256xf32>
    %cst_86 = arith.constant dense<0.000000e+00> : vector<32x256xf32>
    %268 = tpu.matmul %266, %267, %cst_86 {dimension_numbers = #tpu.dot_dimension_numbers<[1], [0], [0], [1], [0, 0, 1, 1], [], []>} : vector<32x128xf32>, vector<128x256xf32>, vector<32x256xf32> -> vector<32x256xf32>
    %c0_87 = arith.constant 0 : index
    %c0_88 = arith.constant 0 : index
    %269 = vector.load %arg8[%c0_87, %c0_88] : memref<1x256xf32, #tpu.memory_space<vmem>>, vector<1x256xf32>
    %270 = vector.broadcast %269 : vector<1x256xf32> to vector<32x256xf32>
    %271 = arith.addf %268, %270 : vector<32x256xf32>
    %cst_89 = arith.constant 0.000000e+00 : f32
    %272 = vector.broadcast %cst_89 : f32 to vector<32x256xf32>
    %273 = arith.maximumf %271, %272 : vector<32x256xf32>
    %c0_90 = arith.constant 0 : index
    %c0_91 = arith.constant 0 : index
    %274 = vector.load %arg9[%c0_90, %c0_91] : memref<256x128xf32, #tpu.memory_space<vmem>>, vector<256x128xf32>
    %cst_92 = arith.constant dense<0.000000e+00> : vector<32x128xf32>
    %275 = tpu.matmul %273, %274, %cst_92 {dimension_numbers = #tpu.dot_dimension_numbers<[1], [0], [0], [1], [0, 0, 1, 1], [], []>} : vector<32x256xf32>, vector<256x128xf32>, vector<32x128xf32> -> vector<32x128xf32>
    %c0_93 = arith.constant 0 : index
    %c0_94 = arith.constant 0 : index
    %276 = vector.load %arg10[%c0_93, %c0_94] : memref<1x128xf32, #tpu.memory_space<vmem>>, vector<1x128xf32>
    %277 = vector.broadcast %276 : vector<1x128xf32> to vector<32x128xf32>
    %278 = arith.addf %275, %277 : vector<32x128xf32>
    %279 = arith.addf %248, %278 : vector<32x128xf32>
    %c0_95 = arith.constant 0 : index
    %c0_96 = arith.constant 0 : index
    %280 = vector.load %arg11[%c0_95, %c0_96] : memref<32x128xf32, #tpu.memory_space<vmem>>, vector<32x128xf32>
    tpu.vector_store %arg11[%c0_95, %c0_96], %279 {strides = array<i32>} : memref<32x128xf32, #tpu.memory_space<vmem>>, vector<32x128xf32>,
    return
  }
  func.func @transform_0(%arg0: i32) -> (i32, i32) {
    %c0_i32 = arith.constant 0 : i32
    %c0_i32_0 = arith.constant 0 : i32
    return %arg0, %c0_i32 : i32, i32
  }
  func.func @transform_1(%arg0: i32) -> (i32, i32) {
    %c0_i32 = arith.constant 0 : i32
    %c0_i32_0 = arith.constant 0 : i32
    %c0_i32_1 = arith.constant 0 : i32
    return %c0_i32, %c0_i32_0 : i32, i32
  }
  func.func @transform_2(%arg0: i32) -> (i32, i32) {
    %c0_i32 = arith.constant 0 : i32
    %c0_i32_0 = arith.constant 0 : i32
    %c0_i32_1 = arith.constant 0 : i32
    return %c0_i32, %c0_i32_0 : i32, i32
  }
  func.func @transform_3(%arg0: i32) -> (i32, i32) {
    %c0_i32 = arith.constant 0 : i32
    %c0_i32_0 = arith.constant 0 : i32
    %c0_i32_1 = arith.constant 0 : i32
    return %c0_i32, %c0_i32_0 : i32, i32
  }
  func.func @transform_4(%arg0: i32) -> (i32, i32) {
    %c0_i32 = arith.constant 0 : i32
    %c0_i32_0 = arith.constant 0 : i32
    %c0_i32_1 = arith.constant 0 : i32
    return %c0_i32, %c0_i32_0 : i32, i32
  }
  func.func @transform_5(%arg0: i32) -> (i32, i32) {
    %c0_i32 = arith.constant 0 : i32
    %c0_i32_0 = arith.constant 0 : i32
    %c0_i32_1 = arith.constant 0 : i32
    return %c0_i32, %c0_i32_0 : i32, i32
  }
  func.func @transform_6(%arg0: i32) -> (i32, i32) {
    %c0_i32 = arith.constant 0 : i32
    %c0_i32_0 = arith.constant 0 : i32
    %c0_i32_1 = arith.constant 0 : i32
    return %c0_i32, %c0_i32_0 : i32, i32
  }
  func.func @transform_7(%arg0: i32) -> (i32, i32) {
    %c0_i32 = arith.constant 0 : i32
    %c0_i32_0 = arith.constant 0 : i32
    %c0_i32_1 = arith.constant 0 : i32
    return %c0_i32, %c0_i32_0 : i32, i32
  }
  func.func @transform_8(%arg0: i32) -> (i32, i32) {
    %c0_i32 = arith.constant 0 : i32
    %c0_i32_0 = arith.constant 0 : i32
    %c0_i32_1 = arith.constant 0 : i32
    return %c0_i32, %c0_i32_0 : i32, i32
  }
  func.func @transform_9(%arg0: i32) -> (i32, i32) {
    %c0_i32 = arith.constant 0 : i32
    %c0_i32_0 = arith.constant 0 : i32
    %c0_i32_1 = arith.constant 0 : i32
    return %c0_i32, %c0_i32_0 : i32, i32
  }
  func.func @transform_10(%arg0: i32) -> (i32, i32) {
    %c0_i32 = arith.constant 0 : i32
    %c0_i32_0 = arith.constant 0 : i32
    return %arg0, %c0_i32 : i32, i32
  }
}

</mosaic_0001>

<llo_original>
// kernel: tpu_custom_call.1
$region0: #{tpu_custom_call.1}
  #allocation0 [shape = 'u32[]', space=smem, size = 0x4, offset = 0x4, fixed_abs, tag = 'smem constant byte address 0x4 - core index']
  #allocation1 [shape = 'u32[144,128]{1,0:T(1,128)}', space=vmem, size = 0x12000, scoped, tag = 'internal scratch']
  %s0 = inlined_call_operand.hbm [shape: f32[32,128], index: 0, kind: input, shape index: {}]
  %s1 = inlined_call_operand.vmem [shape: f32[1,128], index: 1, kind: input, shape index: {}]
  %s2 = inlined_call_operand.hbm [shape: f32[1,128], index: 2, kind: input, shape index: {}]
  %s3 = inlined_call_operand.hbm [shape: f32[128,384], index: 3, kind: input, shape index: {}]
  %s4 = inlined_call_operand.hbm [shape: f32[60,128], index: 4, kind: input, shape index: {}]
  %s5 = inlined_call_operand.vmem [shape: f32[1,128], index: 5, kind: input, shape index: {}]
  %s6 = inlined_call_operand.hbm [shape: f32[128,256], index: 6, kind: input, shape index: {}]
  %s7 = inlined_call_operand.vmem [shape: f32[1,256], index: 7, kind: input, shape index: {}]
  %s8 = inlined_call_operand.hbm [shape: f32[256,128], index: 8, kind: input, shape index: {}]
  %s9 = inlined_call_operand.vmem [shape: f32[1,128], index: 9, kind: input, shape index: {}]
  %s10 = inlined_call_operand.hbm [shape: f32[32,128], index: 10, kind: output, shape index: {}]
  %s11 = sld [smem:[#allocation0]]
  $region74: #{tpu_custom_call.1} parent=0
    _
  %s13 = ssub.s32 1, %s11
  %s14 = scalar_select 0, %s13, %s11
  $region1: #{tpu_custom_call.1} parent=0
    #allocation2 [shape = 'u8[16384]{0}', space=vmem, size = 0x4000, scoped, tag = 'input window, operand 0, single buffered']
    #allocation3 [shape = 's32[1]{0}', space=sflag, size = 0x4, scoped, tag = 'scoped memory for tpu_custom_call.1']
    #allocation4 [shape = 's32[1]{0}', space=sflag, size = 0x4, scoped, tag = 'scoped memory for tpu_custom_call.1']
    #allocation5 [shape = 'u8[512]{0}', space=vmem, size = 0x400, scoped, tag = 'input window, operand 2, single buffered']
    #allocation6 [shape = 's32[1]{0}', space=sflag, size = 0x4, scoped, tag = 'scoped memory for tpu_custom_call.1']
    #allocation7 [shape = 'u8[196608]{0}', space=vmem, size = 0x30000, scoped, tag = 'input window, operand 3, single buffered']
    #allocation8 [shape = 'u8[32768]{0}', space=vmem, size = 0x8000, scoped, tag = 'input window, operand 4, single buffered']
    #allocation9 [shape = 's32[1]{0}', space=sflag, size = 0x4, scoped, tag = 'scoped memory for tpu_custom_call.1']
    #allocation10 [shape = 'u8[131072]{0}', space=vmem, size = 0x20000, scoped, tag = 'input window, operand 6, single buffered']
    #allocation11 [shape = 'u8[131072]{0}', space=vmem, size = 0x20000, scoped, tag = 'input window, operand 8, single buffered']
    #allocation12 [shape = 's32[1]{0}', space=sflag, size = 0x4, scoped, tag = 'scoped memory for tpu_custom_call.1']
    #allocation13 [shape = 'u8[16384]{0}', space=vmem, size = 0x4000, scoped, tag = 'output window, operand 0, single buffered']
    %15 = vsyncpa [#allocation3], 0
    %16 = vsyncpa [#allocation6], 0
    %17 = vsyncpa [#allocation9], 0
    %18 = vsyncpa [#allocation12], 0
    %19 = vsyncpa [#allocation4], 0
    // Predicated region
    $region2: #{tpu_custom_call.1} parent=1 // pred_check
      _
    $region3: #{tpu_custom_call.1} parent=1 // pred_check_branch
      %21 = sbr.rel (0) target = $region5
    $region4: #{tpu_custom_call.1} parent=1 // pred_region
      %s23 = ssub.s32 512, 512
      %24 = vsyncadd [#allocation3], %s23
      %s25 = sshll.u32 [#allocation2], 4
      %s26 = int_to_ptr.vmem [resolvable:$true] %s25
      %31 = dma.hbm_to_vmem [thread:$0]  %s0, 512, %s26, [#allocation3], 128, 128, 8
    $region5: #{tpu_custom_call.1} parent=1 // pred_fallthru
      _
    // Predicated region
    $region6: #{tpu_custom_call.1} parent=1 // pred_check
      _
    $region7: #{tpu_custom_call.1} parent=1 // pred_check_branch
      %33 = sbr.rel (0) target = $region9
    $region8: #{tpu_custom_call.1} parent=1 // pred_region
      _
    $region9: #{tpu_custom_call.1} parent=1 // pred_fallthru
      _
    // Predicated region
    $region10: #{tpu_custom_call.1} parent=1 // pred_check
      _
    $region11: #{tpu_custom_call.1} parent=1 // pred_check_branch
      %35 = sbr.rel (0) target = $region13
    $region12: #{tpu_custom_call.1} parent=1 // pred_region
      %s37 = ssub.s32 16, 16
      %38 = vsyncadd [#allocation6], %s37
      %s40 = sshll.u32 [#allocation5], 4
      %s41 = int_to_ptr.vmem [resolvable:$true] %s40
      %43 = dma.hbm_to_vmem [thread:$0]  %s2, 16, %s41, [#allocation6]
    $region13: #{tpu_custom_call.1} parent=1 // pred_fallthru
      _
    // Predicated region
    $region14: #{tpu_custom_call.1} parent=1 // pred_check
      _
    $region15: #{tpu_custom_call.1} parent=1 // pred_check_branch
      %45 = sbr.rel (0) target = $region17
    $region16: #{tpu_custom_call.1} parent=1 // pred_region
      %s47 = ssub.s32 6144, 6144
      %48 = vsyncadd [#allocation6], %s47
      %s49 = sshll.u32 [#allocation7], 4
      %s50 = int_to_ptr.vmem [resolvable:$true] %s49
      %55 = dma.hbm_to_vmem [thread:$0]  %s3, 6144, %s50, [#allocation6], 384, 384, 24
    $region17: #{tpu_custom_call.1} parent=1 // pred_fallthru
      _
    // Predicated region
    $region18: #{tpu_custom_call.1} parent=1 // pred_check
      _
    $region19: #{tpu_custom_call.1} parent=1 // pred_check_branch
      %57 = sbr.rel (0) target = $region21
    $region20: #{tpu_custom_call.1} parent=1 // pred_region
      %s59 = ssub.s32 1024, 1024
      %60 = vsyncadd [#allocation9], %s59
      %s61 = sshll.u32 [#allocation8], 4
      %s62 = int_to_ptr.vmem [resolvable:$true] %s61
      %67 = dma.hbm_to_vmem [thread:$0]  %s4, 1024, %s62, [#allocation9], 128, 128, 8
    $region21: #{tpu_custom_call.1} parent=1 // pred_fallthru
      _
    // Predicated region
    $region22: #{tpu_custom_call.1} parent=1 // pred_check
      _
    $region23: #{tpu_custom_call.1} parent=1 // pred_check_branch
      %69 = sbr.rel (0) target = $region25
    $region24: #{tpu_custom_call.1} parent=1 // pred_region
      _
    $region25: #{tpu_custom_call.1} parent=1 // pred_fallthru
      _
    // Predicated region
    $region26: #{tpu_custom_call.1} parent=1 // pred_check
      _
    $region27: #{tpu_custom_call.1} parent=1 // pred_check_branch
      %71 = sbr.rel (0) target = $region29
    $region28: #{tpu_custom_call.1} parent=1 // pred_region
      %s73 = ssub.s32 4096, 4096
      %74 = vsyncadd [#allocation9], %s73
      %s75 = sshll.u32 [#allocation10], 4
      %s76 = int_to_ptr.vmem [resolvable:$true] %s75
      %81 = dma.hbm_to_vmem [thread:$0]  %s6, 4096, %s76, [#allocation9], 256, 256, 16
    $region29: #{tpu_custom_call.1} parent=1 // pred_fallthru
      _
    // Predicated region
    $region30: #{tpu_custom_call.1} parent=1 // pred_check
      _
    $region31: #{tpu_custom_call.1} parent=1 // pred_check_branch
      %83 = sbr.rel (0) target = $region33
    $region32: #{tpu_custom_call.1} parent=1 // pred_region
      _
    $region33: #{tpu_custom_call.1} parent=1 // pred_fallthru
      _
    // Predicated region
    $region34: #{tpu_custom_call.1} parent=1 // pred_check
      _
    $region35: #{tpu_custom_call.1} parent=1 // pred_check_branch
      %85 = sbr.rel (0) target = $region37
    $region36: #{tpu_custom_call.1} parent=1 // pred_region
      %s87 = ssub.s32 4096, 4096
      %88 = vsyncadd [#allocation12], %s87
      %s89 = sshll.u32 [#allocation11], 4
      %s90 = int_to_ptr.vmem [resolvable:$true] %s89
      %95 = dma.hbm_to_vmem [thread:$0]  %s8, 4096, %s90, [#allocation12], 128, 128, 8
    $region37: #{tpu_custom_call.1} parent=1 // pred_fallthru
      _
    // Predicated region
    $region38: #{tpu_custom_call.1} parent=1 // pred_check
      _
    $region39: #{tpu_custom_call.1} parent=1 // pred_check_branch
      %97 = sbr.rel (0) target = $region41
    $region40: #{tpu_custom_call.1} parent=1 // pred_region
      _
    $region41: #{tpu_custom_call.1} parent=1 // pred_fallthru
      _
    // Predicated region
    $region42: #{tpu_custom_call.1} parent=1 // pred_check
      _
    $region43: #{tpu_custom_call.1} parent=1 // pred_check_branch
      %99 = sbr.rel (0) target = $region45
    $region44: #{tpu_custom_call.1} parent=1 // pred_region
      %100 = dma.done [#allocation3], 512
    $region45: #{tpu_custom_call.1} parent=1 // pred_fallthru
      _
    // Predicated region
    $region46: #{tpu_custom_call.1} parent=1 // pred_check
      _
    $region47: #{tpu_custom_call.1} parent=1 // pred_check_branch
      %102 = sbr.rel (0) target = $region49
    $region48: #{tpu_custom_call.1} parent=1 // pred_region
      %103 = dma.done [#allocation6], 16
    $region49: #{tpu_custom_call.1} parent=1 // pred_fallthru
      _
    // Predicated region
    $region50: #{tpu_custom_call.1} parent=1 // pred_check
      _
    $region51: #{tpu_custom_call.1} parent=1 // pred_check_branch
      %105 = sbr.rel (0) target = $region53
    $region52: #{tpu_custom_call.1} parent=1 // pred_region
      %106 = dma.done [#allocation6], 6144
    $region53: #{tpu_custom_call.1} parent=1 // pred_fallthru
      _
    // Predicated region
    $region54: #{tpu_custom_call.1} parent=1 // pred_check
      _
    $region55: #{tpu_custom_call.1} parent=1 // pred_check_branch
      %108 = sbr.rel (0) target = $region57
    $region56: #{tpu_custom_call.1} parent=1 // pred_region
      %109 = dma.done [#allocation9], 1024
    $region57: #{tpu_custom_call.1} parent=1 // pred_fallthru
      _
    // Predicated region
    $region58: #{tpu_custom_call.1} parent=1 // pred_check
      _
    $region59: #{tpu_custom_call.1} parent=1 // pred_check_branch
      %111 = sbr.rel (0) target = $region61
    $region60: #{tpu_custom_call.1} parent=1 // pred_region
      %112 = dma.done [#allocation9], 4096
    $region61: #{tpu_custom_call.1} parent=1 // pred_fallthru
      _
    // Predicated region
    $region62: #{tpu_custom_call.1} parent=1 // pred_check
      _
    $region63: #{tpu_custom_call.1} parent=1 // pred_check_branch
      %114 = sbr.rel (0) target = $region65
    $region64: #{tpu_custom_call.1} parent=1 // pred_region
      %115 = dma.done [#allocation12], 4096
    $region65: #{tpu_custom_call.1} parent=1 // pred_fallthru
      _
    %v116 = vld [vmem:[#allocation2] sm:$0xff]
    %v117 = vld [vmem:[#allocation2 + $0x8] sm:$0xff]
    %v118 = vld [vmem:[#allocation2 + $0x10] sm:$0xff]
    %v119 = vld [vmem:[#allocation2 + $0x18] sm:$0xff]
    %v120 = vlaneseq
    %v121 = vand.u32 %v120, 127
    %vm122 = vcmp.lt.s32.totalorder %v121, 60
    %123 = vadd.xlane.f32.xlu0 %v116
    %v124 = vpop.xlane.xlu0 %123
    %125 = vadd.xlane.f32.xlu0 %v117
    %v126 = vpop.xlane.xlu0 %125
    %127 = vadd.xlane.f32.xlu0 %v118
    %v128 = vpop.xlane.xlu0 %127
    %129 = vadd.xlane.f32.xlu0 %v119
    %v130 = vpop.xlane.xlu0 %129
    %v131 = vmul.f32 %v124, 0.016666668
    %v132 = vmul.f32 %v126, 0.016666668
    %v133 = vmul.f32 %v128, 0.016666668
    %v134 = vmul.f32 %v130, 0.016666668
    %v135 = vsub.f32 %v116, %v131
    %v136 = vsub.f32 %v117, %v132
    %v137 = vsub.f32 %v118, %v133
    %v138 = vsub.f32 %v119, %v134
    %v139 = vsel %vm122, %v135, 0.0
    %v140 = vsel %vm122, %v136, 0.0
    %v141 = vsel %vm122, %v137, 0.0
    %v142 = vsel %vm122, %v138, 0.0
    %v143 = vmul.f32 %v139, %v139
    %v144 = vmul.f32 %v140, %v140
    %v145 = vmul.f32 %v141, %v141
    %v146 = vmul.f32 %v142, %v142
    %147 = vadd.xlane.f32.xlu0 %v143
    %v148 = vpop.xlane.xlu0 %147
    %149 = vadd.xlane.f32.xlu0 %v144
    %v150 = vpop.xlane.xlu0 %149
    %151 = vadd.xlane.f32.xlu0 %v145
    %v152 = vpop.xlane.xlu0 %151
    %153 = vadd.xlane.f32.xlu0 %v146
    %v154 = vpop.xlane.xlu0 %153
    %v155 = vmul.f32 %v148, 0.016666668
    %v156 = vmul.f32 %v150, 0.016666668
    %v157 = vmul.f32 %v152, 0.016666668
    %v158 = vmul.f32 %v154, 0.016666668
    %v159 = vadd.f32 %v155, 1e-05
    %v160 = vadd.f32 %v156, 1e-05
    %v161 = vadd.f32 %v157, 1e-05
    %v162 = vadd.f32 %v158, 1e-05
    %v163 = vrsqrt.pop %v159
    %v164 = vrsqrt.pop %v160
    %v165 = vrsqrt.pop %v161
    %v166 = vrsqrt.pop %v162
    %v167 = vmul.f32 %v139, %v163
    %v168 = vmul.f32 %v140, %v164
    %v169 = vmul.f32 %v141, %v165
    %v170 = vmul.f32 %v142, %v166
    %v171 = vld [vmem:[%s1] sm:$0x1]
    %v173 = vlaneseq
    %v174 = vshrl.u32 %v173, 7
    %v175 = vsub.s32 0, %v174
    %v176 = vrot.slane %v171, %v175
    %v178 = vmul.f32 %v167, %v176
    %v179 = vmul.f32 %v168, %v176
    %v180 = vmul.f32 %v169, %v176
    %v181 = vmul.f32 %v170, %v176
    %v182 = vld [vmem:[#allocation5] sm:$0x1]
    %v184 = vlaneseq
    %v185 = vshrl.u32 %v184, 7
    %v186 = vsub.s32 0, %v185
    %v187 = vrot.slane %v182, %v186
    %v189 = vadd.f32 %v178, %v187
    %v190 = vadd.f32 %v179, %v187
    %v191 = vadd.f32 %v180, %v187
    %v192 = vadd.f32 %v181, %v187
    %v193 = vld [vmem:[#allocation7] sm:$0xff]
    %v194 = vld [vmem:[#allocation7 + $0x8] sm:$0xff]
    %v195 = vld [vmem:[#allocation7 + $0x10] sm:$0xff]
    %v196 = vld [vmem:[#allocation7 + $0x18] sm:$0xff]
    %v197 = vld [vmem:[#allocation7 + $0x20] sm:$0xff]
    %v198 = vld [vmem:[#allocation7 + $0x28] sm:$0xff]
    %v199 = vld [vmem:[#allocation7 + $0x30] sm:$0xff]
    %v200 = vld [vmem:[#allocation7 + $0x38] sm:$0xff]
    %v201 = vld [vmem:[#allocation7 + $0x40] sm:$0xff]
    %v202 = vld [vmem:[#allocation7 + $0x48] sm:$0xff]
    %v203 = vld [vmem:[#allocation7 + $0x50] sm:$0xff]
    %v204 = vld [vmem:[#allocation7 + $0x58] sm:$0xff]
    %v205 = vld [vmem:[#allocation7 + $0x60] sm:$0xff]
    %v206 = vld [vmem:[#allocation7 + $0x68] sm:$0xff]
    %v207 = vld [vmem:[#allocation7 + $0x70] sm:$0xff]
    %v208 = vld [vmem:[#allocation7 + $0x78] sm:$0xff]
    %v209 = vld [vmem:[#allocation7 + $0x80] sm:$0xff]
    %v210 = vld [vmem:[#allocation7 + $0x88] sm:$0xff]
    %v211 = vld [vmem:[#allocation7 + $0x90] sm:$0xff]
    %v212 = vld [vmem:[#allocation7 + $0x98] sm:$0xff]
    %v213 = vld [vmem:[#allocation7 + $0xa0] sm:$0xff]
    %v214 = vld [vmem:[#allocation7 + $0xa8] sm:$0xff]
    %v215 = vld [vmem:[#allocation7 + $0xb0] sm:$0xff]
    %v216 = vld [vmem:[#allocation7 + $0xb8] sm:$0xff]
    %v217 = vld [vmem:[#allocation7 + $0xc0] sm:$0xff]
    %v218 = vld [vmem:[#allocation7 + $0xc8] sm:$0xff]
    %v219 = vld [vmem:[#allocation7 + $0xd0] sm:$0xff]
    %v220 = vld [vmem:[#allocation7 + $0xd8] sm:$0xff]
    %v221 = vld [vmem:[#allocation7 + $0xe0] sm:$0xff]
    %v222 = vld [vmem:[#allocation7 + $0xe8] sm:$0xff]
    %v223 = vld [vmem:[#allocation7 + $0xf0] sm:$0xff]
    %v224 = vld [vmem:[#allocation7 + $0xf8] sm:$0xff]
    %v225 = vld [vmem:[#allocation7 + $0x100] sm:$0xff]
    %v226 = vld [vmem:[#allocation7 + $0x108] sm:$0xff]
    %v227 = vld [vmem:[#allocation7 + $0x110] sm:$0xff]
    %v228 = vld [vmem:[#allocation7 + $0x118] sm:$0xff]
    %v229 = vld [vmem:[#allocation7 + $0x120] sm:$0xff]
    %v230 = vld [vmem:[#allocation7 + $0x128] sm:$0xff]
    %v231 = vld [vmem:[#allocation7 + $0x130] sm:$0xff]
    %v232 = vld [vmem:[#allocation7 + $0x138] sm:$0xff]
    %v233 = vld [vmem:[#allocation7 + $0x140] sm:$0xff]
    %v234 = vld [vmem:[#allocation7 + $0x148] sm:$0xff]
    %v235 = vld [vmem:[#allocation7 + $0x150] sm:$0xff]
    %v236 = vld [vmem:[#allocation7 + $0x158] sm:$0xff]
    %v237 = vld [vmem:[#allocation7 + $0x160] sm:$0xff]
    %v238 = vld [vmem:[#allocation7 + $0x168] sm:$0xff]
    %v239 = vld [vmem:[#allocation7 + $0x170] sm:$0xff]
    %v240 = vld [vmem:[#allocation7 + $0x178] sm:$0xff]
    %241 = vmatprep.subr.mxu0 %v239
    %242 = vmatpush1.msra.mxu0 %v238
    %243 = vmatprep.subr.mxu0 %v236
    %244 = vmatpush1.msra.mxu0 %v235
    %245 = vmatprep.subr.mxu0 %v233
    %246 = vmatpush1.msra.mxu0 %v232
    %247 = vmatprep.subr.mxu0 %v230
    %248 = vmatpush1.msra.mxu0 %v229
    %249 = vmatprep.subr.mxu0 %v227
    %250 = vmatpush1.msra.mxu0 %v226
    %251 = vmatprep.subr.mxu0 %v224
    %252 = vmatpush1.msra.mxu0 %v223
    %253 = vmatprep.subr.mxu0 %v221
    %254 = vmatpush1.msra.mxu0 %v220
    %255 = vmatprep.subr.mxu0 %v218
    %256 = vmatpush1.msra.mxu0 %v217
    %257 = vmatprep.subr.mxu0 %v215
    %258 = vmatpush1.msra.mxu0 %v214
    %259 = vmatprep.subr.mxu0 %v212
    %260 = vmatpush1.msra.mxu0 %v211
    %261 = vmatprep.subr.mxu0 %v209
    %262 = vmatpush1.msra.mxu0 %v208
    %263 = vmatprep.subr.mxu0 %v206
    %264 = vmatpush1.msra.mxu0 %v205
    %265 = vmatprep.subr.mxu0 %v203
    %266 = vmatpush1.msra.mxu0 %v202
    %267 = vmatprep.subr.mxu0 %v200
    %268 = vmatpush1.msra.mxu0 %v199
    %269 = vmatprep.subr.mxu0 %v197
    %270 = vmatpush1.msra.mxu0 %v196
    %271 = vmatprep.subr.mxu0 %v194
    %272 = vmatpush1.msra.mxu0 %v193
    %273 = vmatprep.subr.mxu0 0.0
    %274 = vmatpush2.msra.mxu0 0.0
    %275 = vmatprep.subr.mxu0 0.0
    %276 = vmatpush2.msra.mxu0 0.0
    %277 = vmatprep.subr.mxu0 0.0
    %278 = vmatpush2.msra.mxu0 0.0
    %279 = vmatprep.subr.mxu0 0.0
    %280 = vmatpush2.msra.mxu0 0.0
    %281 = vmatprep.subr.mxu0 0.0
    %282 = vmatpush2.msra.mxu0 0.0
    %283 = vmatprep.subr.mxu0 0.0
    %284 = vmatpush2.msra.mxu0 0.0
    %285 = vmatprep.subr.mxu0 0.0
    %286 = vmatpush2.msra.mxu0 0.0
    %287 = vmatprep.subr.mxu0 0.0
    %288 = vmatpush2.msra.mxu0 0.0
    %289 = vmatprep.subr.mxu0 0.0
    %290 = vmatpush2.msra.mxu0 0.0
    %291 = vmatprep.subr.mxu0 0.0
    %292 = vmatpush2.msra.mxu0 0.0
    %293 = vmatprep.subr.mxu0 0.0
    %294 = vmatpush2.msra.mxu0 0.0
    %295 = vmatprep.subr.mxu0 0.0
    %296 = vmatpush2.msra.mxu0 0.0
    %297 = vmatprep.subr.mxu0 0.0
    %298 = vmatpush2.msra.mxu0 0.0
    %299 = vmatprep.subr.mxu0 0.0
    %300 = vmatpush2.msra.mxu0 0.0
    %301 = vmatprep.subr.mxu0 0.0
    %302 = vmatpush2.msra.mxu0 0.0
    %303 = vmatprep.subr.mxu0 0.0
    %304 = vmatpush2.msra.mxu0 0.0
    %305 = vmatprep.mubr.f32.mxu0 0.0
    %306 = vmatmul.mubr.f32.gmra.mxu0 %v189
    %v307 = vpop.f32.mrf.mxu0
    %v308 = vadd.f32 0.0, %v307
    %v309 = vpop.f32.mrf.mxu0
    %v310 = vadd.f32 0.0, %v309
    %311 = vmatprep.mubr.f32.mxu0 0.0
    %312 = vmatmul.mubr.f32.gmra.mxu0 %v190
    %v313 = vpop.f32.mrf.mxu0
    %v314 = vadd.f32 0.0, %v313
    %v315 = vpop.f32.mrf.mxu0
    %v316 = vadd.f32 0.0, %v315
    %317 = vmatprep.mubr.f32.mxu0 0.0
    %318 = vmatmul.mubr.f32.gmra.mxu0 %v191
    %v319 = vpop.f32.mrf.mxu0
    %v320 = vadd.f32 0.0, %v319
    %v321 = vpop.f32.mrf.mxu0
    %v322 = vadd.f32 0.0, %v321
    %323 = vmatprep.mubr.f32.mxu0 0.0
    %324 = vmatmul.mubr.f32.gmra.mxu0 %v192
    %v325 = vpop.f32.mrf.mxu0
    %v326 = vadd.f32 0.0, %v325
    %v327 = vpop.f32.mrf.mxu0
    %v328 = vadd.f32 0.0, %v327
    %329 = vdwg.mxu0
    %330 = vmatprep.subr.mxu0 0.0
    %331 = vmatpush1.msra.mxu0 %v240
    %332 = vmatprep.subr.mxu0 0.0
    %333 = vmatpush1.msra.mxu0 %v237
    %334 = vmatprep.subr.mxu0 0.0
    %335 = vmatpush1.msra.mxu0 %v234
    %336 = vmatprep.subr.mxu0 0.0
    %337 = vmatpush1.msra.mxu0 %v231
    %338 = vmatprep.subr.mxu0 0.0
    %339 = vmatpush1.msra.mxu0 %v228
    %340 = vmatprep.subr.mxu0 0.0
    %341 = vmatpush1.msra.mxu0 %v225
    %342 = vmatprep.subr.mxu0 0.0
    %343 = vmatpush1.msra.mxu0 %v222
    %344 = vmatprep.subr.mxu0 0.0
    %345 = vmatpush1.msra.mxu0 %v219
    %346 = vmatprep.subr.mxu0 0.0
    %347 = vmatpush1.msra.mxu0 %v216
    %348 = vmatprep.subr.mxu0 0.0
    %349 = vmatpush1.msra.mxu0 %v213
    %350 = vmatprep.subr.mxu0 0.0
    %351 = vmatpush1.msra.mxu0 %v210
    %352 = vmatprep.subr.mxu0 0.0
    %353 = vmatpush1.msra.mxu0 %v207
    %354 = vmatprep.subr.mxu0 0.0
    %355 = vmatpush1.msra.mxu0 %v204
    %356 = vmatprep.subr.mxu0 0.0
    %357 = vmatpush1.msra.mxu0 %v201
    %358 = vmatprep.subr.mxu0 0.0
    %359 = vmatpush1.msra.mxu0 %v198
    %360 = vmatprep.subr.mxu0 0.0
    %361 = vmatpush1.msra.mxu0 %v195
    %362 = vmatprep.subr.mxu0 0.0
    %363 = vmatpush2.msra.mxu0 0.0
    %364 = vmatprep.subr.mxu0 0.0
    %365 = vmatpush2.msra.mxu0 0.0
    %366 = vmatprep.subr.mxu0 0.0
    %367 = vmatpush2.msra.mxu0 0.0
    %368 = vmatprep.subr.mxu0 0.0
    %369 = vmatpush2.msra.mxu0 0.0
    %370 = vmatprep.subr.mxu0 0.0
    %371 = vmatpush2.msra.mxu0 0.0
    %372 = vmatprep.subr.mxu0 0.0
    %373 = vmatpush2.msra.mxu0 0.0
    %374 = vmatprep.subr.mxu0 0.0
    %375 = vmatpush2.msra.mxu0 0.0
    %376 = vmatprep.subr.mxu0 0.0
    %377 = vmatpush2.msra.mxu0 0.0
    %378 = vmatprep.subr.mxu0 0.0
    %379 = vmatpush2.msra.mxu0 0.0
    %380 = vmatprep.subr.mxu0 0.0
    %381 = vmatpush2.msra.mxu0 0.0
    %382 = vmatprep.subr.mxu0 0.0
    %383 = vmatpush2.msra.mxu0 0.0
    %384 = vmatprep.subr.mxu0 0.0
    %385 = vmatpush2.msra.mxu0 0.0
    %386 = vmatprep.subr.mxu0 0.0
    %387 = vmatpush2.msra.mxu0 0.0
    %388 = vmatprep.subr.mxu0 0.0
    %389 = vmatpush2.msra.mxu0 0.0
    %390 = vmatprep.subr.mxu0 0.0
    %391 = vmatpush2.msra.mxu0 0.0
    %392 = vmatprep.subr.mxu0 0.0
    %393 = vmatpush2.msra.mxu0 0.0
    %394 = vmatprep.mubr.f32.mxu0 0.0
    %395 = vmatmul.mubr.f32.gmra.mxu0 %v189
    %v396 = vpop.f32.mrf.mxu0
    %v397 = vadd.f32 0.0, %v396
    %v398 = vpop.f32.mrf.mxu0
    %399 = vmatprep.mubr.f32.mxu0 0.0
    %400 = vmatmul.mubr.f32.gmra.mxu0 %v190
    %v401 = vpop.f32.mrf.mxu0
    %v402 = vadd.f32 0.0, %v401
    %v403 = vpop.f32.mrf.mxu0
    %404 = vmatprep.mubr.f32.mxu0 0.0
    %405 = vmatmul.mubr.f32.gmra.mxu0 %v191
    %v406 = vpop.f32.mrf.mxu0
    %v407 = vadd.f32 0.0, %v406
    %v408 = vpop.f32.mrf.mxu0
    %409 = vmatprep.mubr.f32.mxu0 0.0
    %410 = vmatmul.mubr.f32.gmra.mxu0 %v192
    %v411 = vpop.f32.mrf.mxu0
    %v412 = vadd.f32 0.0, %v411
    %v413 = vpop.f32.mrf.mxu0
    %414 = vdwg.mxu0
    %v415 = vlaneseq
    %v416 = vshrl.u32 %v415, 7
    %v417 = vadd.s32 %v416, 8
    %vm418 = vcmp.le.s32.totalorder %v121, %v416
    %vm419 = vcmp.le.s32.totalorder %v121, %v417
    %vm420 = vcmask 80896
    %v422 = vsel %vm420, %v308, 0
    %v425 = vsel %vm420, %v314, 0
    %v428 = vsel %vm420, %v310, 0
    %v431 = vsel %vm420, %v316, 0
    %433 = vmatprep.subr.mxu0 0.0
    %434 = vmatpush1.xpose.msra.mxu0 0.0
    %435 = vmatprep.subr.mxu0 0.0
    %436 = vmatpush1.xpose.msra.mxu0 0.0
    %437 = vmatprep.subr.mxu0 0.0
    %438 = vmatpush1.xpose.msra.mxu0 0.0
    %439 = vmatprep.subr.mxu0 0.0
    %440 = vmatpush1.xpose.msra.mxu0 0.0
    %441 = vmatprep.subr.mxu0 0.0
    %442 = vmatpush1.xpose.msra.mxu0 0.0
    %443 = vmatprep.subr.mxu0 0.0
    %444 = vmatpush1.xpose.msra.mxu0 0.0
    %445 = vmatprep.subr.mxu0 0.0
    %446 = vmatpush1.xpose.msra.mxu0 0.0
    %447 = vmatprep.subr.mxu0 0.0
    %448 = vmatpush1.xpose.msra.mxu0 0.0
    %449 = vmatprep.subr.mxu0 0.0
    %450 = vmatpush1.xpose.msra.mxu0 0.0
    %451 = vmatprep.subr.mxu0 0.0
    %452 = vmatpush1.xpose.msra.mxu0 0.0
    %453 = vmatprep.subr.mxu0 0.0
    %454 = vmatpush1.xpose.msra.mxu0 0.0
    %455 = vmatprep.subr.mxu0 0.0
    %456 = vmatpush1.xpose.msra.mxu0 0.0
    %457 = vmatprep.subr.mxu0 0.0
    %458 = vmatpush1.xpose.msra.mxu0 0.0
    %459 = vmatprep.subr.mxu0 0.0
    %460 = vmatpush1.xpose.msra.mxu0 0.0
    %461 = vmatprep.subr.mxu0 0.0
    %462 = vmatpush1.xpose.msra.mxu0 %v431
    %463 = vmatprep.subr.mxu0 0.0
    %464 = vmatpush1.xpose.msra.mxu0 %v428
    %465 = vmatprep.subr.mxu0 0.0
    %466 = vmatpush2.xpose.msra.mxu0 0.0
    %467 = vmatprep.subr.mxu0 0.0
    %468 = vmatpush2.xpose.msra.mxu0 0.0
    %469 = vmatprep.subr.mxu0 0.0
    %470 = vmatpush2.xpose.msra.mxu0 0.0
    %471 = vmatprep.subr.mxu0 0.0
    %472 = vmatpush2.xpose.msra.mxu0 0.0
    %473 = vmatprep.subr.mxu0 0.0
    %474 = vmatpush2.xpose.msra.mxu0 0.0
    %475 = vmatprep.subr.mxu0 0.0
    %476 = vmatpush2.xpose.msra.mxu0 0.0
    %477 = vmatprep.subr.mxu0 0.0
    %478 = vmatpush2.xpose.msra.mxu0 0.0
    %479 = vmatprep.subr.mxu0 0.0
    %480 = vmatpush2.xpose.msra.mxu0 0.0
    %481 = vmatprep.subr.mxu0 0.0
    %482 = vmatpush2.xpose.msra.mxu0 0.0
    %483 = vmatprep.subr.mxu0 0.0
    %484 = vmatpush2.xpose.msra.mxu0 0.0
    %485 = vmatprep.subr.mxu0 0.0
    %486 = vmatpush2.xpose.msra.mxu0 0.0
    %487 = vmatprep.subr.mxu0 0.0
    %488 = vmatpush2.xpose.msra.mxu0 0.0
    %489 = vmatprep.subr.mxu0 0.0
    %490 = vmatpush2.xpose.msra.mxu0 0.0
    %491 = vmatprep.subr.mxu0 0.0
    %492 = vmatpush2.xpose.msra.mxu0 0.0
    %493 = vmatprep.subr.mxu0 0.0
    %494 = vmatpush2.xpose.msra.mxu0 0.0
    %495 = vmatprep.subr.mxu0 0.0
    %496 = vmatpush2.xpose.msra.mxu0 0.0
    %497 = vmatprep.mubr.f32.mxu0 0.0
    %498 = vmatmul.mubr.f32.gmra.mxu0 %v422
    %v499 = vpop.f32.mrf.mxu0
    %v500 = vadd.f32 0.0, %v499
    %v501 = vpop.f32.mrf.mxu0
    %502 = vmatprep.mubr.f32.mxu0 0.0
    %503 = vmatmul.mubr.f32.gmra.mxu0 %v425
    %v504 = vpop.f32.mrf.mxu0
    %v505 = vadd.f32 0.0, %v504
    %v506 = vpop.f32.mrf.mxu0
    %507 = vdwg.mxu0
    %v508 = vsel %vm418, %v500, -inf
    %v509 = vsel %vm419, %v505, -inf
    %vm510 = vcmask 130048
    %v511 = vsel %vm510, %v508, -inf
    %512 = vmax.xlane.f32.xlu0 %v511
    %v513 = vpop.xlane.xlu0 %512
    %v514 = vsel %vm510, %v509, -inf
    %515 = vmax.xlane.f32.xlu0 %v514
    %v516 = vpop.xlane.xlu0 %515
    %v517 = vsub.f32 %v508, %v513
    %v518 = vsub.f32 %v509, %v516
    %v519 = vmul.f32 %v517, 1.442695
    %v520 = vpow.pop %v519
    %v521 = vmul.f32 %v518, 1.442695
    %v522 = vpow.pop %v521
    %v523 = vsel %vm510, %v520, 0.0
    %524 = vadd.xlane.f32.xlu0 %v523
    %v525 = vpop.xlane.xlu0 %524
    %v526 = vsel %vm510, %v522, 0.0
    %527 = vadd.xlane.f32.xlu0 %v526
    %v528 = vpop.xlane.xlu0 %527
    %v529 = vrcp.pop %v525
    %v530 = vrcp.pop %v528
    %v531 = vmul.f32 %v520, %v529
    %v532 = vmul.f32 %v522, %v530
    %v534 = vsel %vm510, %v531, 0
    %v537 = vsel %vm510, %v532, 0
    %539 = vmatprep.subr.mxu0 0.0
    %540 = vmatpush1.msra.mxu0 0.0
    %541 = vmatprep.subr.mxu0 0.0
    %542 = vmatpush1.msra.mxu0 0.0
    %543 = vmatprep.subr.mxu0 0.0
    %544 = vmatpush1.msra.mxu0 0.0
    %545 = vmatprep.subr.mxu0 0.0
    %546 = vmatpush1.msra.mxu0 0.0
    %547 = vmatprep.subr.mxu0 0.0
    %548 = vmatpush1.msra.mxu0 0.0
    %549 = vmatprep.subr.mxu0 0.0
    %550 = vmatpush1.msra.mxu0 0.0
    %551 = vmatprep.subr.mxu0 0.0
    %552 = vmatpush1.msra.mxu0 0.0
    %553 = vmatprep.subr.mxu0 0.0
    %554 = vmatpush1.msra.mxu0 0.0
    %555 = vmatprep.subr.mxu0 0.0
    %556 = vmatpush1.msra.mxu0 0.0
    %557 = vmatprep.subr.mxu0 0.0
    %558 = vmatpush1.msra.mxu0 0.0
    %559 = vmatprep.subr.mxu0 0.0
    %560 = vmatpush1.msra.mxu0 0.0
    %561 = vmatprep.subr.mxu0 0.0
    %562 = vmatpush1.msra.mxu0 0.0
    %563 = vmatprep.subr.mxu0 0.0
    %564 = vmatpush1.msra.mxu0 0.0
    %565 = vmatprep.subr.mxu0 0.0
    %566 = vmatpush1.msra.mxu0 0.0
    %567 = vmatprep.subr.mxu0 0.0
    %568 = vmatpush1.msra.mxu0 %v402
    %569 = vmatprep.subr.mxu0 0.0
    %570 = vmatpush1.msra.mxu0 %v397
    %571 = vmatprep.subr.mxu0 0.0
    %572 = vmatpush2.msra.mxu0 0.0
    %573 = vmatprep.subr.mxu0 0.0
    %574 = vmatpush2.msra.mxu0 0.0
    %575 = vmatprep.subr.mxu0 0.0
    %576 = vmatpush2.msra.mxu0 0.0
    %577 = vmatprep.subr.mxu0 0.0
    %578 = vmatpush2.msra.mxu0 0.0
    %579 = vmatprep.subr.mxu0 0.0
    %580 = vmatpush2.msra.mxu0 0.0
    %581 = vmatprep.subr.mxu0 0.0
    %582 = vmatpush2.msra.mxu0 0.0
    %583 = vmatprep.subr.mxu0 0.0
    %584 = vmatpush2.msra.mxu0 0.0
    %585 = vmatprep.subr.mxu0 0.0
    %586 = vmatpush2.msra.mxu0 0.0
    %587 = vmatprep.subr.mxu0 0.0
    %588 = vmatpush2.msra.mxu0 0.0
    %589 = vmatprep.subr.mxu0 0.0
    %590 = vmatpush2.msra.mxu0 0.0
    %591 = vmatprep.subr.mxu0 0.0
    %592 = vmatpush2.msra.mxu0 0.0
    %593 = vmatprep.subr.mxu0 0.0
    %594 = vmatpush2.msra.mxu0 0.0
    %595 = vmatprep.subr.mxu0 0.0
    %596 = vmatpush2.msra.mxu0 0.0
    %597 = vmatprep.subr.mxu0 0.0
    %598 = vmatpush2.msra.mxu0 0.0
    %599 = vmatprep.subr.mxu0 0.0
    %600 = vmatpush2.msra.mxu0 0.0
    %601 = vmatprep.subr.mxu0 0.0
    %602 = vmatpush2.msra.mxu0 0.0
    %603 = vmatprep.mubr.f32.mxu0 0.0
    %604 = vmatmul.mubr.f32.gmra.mxu0 %v534
    %v605 = vpop.f32.mrf.mxu0
    %v606 = vadd.f32 0.0, %v605
    %v607 = vpop.f32.mrf.mxu0
    %608 = vmatprep.mubr.f32.mxu0 0.0
    %609 = vmatmul.mubr.f32.gmra.mxu0 %v537
    %v610 = vpop.f32.mrf.mxu0
    %v611 = vadd.f32 0.0, %v610
    %v612 = vpop.f32.mrf.mxu0
    %613 = vdwg.mxu0
    %614 = vrot.lane.b32.xlu0 %v308, 118
    %v615 = vpop.permute.xlu0 %614
    %616 = vrot.lane.b32.xlu0 %v314, 118
    %v617 = vpop.permute.xlu0 %616
    %618 = vrot.lane.b32.xlu0 %v310, 118
    %v619 = vpop.permute.xlu0 %618
    %620 = vrot.lane.b32.xlu0 %v316, 118
    %v621 = vpop.permute.xlu0 %620
    %v622 = vsel %vm420, %v615, 0
    %v624 = vsel %vm420, %v617, 0
    %v626 = vsel %vm420, %v619, 0
    %v628 = vsel %vm420, %v621, 0
    %630 = vmatprep.subr.mxu0 0.0
    %631 = vmatpush1.xpose.msra.mxu0 0.0
    %632 = vmatprep.subr.mxu0 0.0
    %633 = vmatpush1.xpose.msra.mxu0 0.0
    %634 = vmatprep.subr.mxu0 0.0
    %635 = vmatpush1.xpose.msra.mxu0 0.0
    %636 = vmatprep.subr.mxu0 0.0
    %637 = vmatpush1.xpose.msra.mxu0 0.0
    %638 = vmatprep.subr.mxu0 0.0
    %639 = vmatpush1.xpose.msra.mxu0 0.0
    %640 = vmatprep.subr.mxu0 0.0
    %641 = vmatpush1.xpose.msra.mxu0 0.0
    %642 = vmatprep.subr.mxu0 0.0
    %643 = vmatpush1.xpose.msra.mxu0 0.0
    %644 = vmatprep.subr.mxu0 0.0
    %645 = vmatpush1.xpose.msra.mxu0 0.0
    %646 = vmatprep.subr.mxu0 0.0
    %647 = vmatpush1.xpose.msra.mxu0 0.0
    %648 = vmatprep.subr.mxu0 0.0
    %649 = vmatpush1.xpose.msra.mxu0 0.0
    %650 = vmatprep.subr.mxu0 0.0
    %651 = vmatpush1.xpose.msra.mxu0 0.0
    %652 = vmatprep.subr.mxu0 0.0
    %653 = vmatpush1.xpose.msra.mxu0 0.0
    %654 = vmatprep.subr.mxu0 0.0
    %655 = vmatpush1.xpose.msra.mxu0 0.0
    %656 = vmatprep.subr.mxu0 0.0
    %657 = vmatpush1.xpose.msra.mxu0 0.0
    %658 = vmatprep.subr.mxu0 0.0
    %659 = vmatpush1.xpose.msra.mxu0 %v628
    %660 = vmatprep.subr.mxu0 0.0
    %661 = vmatpush1.xpose.msra.mxu0 %v626
    %662 = vmatprep.subr.mxu0 0.0
    %663 = vmatpush2.xpose.msra.mxu0 0.0
    %664 = vmatprep.subr.mxu0 0.0
    %665 = vmatpush2.xpose.msra.mxu0 0.0
    %666 = vmatprep.subr.mxu0 0.0
    %667 = vmatpush2.xpose.msra.mxu0 0.0
    %668 = vmatprep.subr.mxu0 0.0
    %669 = vmatpush2.xpose.msra.mxu0 0.0
    %670 = vmatprep.subr.mxu0 0.0
    %671 = vmatpush2.xpose.msra.mxu0 0.0
    %672 = vmatprep.subr.mxu0 0.0
    %673 = vmatpush2.xpose.msra.mxu0 0.0
    %674 = vmatprep.subr.mxu0 0.0
    %675 = vmatpush2.xpose.msra.mxu0 0.0
    %676 = vmatprep.subr.mxu0 0.0
    %677 = vmatpush2.xpose.msra.mxu0 0.0
    %678 = vmatprep.subr.mxu0 0.0
    %679 = vmatpush2.xpose.msra.mxu0 0.0
    %680 = vmatprep.subr.mxu0 0.0
    %681 = vmatpush2.xpose.msra.mxu0 0.0
    %682 = vmatprep.subr.mxu0 0.0
    %683 = vmatpush2.xpose.msra.mxu0 0.0
    %684 = vmatprep.subr.mxu0 0.0
    %685 = vmatpush2.xpose.msra.mxu0 0.0
    %686 = vmatprep.subr.mxu0 0.0
    %687 = vmatpush2.xpose.msra.mxu0 0.0
    %688 = vmatprep.subr.mxu0 0.0
    %689 = vmatpush2.xpose.msra.mxu0 0.0
    %690 = vmatprep.subr.mxu0 0.0
    %691 = vmatpush2.xpose.msra.mxu0 0.0
    %692 = vmatprep.subr.mxu0 0.0
    %693 = vmatpush2.xpose.msra.mxu0 0.0
    %694 = vmatprep.mubr.f32.mxu0 0.0
    %695 = vmatmul.mubr.f32.gmra.mxu0 %v622
    %v696 = vpop.f32.mrf.mxu0
    %v697 = vadd.f32 0.0, %v696
    %v698 = vpop.f32.mrf.mxu0
    %699 = vmatprep.mubr.f32.mxu0 0.0
    %700 = vmatmul.mubr.f32.gmra.mxu0 %v624
    %v701 = vpop.f32.mrf.mxu0
    %v702 = vadd.f32 0.0, %v701
    %v703 = vpop.f32.mrf.mxu0
    %704 = vdwg.mxu0
    %v705 = vsel %vm418, %v697, -inf
    %v706 = vsel %vm419, %v702, -inf
    %v707 = vsel %vm510, %v705, -inf
    %708 = vmax.xlane.f32.xlu0 %v707
    %v709 = vpop.xlane.xlu0 %708
    %v710 = vsel %vm510, %v706, -inf
    %711 = vmax.xlane.f32.xlu0 %v710
    %v712 = vpop.xlane.xlu0 %711
    %v713 = vsub.f32 %v705, %v709
    %v714 = vsub.f32 %v706, %v712
    %v715 = vmul.f32 %v713, 1.442695
    %v716 = vpow.pop %v715
    %v717 = vmul.f32 %v714, 1.442695
    %v718 = vpow.pop %v717
    %v719 = vsel %vm510, %v716, 0.0
    %720 = vadd.xlane.f32.xlu0 %v719
    %v721 = vpop.xlane.xlu0 %720
    %v722 = vsel %vm510, %v718, 0.0
    %723 = vadd.xlane.f32.xlu0 %v722
    %v724 = vpop.xlane.xlu0 %723
    %v725 = vrcp.pop %v721
    %v726 = vrcp.pop %v724
    %v727 = vmul.f32 %v716, %v725
    %v728 = vmul.f32 %v718, %v726
    %731 = vrot.lane.b32.xlu0 %v397, 118
    %v732 = vpop.permute.xlu0 %731
    %733 = vrot.lane.b32.xlu0 %v402, 118
    %v734 = vpop.permute.xlu0 %733
    %v738 = vsel %vm510, %v727, 0
    %v741 = vsel %vm510, %v728, 0
    %743 = vmatprep.subr.mxu0 0.0
    %744 = vmatpush1.msra.mxu0 0.0
    %745 = vmatprep.subr.mxu0 0.0
    %746 = vmatpush1.msra.mxu0 0.0
    %747 = vmatprep.subr.mxu0 0.0
    %748 = vmatpush1.msra.mxu0 0.0
    %749 = vmatprep.subr.mxu0 0.0
    %750 = vmatpush1.msra.mxu0 0.0
    %751 = vmatprep.subr.mxu0 0.0
    %752 = vmatpush1.msra.mxu0 0.0
    %753 = vmatprep.subr.mxu0 0.0
    %754 = vmatpush1.msra.mxu0 0.0
    %755 = vmatprep.subr.mxu0 0.0
    %756 = vmatpush1.msra.mxu0 0.0
    %757 = vmatprep.subr.mxu0 0.0
    %758 = vmatpush1.msra.mxu0 0.0
    %759 = vmatprep.subr.mxu0 0.0
    %760 = vmatpush1.msra.mxu0 0.0
    %761 = vmatprep.subr.mxu0 0.0
    %762 = vmatpush1.msra.mxu0 0.0
    %763 = vmatprep.subr.mxu0 0.0
    %764 = vmatpush1.msra.mxu0 0.0
    %765 = vmatprep.subr.mxu0 0.0
    %766 = vmatpush1.msra.mxu0 0.0
    %767 = vmatprep.subr.mxu0 0.0
    %768 = vmatpush1.msra.mxu0 0.0
    %769 = vmatprep.subr.mxu0 0.0
    %770 = vmatpush1.msra.mxu0 0.0
    %771 = vmatprep.subr.mxu0 0.0
    %772 = vmatpush1.msra.mxu0 %v734
    %773 = vmatprep.subr.mxu0 0.0
    %774 = vmatpush1.msra.mxu0 %v732
    %775 = vmatprep.subr.mxu0 0.0
    %776 = vmatpush2.msra.mxu0 0.0
    %777 = vmatprep.subr.mxu0 0.0
    %778 = vmatpush2.msra.mxu0 0.0
    %779 = vmatprep.subr.mxu0 0.0
    %780 = vmatpush2.msra.mxu0 0.0
    %781 = vmatprep.subr.mxu0 0.0
    %782 = vmatpush2.msra.mxu0 0.0
    %783 = vmatprep.subr.mxu0 0.0
    %784 = vmatpush2.msra.mxu0 0.0
    %785 = vmatprep.subr.mxu0 0.0
    %786 = vmatpush2.msra.mxu0 0.0
    %787 = vmatprep.subr.mxu0 0.0
    %788 = vmatpush2.msra.mxu0 0.0
    %789 = vmatprep.subr.mxu0 0.0
    %790 = vmatpush2.msra.mxu0 0.0
    %791 = vmatprep.subr.mxu0 0.0
    %792 = vmatpush2.msra.mxu0 0.0
    %793 = vmatprep.subr.mxu0 0.0
    %794 = vmatpush2.msra.mxu0 0.0
    %795 = vmatprep.subr.mxu0 0.0
    %796 = vmatpush2.msra.mxu0 0.0
    %797 = vmatprep.subr.mxu0 0.0
    %798 = vmatpush2.msra.mxu0 0.0
    %799 = vmatprep.subr.mxu0 0.0
    %800 = vmatpush2.msra.mxu0 0.0
    %801 = vmatprep.subr.mxu0 0.0
    %802 = vmatpush2.msra.mxu0 0.0
    %803 = vmatprep.subr.mxu0 0.0
    %804 = vmatpush2.msra.mxu0 0.0
    %805 = vmatprep.subr.mxu0 0.0
    %806 = vmatpush2.msra.mxu0 0.0
    %807 = vmatprep.mubr.f32.mxu0 0.0
    %808 = vmatmul.mubr.f32.gmra.mxu0 %v738
    %v809 = vpop.f32.mrf.mxu0
    %v810 = vadd.f32 0.0, %v809
    %v811 = vpop.f32.mrf.mxu0
    %812 = vmatprep.mubr.f32.mxu0 0.0
    %813 = vmatmul.mubr.f32.gmra.mxu0 %v741
    %v814 = vpop.f32.mrf.mxu0
    %v815 = vadd.f32 0.0, %v814
    %v816 = vpop.f32.mrf.mxu0
    %817 = vdwg.mxu0
    %818 = vrot.lane.b32.xlu0 %v308, 108
    %v819 = vpop.permute.xlu0 %818
    %820 = vrot.lane.b32.xlu0 %v314, 108
    %v821 = vpop.permute.xlu0 %820
    %822 = vrot.lane.b32.xlu0 %v310, 108
    %v823 = vpop.permute.xlu0 %822
    %824 = vrot.lane.b32.xlu0 %v316, 108
    %v825 = vpop.permute.xlu0 %824
    %v826 = vsel %vm420, %v819, 0
    %v828 = vsel %vm420, %v821, 0
    %v830 = vsel %vm420, %v823, 0
    %v832 = vsel %vm420, %v825, 0
    %834 = vmatprep.subr.mxu0 0.0
    %835 = vmatpush1.xpose.msra.mxu0 0.0
    %836 = vmatprep.subr.mxu0 0.0
    %837 = vmatpush1.xpose.msra.mxu0 0.0
    %838 = vmatprep.subr.mxu0 0.0
    %839 = vmatpush1.xpose.msra.mxu0 0.0
    %840 = vmatprep.subr.mxu0 0.0
    %841 = vmatpush1.xpose.msra.mxu0 0.0
    %842 = vmatprep.subr.mxu0 0.0
    %843 = vmatpush1.xpose.msra.mxu0 0.0
    %844 = vmatprep.subr.mxu0 0.0
    %845 = vmatpush1.xpose.msra.mxu0 0.0
    %846 = vmatprep.subr.mxu0 0.0
    %847 = vmatpush1.xpose.msra.mxu0 0.0
    %848 = vmatprep.subr.mxu0 0.0
    %849 = vmatpush1.xpose.msra.mxu0 0.0
    %850 = vmatprep.subr.mxu0 0.0
    %851 = vmatpush1.xpose.msra.mxu0 0.0
    %852 = vmatprep.subr.mxu0 0.0
    %853 = vmatpush1.xpose.msra.mxu0 0.0
    %854 = vmatprep.subr.mxu0 0.0
    %855 = vmatpush1.xpose.msra.mxu0 0.0
    %856 = vmatprep.subr.mxu0 0.0
    %857 = vmatpush1.xpose.msra.mxu0 0.0
    %858 = vmatprep.subr.mxu0 0.0
    %859 = vmatpush1.xpose.msra.mxu0 0.0
    %860 = vmatprep.subr.mxu0 0.0
    %861 = vmatpush1.xpose.msra.mxu0 0.0
    %862 = vmatprep.subr.mxu0 0.0
    %863 = vmatpush1.xpose.msra.mxu0 %v832
    %864 = vmatprep.subr.mxu0 0.0
    %865 = vmatpush1.xpose.msra.mxu0 %v830
    %866 = vmatprep.subr.mxu0 0.0
    %867 = vmatpush2.xpose.msra.mxu0 0.0
    %868 = vmatprep.subr.mxu0 0.0
    %869 = vmatpush2.xpose.msra.mxu0 0.0
    %870 = vmatprep.subr.mxu0 0.0
    %871 = vmatpush2.xpose.msra.mxu0 0.0
    %872 = vmatprep.subr.mxu0 0.0
    %873 = vmatpush2.xpose.msra.mxu0 0.0
    %874 = vmatprep.subr.mxu0 0.0
    %875 = vmatpush2.xpose.msra.mxu0 0.0
    %876 = vmatprep.subr.mxu0 0.0
    %877 = vmatpush2.xpose.msra.mxu0 0.0
    %878 = vmatprep.subr.mxu0 0.0
    %879 = vmatpush2.xpose.msra.mxu0 0.0
    %880 = vmatprep.subr.mxu0 0.0
    %881 = vmatpush2.xpose.msra.mxu0 0.0
    %882 = vmatprep.subr.mxu0 0.0
    %883 = vmatpush2.xpose.msra.mxu0 0.0
    %884 = vmatprep.subr.mxu0 0.0
    %885 = vmatpush2.xpose.msra.mxu0 0.0
    %886 = vmatprep.subr.mxu0 0.0
    %887 = vmatpush2.xpose.msra.mxu0 0.0
    %888 = vmatprep.subr.mxu0 0.0
    %889 = vmatpush2.xpose.msra.mxu0 0.0
    %890 = vmatprep.subr.mxu0 0.0
    %891 = vmatpush2.xpose.msra.mxu0 0.0
    %892 = vmatprep.subr.mxu0 0.0
    %893 = vmatpush2.xpose.msra.mxu0 0.0
    %894 = vmatprep.subr.mxu0 0.0
    %895 = vmatpush2.xpose.msra.mxu0 0.0
    %896 = vmatprep.subr.mxu0 0.0
    %897 = vmatpush2.xpose.msra.mxu0 0.0
    %898 = vmatprep.mubr.f32.mxu0 0.0
    %899 = vmatmul.mubr.f32.gmra.mxu0 %v826
    %v900 = vpop.f32.mrf.mxu0
    %v901 = vadd.f32 0.0, %v900
    %v902 = vpop.f32.mrf.mxu0
    %903 = vmatprep.mubr.f32.mxu0 0.0
    %904 = vmatmul.mubr.f32.gmra.mxu0 %v828
    %v905 = vpop.f32.mrf.mxu0
    %v906 = vadd.f32 0.0, %v905
    %v907 = vpop.f32.mrf.mxu0
    %908 = vdwg.mxu0
    %v909 = vsel %vm418, %v901, -inf
    %v910 = vsel %vm419, %v906, -inf
    %v911 = vsel %vm510, %v909, -inf
    %912 = vmax.xlane.f32.xlu0 %v911
    %v913 = vpop.xlane.xlu0 %912
    %v914 = vsel %vm510, %v910, -inf
    %915 = vmax.xlane.f32.xlu0 %v914
    %v916 = vpop.xlane.xlu0 %915
    %v917 = vsub.f32 %v909, %v913
    %v918 = vsub.f32 %v910, %v916
    %v919 = vmul.f32 %v917, 1.442695
    %v920 = vpow.pop %v919
    %v921 = vmul.f32 %v918, 1.442695
    %v922 = vpow.pop %v921
    %v923 = vsel %vm510, %v920, 0.0
    %924 = vadd.xlane.f32.xlu0 %v923
    %v925 = vpop.xlane.xlu0 %924
    %v926 = vsel %vm510, %v922, 0.0
    %927 = vadd.xlane.f32.xlu0 %v926
    %v928 = vpop.xlane.xlu0 %927
    %v929 = vrcp.pop %v925
    %v930 = vrcp.pop %v928
    %v931 = vmul.f32 %v920, %v929
    %v932 = vmul.f32 %v922, %v930
    %933 = vrot.lane.b32.xlu0 %v397, 108
    %v934 = vpop.permute.xlu0 %933
    %935 = vrot.lane.b32.xlu0 %v402, 108
    %v936 = vpop.permute.xlu0 %935
    %v940 = vsel %vm510, %v931, 0
    %v943 = vsel %vm510, %v932, 0
    %945 = vmatprep.subr.mxu0 0.0
    %946 = vmatpush1.msra.mxu0 0.0
    %947 = vmatprep.subr.mxu0 0.0
    %948 = vmatpush1.msra.mxu0 0.0
    %949 = vmatprep.subr.mxu0 0.0
    %950 = vmatpush1.msra.mxu0 0.0
    %951 = vmatprep.subr.mxu0 0.0
    %952 = vmatpush1.msra.mxu0 0.0
    %953 = vmatprep.subr.mxu0 0.0
    %954 = vmatpush1.msra.mxu0 0.0
    %955 = vmatprep.subr.mxu0 0.0
    %956 = vmatpush1.msra.mxu0 0.0
    %957 = vmatprep.subr.mxu0 0.0
    %958 = vmatpush1.msra.mxu0 0.0
    %959 = vmatprep.subr.mxu0 0.0
    %960 = vmatpush1.msra.mxu0 0.0
    %961 = vmatprep.subr.mxu0 0.0
    %962 = vmatpush1.msra.mxu0 0.0
    %963 = vmatprep.subr.mxu0 0.0
    %964 = vmatpush1.msra.mxu0 0.0
    %965 = vmatprep.subr.mxu0 0.0
    %966 = vmatpush1.msra.mxu0 0.0
    %967 = vmatprep.subr.mxu0 0.0
    %968 = vmatpush1.msra.mxu0 0.0
    %969 = vmatprep.subr.mxu0 0.0
    %970 = vmatpush1.msra.mxu0 0.0
    %971 = vmatprep.subr.mxu0 0.0
    %972 = vmatpush1.msra.mxu0 0.0
    %973 = vmatprep.subr.mxu0 0.0
    %974 = vmatpush1.msra.mxu0 %v936
    %975 = vmatprep.subr.mxu0 0.0
    %976 = vmatpush1.msra.mxu0 %v934
    %977 = vmatprep.subr.mxu0 0.0
    %978 = vmatpush2.msra.mxu0 0.0
    %979 = vmatprep.subr.mxu0 0.0
    %980 = vmatpush2.msra.mxu0 0.0
    %981 = vmatprep.subr.mxu0 0.0
    %982 = vmatpush2.msra.mxu0 0.0
    %983 = vmatprep.subr.mxu0 0.0
    %984 = vmatpush2.msra.mxu0 0.0
    %985 = vmatprep.subr.mxu0 0.0
    %986 = vmatpush2.msra.mxu0 0.0
    %987 = vmatprep.subr.mxu0 0.0
    %988 = vmatpush2.msra.mxu0 0.0
    %989 = vmatprep.subr.mxu0 0.0
    %990 = vmatpush2.msra.mxu0 0.0
    %991 = vmatprep.subr.mxu0 0.0
    %992 = vmatpush2.msra.mxu0 0.0
    %993 = vmatprep.subr.mxu0 0.0
    %994 = vmatpush2.msra.mxu0 0.0
    %995 = vmatprep.subr.mxu0 0.0
    %996 = vmatpush2.msra.mxu0 0.0
    %997 = vmatprep.subr.mxu0 0.0
    %998 = vmatpush2.msra.mxu0 0.0
    %999 = vmatprep.subr.mxu0 0.0
    %1000 = vmatpush2.msra.mxu0 0.0
    %1001 = vmatprep.subr.mxu0 0.0
    %1002 = vmatpush2.msra.mxu0 0.0
    %1003 = vmatprep.subr.mxu0 0.0
    %1004 = vmatpush2.msra.mxu0 0.0
    %1005 = vmatprep.subr.mxu0 0.0
    %1006 = vmatpush2.msra.mxu0 0.0
    %1007 = vmatprep.subr.mxu0 0.0
    %1008 = vmatpush2.msra.mxu0 0.0
    %1009 = vmatprep.mubr.f32.mxu0 0.0
    %1010 = vmatmul.mubr.f32.gmra.mxu0 %v940
    %v1011 = vpop.f32.mrf.mxu0
    %v1012 = vadd.f32 0.0, %v1011
    %v1013 = vpop.f32.mrf.mxu0
    %1014 = vmatprep.mubr.f32.mxu0 0.0
    %1015 = vmatmul.mubr.f32.gmra.mxu0 %v943
    %v1016 = vpop.f32.mrf.mxu0
    %v1017 = vadd.f32 0.0, %v1016
    %v1018 = vpop.f32.mrf.mxu0
    %1019 = vdwg.mxu0
    %1020 = vrot.lane.b32.xlu0 %v308, 98
    %v1021 = vpop.permute.xlu0 %1020
    %1022 = vrot.lane.b32.xlu0 %v314, 98
    %v1023 = vpop.permute.xlu0 %1022
    %1024 = vrot.lane.b32.xlu0 %v310, 98
    %v1025 = vpop.permute.xlu0 %1024
    %1026 = vrot.lane.b32.xlu0 %v316, 98
    %v1027 = vpop.permute.xlu0 %1026
    %v1028 = vsel %vm420, %v1021, 0
    %v1030 = vsel %vm420, %v1023, 0
    %v1032 = vsel %vm420, %v1025, 0
    %v1034 = vsel %vm420, %v1027, 0
    %1036 = vmatprep.subr.mxu0 0.0
    %1037 = vmatpush1.xpose.msra.mxu0 0.0
    %1038 = vmatprep.subr.mxu0 0.0
    %1039 = vmatpush1.xpose.msra.mxu0 0.0
    %1040 = vmatprep.subr.mxu0 0.0
    %1041 = vmatpush1.xpose.msra.mxu0 0.0
    %1042 = vmatprep.subr.mxu0 0.0
    %1043 = vmatpush1.xpose.msra.mxu0 0.0
    %1044 = vmatprep.subr.mxu0 0.0
    %1045 = vmatpush1.xpose.msra.mxu0 0.0
    %1046 = vmatprep.subr.mxu0 0.0
    %1047 = vmatpush1.xpose.msra.mxu0 0.0
    %1048 = vmatprep.subr.mxu0 0.0
    %1049 = vmatpush1.xpose.msra.mxu0 0.0
    %1050 = vmatprep.subr.mxu0 0.0
    %1051 = vmatpush1.xpose.msra.mxu0 0.0
    %1052 = vmatprep.subr.mxu0 0.0
    %1053 = vmatpush1.xpose.msra.mxu0 0.0
    %1054 = vmatprep.subr.mxu0 0.0
    %1055 = vmatpush1.xpose.msra.mxu0 0.0
    %1056 = vmatprep.subr.mxu0 0.0
    %1057 = vmatpush1.xpose.msra.mxu0 0.0
    %1058 = vmatprep.subr.mxu0 0.0
    %1059 = vmatpush1.xpose.msra.mxu0 0.0
    %1060 = vmatprep.subr.mxu0 0.0
    %1061 = vmatpush1.xpose.msra.mxu0 0.0
    %1062 = vmatprep.subr.mxu0 0.0
    %1063 = vmatpush1.xpose.msra.mxu0 0.0
    %1064 = vmatprep.subr.mxu0 0.0
    %1065 = vmatpush1.xpose.msra.mxu0 %v1034
    %1066 = vmatprep.subr.mxu0 0.0
    %1067 = vmatpush1.xpose.msra.mxu0 %v1032
    %1068 = vmatprep.subr.mxu0 0.0
    %1069 = vmatpush2.xpose.msra.mxu0 0.0
    %1070 = vmatprep.subr.mxu0 0.0
    %1071 = vmatpush2.xpose.msra.mxu0 0.0
    %1072 = vmatprep.subr.mxu0 0.0
    %1073 = vmatpush2.xpose.msra.mxu0 0.0
    %1074 = vmatprep.subr.mxu0 0.0
    %1075 = vmatpush2.xpose.msra.mxu0 0.0
    %1076 = vmatprep.subr.mxu0 0.0
    %1077 = vmatpush2.xpose.msra.mxu0 0.0
    %1078 = vmatprep.subr.mxu0 0.0
    %1079 = vmatpush2.xpose.msra.mxu0 0.0
    %1080 = vmatprep.subr.mxu0 0.0
    %1081 = vmatpush2.xpose.msra.mxu0 0.0
    %1082 = vmatprep.subr.mxu0 0.0
    %1083 = vmatpush2.xpose.msra.mxu0 0.0
    %1084 = vmatprep.subr.mxu0 0.0
    %1085 = vmatpush2.xpose.msra.mxu0 0.0
    %1086 = vmatprep.subr.mxu0 0.0
    %1087 = vmatpush2.xpose.msra.mxu0 0.0
    %1088 = vmatprep.subr.mxu0 0.0
    %1089 = vmatpush2.xpose.msra.mxu0 0.0
    %1090 = vmatprep.subr.mxu0 0.0
    %1091 = vmatpush2.xpose.msra.mxu0 0.0
    %1092 = vmatprep.subr.mxu0 0.0
    %1093 = vmatpush2.xpose.msra.mxu0 0.0
    %1094 = vmatprep.subr.mxu0 0.0
    %1095 = vmatpush2.xpose.msra.mxu0 0.0
    %1096 = vmatprep.subr.mxu0 0.0
    %1097 = vmatpush2.xpose.msra.mxu0 0.0
    %1098 = vmatprep.subr.mxu0 0.0
    %1099 = vmatpush2.xpose.msra.mxu0 0.0
    %1100 = vmatprep.mubr.f32.mxu0 0.0
    %1101 = vmatmul.mubr.f32.gmra.mxu0 %v1028
    %v1102 = vpop.f32.mrf.mxu0
    %v1103 = vadd.f32 0.0, %v1102
    %v1104 = vpop.f32.mrf.mxu0
    %1105 = vmatprep.mubr.f32.mxu0 0.0
    %1106 = vmatmul.mubr.f32.gmra.mxu0 %v1030
    %v1107 = vpop.f32.mrf.mxu0
    %v1108 = vadd.f32 0.0, %v1107
    %v1109 = vpop.f32.mrf.mxu0
    %1110 = vdwg.mxu0
    %v1111 = vsel %vm418, %v1103, -inf
    %v1112 = vsel %vm419, %v1108, -inf
    %v1113 = vsel %vm510, %v1111, -inf
    %1114 = vmax.xlane.f32.xlu0 %v1113
    %v1115 = vpop.xlane.xlu0 %1114
    %v1116 = vsel %vm510, %v1112, -inf
    %1117 = vmax.xlane.f32.xlu0 %v1116
    %v1118 = vpop.xlane.xlu0 %1117
    %v1119 = vsub.f32 %v1111, %v1115
    %v1120 = vsub.f32 %v1112, %v1118
    %v1121 = vmul.f32 %v1119, 1.442695
    %v1122 = vpow.pop %v1121
    %v1123 = vmul.f32 %v1120, 1.442695
    %v1124 = vpow.pop %v1123
    %v1125 = vsel %vm510, %v1122, 0.0
    %1126 = vadd.xlane.f32.xlu0 %v1125
    %v1127 = vpop.xlane.xlu0 %1126
    %v1128 = vsel %vm510, %v1124, 0.0
    %1129 = vadd.xlane.f32.xlu0 %v1128
    %v1130 = vpop.xlane.xlu0 %1129
    %v1131 = vrcp.pop %v1127
    %v1132 = vrcp.pop %v1130
    %v1133 = vmul.f32 %v1122, %v1131
    %v1134 = vmul.f32 %v1124, %v1132
    %1135 = vrot.lane.b32.xlu0 %v397, 98
    %v1136 = vpop.permute.xlu0 %1135
    %1137 = vrot.lane.b32.xlu0 %v402, 98
    %v1138 = vpop.permute.xlu0 %1137
    %v1142 = vsel %vm510, %v1133, 0
    %v1145 = vsel %vm510, %v1134, 0
    %1147 = vmatprep.subr.mxu0 0.0
    %1148 = vmatpush1.msra.mxu0 0.0
    %1149 = vmatprep.subr.mxu0 0.0
    %1150 = vmatpush1.msra.mxu0 0.0
    %1151 = vmatprep.subr.mxu0 0.0
    %1152 = vmatpush1.msra.mxu0 0.0
    %1153 = vmatprep.subr.mxu0 0.0
    %1154 = vmatpush1.msra.mxu0 0.0
    %1155 = vmatprep.subr.mxu0 0.0
    %1156 = vmatpush1.msra.mxu0 0.0
    %1157 = vmatprep.subr.mxu0 0.0
    %1158 = vmatpush1.msra.mxu0 0.0
    %1159 = vmatprep.subr.mxu0 0.0
    %1160 = vmatpush1.msra.mxu0 0.0
    %1161 = vmatprep.subr.mxu0 0.0
    %1162 = vmatpush1.msra.mxu0 0.0
    %1163 = vmatprep.subr.mxu0 0.0
    %1164 = vmatpush1.msra.mxu0 0.0
    %1165 = vmatprep.subr.mxu0 0.0
    %1166 = vmatpush1.msra.mxu0 0.0
    %1167 = vmatprep.subr.mxu0 0.0
    %1168 = vmatpush1.msra.mxu0 0.0
    %1169 = vmatprep.subr.mxu0 0.0
    %1170 = vmatpush1.msra.mxu0 0.0
    %1171 = vmatprep.subr.mxu0 0.0
    %1172 = vmatpush1.msra.mxu0 0.0
    %1173 = vmatprep.subr.mxu0 0.0
    %1174 = vmatpush1.msra.mxu0 0.0
    %1175 = vmatprep.subr.mxu0 0.0
    %1176 = vmatpush1.msra.mxu0 %v1138
    %1177 = vmatprep.subr.mxu0 0.0
    %1178 = vmatpush1.msra.mxu0 %v1136
    %1179 = vmatprep.subr.mxu0 0.0
    %1180 = vmatpush2.msra.mxu0 0.0
    %1181 = vmatprep.subr.mxu0 0.0
    %1182 = vmatpush2.msra.mxu0 0.0
    %1183 = vmatprep.subr.mxu0 0.0
    %1184 = vmatpush2.msra.mxu0 0.0
    %1185 = vmatprep.subr.mxu0 0.0
    %1186 = vmatpush2.msra.mxu0 0.0
    %1187 = vmatprep.subr.mxu0 0.0
    %1188 = vmatpush2.msra.mxu0 0.0
    %1189 = vmatprep.subr.mxu0 0.0
    %1190 = vmatpush2.msra.mxu0 0.0
    %1191 = vmatprep.subr.mxu0 0.0
    %1192 = vmatpush2.msra.mxu0 0.0
    %1193 = vmatprep.subr.mxu0 0.0
    %1194 = vmatpush2.msra.mxu0 0.0
    %1195 = vmatprep.subr.mxu0 0.0
    %1196 = vmatpush2.msra.mxu0 0.0
    %1197 = vmatprep.subr.mxu0 0.0
    %1198 = vmatpush2.msra.mxu0 0.0
    %1199 = vmatprep.subr.mxu0 0.0
    %1200 = vmatpush2.msra.mxu0 0.0
    %1201 = vmatprep.subr.mxu0 0.0
    %1202 = vmatpush2.msra.mxu0 0.0
    %1203 = vmatprep.subr.mxu0 0.0
    %1204 = vmatpush2.msra.mxu0 0.0
    %1205 = vmatprep.subr.mxu0 0.0
    %1206 = vmatpush2.msra.mxu0 0.0
    %1207 = vmatprep.subr.mxu0 0.0
    %1208 = vmatpush2.msra.mxu0 0.0
    %1209 = vmatprep.subr.mxu0 0.0
    %1210 = vmatpush2.msra.mxu0 0.0
    %1211 = vmatprep.mubr.f32.mxu0 0.0
    %1212 = vmatmul.mubr.f32.gmra.mxu0 %v1142
    %v1213 = vpop.f32.mrf.mxu0
    %v1214 = vadd.f32 0.0, %v1213
    %v1215 = vpop.f32.mrf.mxu0
    %1216 = vmatprep.mubr.f32.mxu0 0.0
    %1217 = vmatmul.mubr.f32.gmra.mxu0 %v1145
    %v1218 = vpop.f32.mrf.mxu0
    %v1219 = vadd.f32 0.0, %v1218
    %v1220 = vpop.f32.mrf.mxu0
    %1221 = vdwg.mxu0
    %1222 = vrot.lane.b32.xlu0 %v308, 88
    %v1223 = vpop.permute.xlu0 %1222
    %1224 = vrot.lane.b32.xlu0 %v314, 88
    %v1225 = vpop.permute.xlu0 %1224
    %1226 = vrot.lane.b32.xlu0 %v310, 88
    %v1227 = vpop.permute.xlu0 %1226
    %1228 = vrot.lane.b32.xlu0 %v316, 88
    %v1229 = vpop.permute.xlu0 %1228
    %v1230 = vsel %vm420, %v1223, 0
    %v1232 = vsel %vm420, %v1225, 0
    %v1234 = vsel %vm420, %v1227, 0
    %v1236 = vsel %vm420, %v1229, 0
    %1238 = vmatprep.subr.mxu0 0.0
    %1239 = vmatpush1.xpose.msra.mxu0 0.0
    %1240 = vmatprep.subr.mxu0 0.0
    %1241 = vmatpush1.xpose.msra.mxu0 0.0
    %1242 = vmatprep.subr.mxu0 0.0
    %1243 = vmatpush1.xpose.msra.mxu0 0.0
    %1244 = vmatprep.subr.mxu0 0.0
    %1245 = vmatpush1.xpose.msra.mxu0 0.0
    %1246 = vmatprep.subr.mxu0 0.0
    %1247 = vmatpush1.xpose.msra.mxu0 0.0
    %1248 = vmatprep.subr.mxu0 0.0
    %1249 = vmatpush1.xpose.msra.mxu0 0.0
    %1250 = vmatprep.subr.mxu0 0.0
    %1251 = vmatpush1.xpose.msra.mxu0 0.0
    %1252 = vmatprep.subr.mxu0 0.0
    %1253 = vmatpush1.xpose.msra.mxu0 0.0
    %1254 = vmatprep.subr.mxu0 0.0
    %1255 = vmatpush1.xpose.msra.mxu0 0.0
    %1256 = vmatprep.subr.mxu0 0.0
    %1257 = vmatpush1.xpose.msra.mxu0 0.0
    %1258 = vmatprep.subr.mxu0 0.0
    %1259 = vmatpush1.xpose.msra.mxu0 0.0
    %1260 = vmatprep.subr.mxu0 0.0
    %1261 = vmatpush1.xpose.msra.mxu0 0.0
    %1262 = vmatprep.subr.mxu0 0.0
    %1263 = vmatpush1.xpose.msra.mxu0 0.0
    %1264 = vmatprep.subr.mxu0 0.0
    %1265 = vmatpush1.xpose.msra.mxu0 0.0
    %1266 = vmatprep.subr.mxu0 0.0
    %1267 = vmatpush1.xpose.msra.mxu0 %v1236
    %1268 = vmatprep.subr.mxu0 0.0
    %1269 = vmatpush1.xpose.msra.mxu0 %v1234
    %1270 = vmatprep.subr.mxu0 0.0
    %1271 = vmatpush2.xpose.msra.mxu0 0.0
    %1272 = vmatprep.subr.mxu0 0.0
    %1273 = vmatpush2.xpose.msra.mxu0 0.0
    %1274 = vmatprep.subr.mxu0 0.0
    %1275 = vmatpush2.xpose.msra.mxu0 0.0
    %1276 = vmatprep.subr.mxu0 0.0
    %1277 = vmatpush2.xpose.msra.mxu0 0.0
    %1278 = vmatprep.subr.mxu0 0.0
    %1279 = vmatpush2.xpose.msra.mxu0 0.0
    %1280 = vmatprep.subr.mxu0 0.0
    %1281 = vmatpush2.xpose.msra.mxu0 0.0
    %1282 = vmatprep.subr.mxu0 0.0
    %1283 = vmatpush2.xpose.msra.mxu0 0.0
    %1284 = vmatprep.subr.mxu0 0.0
    %1285 = vmatpush2.xpose.msra.mxu0 0.0
    %1286 = vmatprep.subr.mxu0 0.0
    %1287 = vmatpush2.xpose.msra.mxu0 0.0
    %1288 = vmatprep.subr.mxu0 0.0
    %1289 = vmatpush2.xpose.msra.mxu0 0.0
    %1290 = vmatprep.subr.mxu0 0.0
    %1291 = vmatpush2.xpose.msra.mxu0 0.0
    %1292 = vmatprep.subr.mxu0 0.0
    %1293 = vmatpush2.xpose.msra.mxu0 0.0
    %1294 = vmatprep.subr.mxu0 0.0
    %1295 = vmatpush2.xpose.msra.mxu0 0.0
    %1296 = vmatprep.subr.mxu0 0.0
    %1297 = vmatpush2.xpose.msra.mxu0 0.0
    %1298 = vmatprep.subr.mxu0 0.0
    %1299 = vmatpush2.xpose.msra.mxu0 0.0
    %1300 = vmatprep.subr.mxu0 0.0
    %1301 = vmatpush2.xpose.msra.mxu0 0.0
    %1302 = vmatprep.mubr.f32.mxu0 0.0
    %1303 = vmatmul.mubr.f32.gmra.mxu0 %v1230
    %v1304 = vpop.f32.mrf.mxu0
    %v1305 = vadd.f32 0.0, %v1304
    %v1306 = vpop.f32.mrf.mxu0
    %1307 = vmatprep.mubr.f32.mxu0 0.0
    %1308 = vmatmul.mubr.f32.gmra.mxu0 %v1232
    %v1309 = vpop.f32.mrf.mxu0
    %v1310 = vadd.f32 0.0, %v1309
    %v1311 = vpop.f32.mrf.mxu0
    %1312 = vdwg.mxu0
    %v1313 = vsel %vm418, %v1305, -inf
    %v1314 = vsel %vm419, %v1310, -inf
    %v1315 = vsel %vm510, %v1313, -inf
    %1316 = vmax.xlane.f32.xlu0 %v1315
    %v1317 = vpop.xlane.xlu0 %1316
    %v1318 = vsel %vm510, %v1314, -inf
    %1319 = vmax.xlane.f32.xlu0 %v1318
    %v1320 = vpop.xlane.xlu0 %1319
    %v1321 = vsub.f32 %v1313, %v1317
    %v1322 = vsub.f32 %v1314, %v1320
    %v1323 = vmul.f32 %v1321, 1.442695
    %v1324 = vpow.pop %v1323
    %v1325 = vmul.f32 %v1322, 1.442695
    %v1326 = vpow.pop %v1325
    %v1327 = vsel %vm510, %v1324, 0.0
    %1328 = vadd.xlane.f32.xlu0 %v1327
    %v1329 = vpop.xlane.xlu0 %1328
    %v1330 = vsel %vm510, %v1326, 0.0
    %1331 = vadd.xlane.f32.xlu0 %v1330
    %v1332 = vpop.xlane.xlu0 %1331
    %v1333 = vrcp.pop %v1329
    %v1334 = vrcp.pop %v1332
    %v1335 = vmul.f32 %v1324, %v1333
    %v1336 = vmul.f32 %v1326, %v1334
    %1337 = vrot.lane.b32.xlu0 %v397, 88
    %v1338 = vpop.permute.xlu0 %1337
    %1339 = vrot.lane.b32.xlu0 %v402, 88
    %v1340 = vpop.permute.xlu0 %1339
    %v1344 = vsel %vm510, %v1335, 0
    %v1347 = vsel %vm510, %v1336, 0
    %1349 = vmatprep.subr.mxu0 0.0
    %1350 = vmatpush1.msra.mxu0 0.0
    %1351 = vmatprep.subr.mxu0 0.0
    %1352 = vmatpush1.msra.mxu0 0.0
    %1353 = vmatprep.subr.mxu0 0.0
    %1354 = vmatpush1.msra.mxu0 0.0
    %1355 = vmatprep.subr.mxu0 0.0
    %1356 = vmatpush1.msra.mxu0 0.0
    %1357 = vmatprep.subr.mxu0 0.0
    %1358 = vmatpush1.msra.mxu0 0.0
    %1359 = vmatprep.subr.mxu0 0.0
    %1360 = vmatpush1.msra.mxu0 0.0
    %1361 = vmatprep.subr.mxu0 0.0
    %1362 = vmatpush1.msra.mxu0 0.0
    %1363 = vmatprep.subr.mxu0 0.0
    %1364 = vmatpush1.msra.mxu0 0.0
    %1365 = vmatprep.subr.mxu0 0.0
    %1366 = vmatpush1.msra.mxu0 0.0
    %1367 = vmatprep.subr.mxu0 0.0
    %1368 = vmatpush1.msra.mxu0 0.0
    %1369 = vmatprep.subr.mxu0 0.0
    %1370 = vmatpush1.msra.mxu0 0.0
    %1371 = vmatprep.subr.mxu0 0.0
    %1372 = vmatpush1.msra.mxu0 0.0
    %1373 = vmatprep.subr.mxu0 0.0
    %1374 = vmatpush1.msra.mxu0 0.0
    %1375 = vmatprep.subr.mxu0 0.0
    %1376 = vmatpush1.msra.mxu0 0.0
    %1377 = vmatprep.subr.mxu0 0.0
    %1378 = vmatpush1.msra.mxu0 %v1340
    %1379 = vmatprep.subr.mxu0 0.0
    %1380 = vmatpush1.msra.mxu0 %v1338
    %1381 = vmatprep.subr.mxu0 0.0
    %1382 = vmatpush2.msra.mxu0 0.0
    %1383 = vmatprep.subr.mxu0 0.0
    %1384 = vmatpush2.msra.mxu0 0.0
    %1385 = vmatprep.subr.mxu0 0.0
    %1386 = vmatpush2.msra.mxu0 0.0
    %1387 = vmatprep.subr.mxu0 0.0
    %1388 = vmatpush2.msra.mxu0 0.0
    %1389 = vmatprep.subr.mxu0 0.0
    %1390 = vmatpush2.msra.mxu0 0.0
    %1391 = vmatprep.subr.mxu0 0.0
    %1392 = vmatpush2.msra.mxu0 0.0
    %1393 = vmatprep.subr.mxu0 0.0
    %1394 = vmatpush2.msra.mxu0 0.0
    %1395 = vmatprep.subr.mxu0 0.0
    %1396 = vmatpush2.msra.mxu0 0.0
    %1397 = vmatprep.subr.mxu0 0.0
    %1398 = vmatpush2.msra.mxu0 0.0
    %1399 = vmatprep.subr.mxu0 0.0
    %1400 = vmatpush2.msra.mxu0 0.0
    %1401 = vmatprep.subr.mxu0 0.0
    %1402 = vmatpush2.msra.mxu0 0.0
    %1403 = vmatprep.subr.mxu0 0.0
    %1404 = vmatpush2.msra.mxu0 0.0
    %1405 = vmatprep.subr.mxu0 0.0
    %1406 = vmatpush2.msra.mxu0 0.0
    %1407 = vmatprep.subr.mxu0 0.0
    %1408 = vmatpush2.msra.mxu0 0.0
    %1409 = vmatprep.subr.mxu0 0.0
    %1410 = vmatpush2.msra.mxu0 0.0
    %1411 = vmatprep.subr.mxu0 0.0
    %1412 = vmatpush2.msra.mxu0 0.0
    %1413 = vmatprep.mubr.f32.mxu0 0.0
    %1414 = vmatmul.mubr.f32.gmra.mxu0 %v1344
    %v1415 = vpop.f32.mrf.mxu0
    %v1416 = vadd.f32 0.0, %v1415
    %v1417 = vpop.f32.mrf.mxu0
    %1418 = vmatprep.mubr.f32.mxu0 0.0
    %1419 = vmatmul.mubr.f32.gmra.mxu0 %v1347
    %v1420 = vpop.f32.mrf.mxu0
    %v1421 = vadd.f32 0.0, %v1420
    %v1422 = vpop.f32.mrf.mxu0
    %1423 = vdwg.mxu0
    %1424 = vrot.lane.b32.xlu0 %v308, 78
    %v1425 = vpop.permute.xlu0 %1424
    %1426 = vrot.lane.b32.xlu0 %v314, 78
    %v1427 = vpop.permute.xlu0 %1426
    %1428 = vrot.lane.b32.xlu0 %v310, 78
    %v1429 = vpop.permute.xlu0 %1428
    %1430 = vrot.lane.b32.xlu0 %v316, 78
    %v1431 = vpop.permute.xlu0 %1430
    %v1432 = vsel %vm420, %v1425, 0
    %v1434 = vsel %vm420, %v1427, 0
    %v1436 = vsel %vm420, %v1429, 0
    %v1438 = vsel %vm420, %v1431, 0
    %1440 = vmatprep.subr.mxu0 0.0
    %1441 = vmatpush1.xpose.msra.mxu0 0.0
    %1442 = vmatprep.subr.mxu0 0.0
    %1443 = vmatpush1.xpose.msra.mxu0 0.0
    %1444 = vmatprep.subr.mxu0 0.0
    %1445 = vmatpush1.xpose.msra.mxu0 0.0
    %1446 = vmatprep.subr.mxu0 0.0
    %1447 = vmatpush1.xpose.msra.mxu0 0.0
    %1448 = vmatprep.subr.mxu0 0.0
    %1449 = vmatpush1.xpose.msra.mxu0 0.0
    %1450 = vmatprep.subr.mxu0 0.0
    %1451 = vmatpush1.xpose.msra.mxu0 0.0
    %1452 = vmatprep.subr.mxu0 0.0
    %1453 = vmatpush1.xpose.msra.mxu0 0.0
    %1454 = vmatprep.subr.mxu0 0.0
    %1455 = vmatpush1.xpose.msra.mxu0 0.0
    %1456 = vmatprep.subr.mxu0 0.0
    %1457 = vmatpush1.xpose.msra.mxu0 0.0
    %1458 = vmatprep.subr.mxu0 0.0
    %1459 = vmatpush1.xpose.msra.mxu0 0.0
    %1460 = vmatprep.subr.mxu0 0.0
    %1461 = vmatpush1.xpose.msra.mxu0 0.0
    %1462 = vmatprep.subr.mxu0 0.0
    %1463 = vmatpush1.xpose.msra.mxu0 0.0
    %1464 = vmatprep.subr.mxu0 0.0
    %1465 = vmatpush1.xpose.msra.mxu0 0.0
    %1466 = vmatprep.subr.mxu0 0.0
    %1467 = vmatpush1.xpose.msra.mxu0 0.0
    %1468 = vmatprep.subr.mxu0 0.0
    %1469 = vmatpush1.xpose.msra.mxu0 %v1438
    %1470 = vmatprep.subr.mxu0 0.0
    %1471 = vmatpush1.xpose.msra.mxu0 %v1436
    %1472 = vmatprep.subr.mxu0 0.0
    %1473 = vmatpush2.xpose.msra.mxu0 0.0
    %1474 = vmatprep.subr.mxu0 0.0
    %1475 = vmatpush2.xpose.msra.mxu0 0.0
    %1476 = vmatprep.subr.mxu0 0.0
    %1477 = vmatpush2.xpose.msra.mxu0 0.0
    %1478 = vmatprep.subr.mxu0 0.0
    %1479 = vmatpush2.xpose.msra.mxu0 0.0
    %1480 = vmatprep.subr.mxu0 0.0
    %1481 = vmatpush2.xpose.msra.mxu0 0.0
    %1482 = vmatprep.subr.mxu0 0.0
    %1483 = vmatpush2.xpose.msra.mxu0 0.0
    %1484 = vmatprep.subr.mxu0 0.0
    %1485 = vmatpush2.xpose.msra.mxu0 0.0
    %1486 = vmatprep.subr.mxu0 0.0
    %1487 = vmatpush2.xpose.msra.mxu0 0.0
    %1488 = vmatprep.subr.mxu0 0.0
    %1489 = vmatpush2.xpose.msra.mxu0 0.0
    %1490 = vmatprep.subr.mxu0 0.0
    %1491 = vmatpush2.xpose.msra.mxu0 0.0
    %1492 = vmatprep.subr.mxu0 0.0
    %1493 = vmatpush2.xpose.msra.mxu0 0.0
    %1494 = vmatprep.subr.mxu0 0.0
    %1495 = vmatpush2.xpose.msra.mxu0 0.0
    %1496 = vmatprep.subr.mxu0 0.0
    %1497 = vmatpush2.xpose.msra.mxu0 0.0
    %1498 = vmatprep.subr.mxu0 0.0
    %1499 = vmatpush2.xpose.msra.mxu0 0.0
    %1500 = vmatprep.subr.mxu0 0.0
    %1501 = vmatpush2.xpose.msra.mxu0 0.0
    %1502 = vmatprep.subr.mxu0 0.0
    %1503 = vmatpush2.xpose.msra.mxu0 0.0
    %1504 = vmatprep.mubr.f32.mxu0 0.0
    %1505 = vmatmul.mubr.f32.gmra.mxu0 %v1432
    %v1506 = vpop.f32.mrf.mxu0
    %v1507 = vadd.f32 0.0, %v1506
    %v1508 = vpop.f32.mrf.mxu0
    %1509 = vmatprep.mubr.f32.mxu0 0.0
    %1510 = vmatmul.mubr.f32.gmra.mxu0 %v1434
    %v1511 = vpop.f32.mrf.mxu0
    %v1512 = vadd.f32 0.0, %v1511
    %v1513 = vpop.f32.mrf.mxu0
    %1514 = vdwg.mxu0
    %v1515 = vsel %vm418, %v1507, -inf
    %v1516 = vsel %vm419, %v1512, -inf
    %v1517 = vsel %vm510, %v1515, -inf
    %1518 = vmax.xlane.f32.xlu0 %v1517
    %v1519 = vpop.xlane.xlu0 %1518
    %v1520 = vsel %vm510, %v1516, -inf
    %1521 = vmax.xlane.f32.xlu0 %v1520
    %v1522 = vpop.xlane.xlu0 %1521
    %v1523 = vsub.f32 %v1515, %v1519
    %v1524 = vsub.f32 %v1516, %v1522
    %v1525 = vmul.f32 %v1523, 1.442695
    %v1526 = vpow.pop %v1525
    %v1527 = vmul.f32 %v1524, 1.442695
    %v1528 = vpow.pop %v1527
    %v1529 = vsel %vm510, %v1526, 0.0
    %1530 = vadd.xlane.f32.xlu0 %v1529
    %v1531 = vpop.xlane.xlu0 %1530
    %v1532 = vsel %vm510, %v1528, 0.0
    %1533 = vadd.xlane.f32.xlu0 %v1532
    %v1534 = vpop.xlane.xlu0 %1533
    %v1535 = vrcp.pop %v1531
    %v1536 = vrcp.pop %v1534
    %v1537 = vmul.f32 %v1526, %v1535
    %v1538 = vmul.f32 %v1528, %v1536
    %1539 = vrot.lane.b32.xlu0 %v397, 78
    %v1540 = vpop.permute.xlu0 %1539
    %1541 = vrot.lane.b32.xlu0 %v402, 78
    %v1542 = vpop.permute.xlu0 %1541
    %v1546 = vsel %vm510, %v1537, 0
    %v1549 = vsel %vm510, %v1538, 0
    %1551 = vmatprep.subr.mxu0 0.0
    %1552 = vmatpush1.msra.mxu0 0.0
    %1553 = vmatprep.subr.mxu0 0.0
    %1554 = vmatpush1.msra.mxu0 0.0
    %1555 = vmatprep.subr.mxu0 0.0
    %1556 = vmatpush1.msra.mxu0 0.0
    %1557 = vmatprep.subr.mxu0 0.0
    %1558 = vmatpush1.msra.mxu0 0.0
    %1559 = vmatprep.subr.mxu0 0.0
    %1560 = vmatpush1.msra.mxu0 0.0
    %1561 = vmatprep.subr.mxu0 0.0
    %1562 = vmatpush1.msra.mxu0 0.0
    %1563 = vmatprep.subr.mxu0 0.0
    %1564 = vmatpush1.msra.mxu0 0.0
    %1565 = vmatprep.subr.mxu0 0.0
    %1566 = vmatpush1.msra.mxu0 0.0
    %1567 = vmatprep.subr.mxu0 0.0
    %1568 = vmatpush1.msra.mxu0 0.0
    %1569 = vmatprep.subr.mxu0 0.0
    %1570 = vmatpush1.msra.mxu0 0.0
    %1571 = vmatprep.subr.mxu0 0.0
    %1572 = vmatpush1.msra.mxu0 0.0
    %1573 = vmatprep.subr.mxu0 0.0
    %1574 = vmatpush1.msra.mxu0 0.0
    %1575 = vmatprep.subr.mxu0 0.0
    %1576 = vmatpush1.msra.mxu0 0.0
    %1577 = vmatprep.subr.mxu0 0.0
    %1578 = vmatpush1.msra.mxu0 0.0
    %1579 = vmatprep.subr.mxu0 0.0
    %1580 = vmatpush1.msra.mxu0 %v1542
    %1581 = vmatprep.subr.mxu0 0.0
    %1582 = vmatpush1.msra.mxu0 %v1540
    %1583 = vmatprep.subr.mxu0 0.0
    %1584 = vmatpush2.msra.mxu0 0.0
    %1585 = vmatprep.subr.mxu0 0.0
    %1586 = vmatpush2.msra.mxu0 0.0
    %1587 = vmatprep.subr.mxu0 0.0
    %1588 = vmatpush2.msra.mxu0 0.0
    %1589 = vmatprep.subr.mxu0 0.0
    %1590 = vmatpush2.msra.mxu0 0.0
    %1591 = vmatprep.subr.mxu0 0.0
    %1592 = vmatpush2.msra.mxu0 0.0
    %1593 = vmatprep.subr.mxu0 0.0
    %1594 = vmatpush2.msra.mxu0 0.0
    %1595 = vmatprep.subr.mxu0 0.0
    %1596 = vmatpush2.msra.mxu0 0.0
    %1597 = vmatprep.subr.mxu0 0.0
    %1598 = vmatpush2.msra.mxu0 0.0
    %1599 = vmatprep.subr.mxu0 0.0
    %1600 = vmatpush2.msra.mxu0 0.0
    %1601 = vmatprep.subr.mxu0 0.0
    %1602 = vmatpush2.msra.mxu0 0.0
    %1603 = vmatprep.subr.mxu0 0.0
    %1604 = vmatpush2.msra.mxu0 0.0
    %1605 = vmatprep.subr.mxu0 0.0
    %1606 = vmatpush2.msra.mxu0 0.0
    %1607 = vmatprep.subr.mxu0 0.0
    %1608 = vmatpush2.msra.mxu0 0.0
    %1609 = vmatprep.subr.mxu0 0.0
    %1610 = vmatpush2.msra.mxu0 0.0
    %1611 = vmatprep.subr.mxu0 0.0
    %1612 = vmatpush2.msra.mxu0 0.0
    %1613 = vmatprep.subr.mxu0 0.0
    %1614 = vmatpush2.msra.mxu0 0.0
    %1615 = vmatprep.mubr.f32.mxu0 0.0
    %1616 = vmatmul.mubr.f32.gmra.mxu0 %v1546
    %v1617 = vpop.f32.mrf.mxu0
    %v1618 = vadd.f32 0.0, %v1617
    %v1619 = vpop.f32.mrf.mxu0
    %1620 = vmatprep.mubr.f32.mxu0 0.0
    %1621 = vmatmul.mubr.f32.gmra.mxu0 %v1549
    %v1622 = vpop.f32.mrf.mxu0
    %v1623 = vadd.f32 0.0, %v1622
    %v1624 = vpop.f32.mrf.mxu0
    %1625 = vdwg.mxu0
    %1628 = vrot.lane.b32.xlu0 %v810, 10
    %v1629 = vpop.permute.xlu0 %1628
    %1630 = vrot.lane.b32.xlu0 %v815, 10
    %v1631 = vpop.permute.xlu0 %1630
    %1636 = vrot.lane.b32.xlu0 %v1012, 20
    %v1637 = vpop.permute.xlu0 %1636
    %1638 = vrot.lane.b32.xlu0 %v1017, 20
    %v1639 = vpop.permute.xlu0 %1638
    %1644 = vrot.lane.b32.xlu0 %v1214, 30
    %v1645 = vpop.permute.xlu0 %1644
    %1646 = vrot.lane.b32.xlu0 %v1219, 30
    %v1647 = vpop.permute.xlu0 %1646
    %1652 = vrot.lane.b32.xlu0 %v1416, 40
    %v1653 = vpop.permute.xlu0 %1652
    %1654 = vrot.lane.b32.xlu0 %v1421, 40
    %v1655 = vpop.permute.xlu0 %1654
    %1660 = vrot.lane.b32.xlu0 %v1618, 50
    %v1661 = vpop.permute.xlu0 %1660
    %1662 = vrot.lane.b32.xlu0 %v1623, 50
    %v1663 = vpop.permute.xlu0 %1662
    %v1666 = vsel %vm420, %v606, %v1629
    %v1667 = vsel %vm420, %v611, %v1631
    %vm1668 = vcmask 162816
    %v1669 = vsel %vm1668, %v1666, %v1637
    %v1670 = vsel %vm1668, %v1667, %v1639
    %vm1671 = vcmask 244736
    %v1672 = vsel %vm1671, %v1669, %v1645
    %v1673 = vsel %vm1671, %v1670, %v1647
    %vm1674 = vcmask 326656
    %v1675 = vsel %vm1674, %v1672, %v1653
    %v1676 = vsel %vm1674, %v1673, %v1655
    %vm1677 = vcmask 408576
    %v1678 = vsel %vm1677, %v1675, %v1661
    %v1679 = vsel %vm1677, %v1676, %v1663
    %v1681 = vsel %vm420, %v320, 0
    %v1684 = vsel %vm420, %v326, 0
    %v1687 = vsel %vm420, %v322, 0
    %v1690 = vsel %vm420, %v328, 0
    %1692 = vmatprep.subr.mxu0 0.0
    %1693 = vmatpush1.xpose.msra.mxu0 0.0
    %1694 = vmatprep.subr.mxu0 0.0
    %1695 = vmatpush1.xpose.msra.mxu0 0.0
    %1696 = vmatprep.subr.mxu0 0.0
    %1697 = vmatpush1.xpose.msra.mxu0 0.0
    %1698 = vmatprep.subr.mxu0 0.0
    %1699 = vmatpush1.xpose.msra.mxu0 0.0
    %1700 = vmatprep.subr.mxu0 0.0
    %1701 = vmatpush1.xpose.msra.mxu0 0.0
    %1702 = vmatprep.subr.mxu0 0.0
    %1703 = vmatpush1.xpose.msra.mxu0 0.0
    %1704 = vmatprep.subr.mxu0 0.0
    %1705 = vmatpush1.xpose.msra.mxu0 0.0
    %1706 = vmatprep.subr.mxu0 0.0
    %1707 = vmatpush1.xpose.msra.mxu0 0.0
    %1708 = vmatprep.subr.mxu0 0.0
    %1709 = vmatpush1.xpose.msra.mxu0 0.0
    %1710 = vmatprep.subr.mxu0 0.0
    %1711 = vmatpush1.xpose.msra.mxu0 0.0
    %1712 = vmatprep.subr.mxu0 0.0
    %1713 = vmatpush1.xpose.msra.mxu0 0.0
    %1714 = vmatprep.subr.mxu0 0.0
    %1715 = vmatpush1.xpose.msra.mxu0 0.0
    %1716 = vmatprep.subr.mxu0 0.0
    %1717 = vmatpush1.xpose.msra.mxu0 0.0
    %1718 = vmatprep.subr.mxu0 0.0
    %1719 = vmatpush1.xpose.msra.mxu0 0.0
    %1720 = vmatprep.subr.mxu0 0.0
    %1721 = vmatpush1.xpose.msra.mxu0 %v1690
    %1722 = vmatprep.subr.mxu0 0.0
    %1723 = vmatpush1.xpose.msra.mxu0 %v1687
    %1724 = vmatprep.subr.mxu0 0.0
    %1725 = vmatpush2.xpose.msra.mxu0 0.0
    %1726 = vmatprep.subr.mxu0 0.0
    %1727 = vmatpush2.xpose.msra.mxu0 0.0
    %1728 = vmatprep.subr.mxu0 0.0
    %1729 = vmatpush2.xpose.msra.mxu0 0.0
    %1730 = vmatprep.subr.mxu0 0.0
    %1731 = vmatpush2.xpose.msra.mxu0 0.0
    %1732 = vmatprep.subr.mxu0 0.0
    %1733 = vmatpush2.xpose.msra.mxu0 0.0
    %1734 = vmatprep.subr.mxu0 0.0
    %1735 = vmatpush2.xpose.msra.mxu0 0.0
    %1736 = vmatprep.subr.mxu0 0.0
    %1737 = vmatpush2.xpose.msra.mxu0 0.0
    %1738 = vmatprep.subr.mxu0 0.0
    %1739 = vmatpush2.xpose.msra.mxu0 0.0
    %1740 = vmatprep.subr.mxu0 0.0
    %1741 = vmatpush2.xpose.msra.mxu0 0.0
    %1742 = vmatprep.subr.mxu0 0.0
    %1743 = vmatpush2.xpose.msra.mxu0 0.0
    %1744 = vmatprep.subr.mxu0 0.0
    %1745 = vmatpush2.xpose.msra.mxu0 0.0
    %1746 = vmatprep.subr.mxu0 0.0
    %1747 = vmatpush2.xpose.msra.mxu0 0.0
    %1748 = vmatprep.subr.mxu0 0.0
    %1749 = vmatpush2.xpose.msra.mxu0 0.0
    %1750 = vmatprep.subr.mxu0 0.0
    %1751 = vmatpush2.xpose.msra.mxu0 0.0
    %1752 = vmatprep.subr.mxu0 0.0
    %1753 = vmatpush2.xpose.msra.mxu0 0.0
    %1754 = vmatprep.subr.mxu0 0.0
    %1755 = vmatpush2.xpose.msra.mxu0 0.0
    %1756 = vmatprep.mubr.f32.mxu0 0.0
    %1757 = vmatmul.mubr.f32.gmra.mxu0 %v1681
    %v1758 = vpop.f32.mrf.mxu0
    %v1759 = vadd.f32 0.0, %v1758
    %v1760 = vpop.f32.mrf.mxu0
    %1761 = vmatprep.mubr.f32.mxu0 0.0
    %1762 = vmatmul.mubr.f32.gmra.mxu0 %v1684
    %v1763 = vpop.f32.mrf.mxu0
    %v1764 = vadd.f32 0.0, %v1763
    %v1765 = vpop.f32.mrf.mxu0
    %1766 = vdwg.mxu0
    %v1767 = vsel %vm418, %v1759, -inf
    %v1768 = vsel %vm419, %v1764, -inf
    %v1769 = vsel %vm510, %v1767, -inf
    %1770 = vmax.xlane.f32.xlu0 %v1769
    %v1771 = vpop.xlane.xlu0 %1770
    %v1772 = vsel %vm510, %v1768, -inf
    %1773 = vmax.xlane.f32.xlu0 %v1772
    %v1774 = vpop.xlane.xlu0 %1773
    %v1775 = vsub.f32 %v1767, %v1771
    %v1776 = vsub.f32 %v1768, %v1774
    %v1777 = vmul.f32 %v1775, 1.442695
    %v1778 = vpow.pop %v1777
    %v1779 = vmul.f32 %v1776, 1.442695
    %v1780 = vpow.pop %v1779
    %v1781 = vsel %vm510, %v1778, 0.0
    %1782 = vadd.xlane.f32.xlu0 %v1781
    %v1783 = vpop.xlane.xlu0 %1782
    %v1784 = vsel %vm510, %v1780, 0.0
    %1785 = vadd.xlane.f32.xlu0 %v1784
    %v1786 = vpop.xlane.xlu0 %1785
    %v1787 = vrcp.pop %v1783
    %v1788 = vrcp.pop %v1786
    %v1789 = vmul.f32 %v1778, %v1787
    %v1790 = vmul.f32 %v1780, %v1788
    %v1792 = vsel %vm510, %v1789, 0
    %v1795 = vsel %vm510, %v1790, 0
    %1797 = vmatprep.subr.mxu0 0.0
    %1798 = vmatpush1.msra.mxu0 0.0
    %1799 = vmatprep.subr.mxu0 0.0
    %1800 = vmatpush1.msra.mxu0 0.0
    %1801 = vmatprep.subr.mxu0 0.0
    %1802 = vmatpush1.msra.mxu0 0.0
    %1803 = vmatprep.subr.mxu0 0.0
    %1804 = vmatpush1.msra.mxu0 0.0
    %1805 = vmatprep.subr.mxu0 0.0
    %1806 = vmatpush1.msra.mxu0 0.0
    %1807 = vmatprep.subr.mxu0 0.0
    %1808 = vmatpush1.msra.mxu0 0.0
    %1809 = vmatprep.subr.mxu0 0.0
    %1810 = vmatpush1.msra.mxu0 0.0
    %1811 = vmatprep.subr.mxu0 0.0
    %1812 = vmatpush1.msra.mxu0 0.0
    %1813 = vmatprep.subr.mxu0 0.0
    %1814 = vmatpush1.msra.mxu0 0.0
    %1815 = vmatprep.subr.mxu0 0.0
    %1816 = vmatpush1.msra.mxu0 0.0
    %1817 = vmatprep.subr.mxu0 0.0
    %1818 = vmatpush1.msra.mxu0 0.0
    %1819 = vmatprep.subr.mxu0 0.0
    %1820 = vmatpush1.msra.mxu0 0.0
    %1821 = vmatprep.subr.mxu0 0.0
    %1822 = vmatpush1.msra.mxu0 0.0
    %1823 = vmatprep.subr.mxu0 0.0
    %1824 = vmatpush1.msra.mxu0 0.0
    %1825 = vmatprep.subr.mxu0 0.0
    %1826 = vmatpush1.msra.mxu0 %v412
    %1827 = vmatprep.subr.mxu0 0.0
    %1828 = vmatpush1.msra.mxu0 %v407
    %1829 = vmatprep.subr.mxu0 0.0
    %1830 = vmatpush2.msra.mxu0 0.0
    %1831 = vmatprep.subr.mxu0 0.0
    %1832 = vmatpush2.msra.mxu0 0.0
    %1833 = vmatprep.subr.mxu0 0.0
    %1834 = vmatpush2.msra.mxu0 0.0
    %1835 = vmatprep.subr.mxu0 0.0
    %1836 = vmatpush2.msra.mxu0 0.0
    %1837 = vmatprep.subr.mxu0 0.0
    %1838 = vmatpush2.msra.mxu0 0.0
    %1839 = vmatprep.subr.mxu0 0.0
    %1840 = vmatpush2.msra.mxu0 0.0
    %1841 = vmatprep.subr.mxu0 0.0
    %1842 = vmatpush2.msra.mxu0 0.0
    %1843 = vmatprep.subr.mxu0 0.0
    %1844 = vmatpush2.msra.mxu0 0.0
    %1845 = vmatprep.subr.mxu0 0.0
    %1846 = vmatpush2.msra.mxu0 0.0
    %1847 = vmatprep.subr.mxu0 0.0
    %1848 = vmatpush2.msra.mxu0 0.0
    %1849 = vmatprep.subr.mxu0 0.0
    %1850 = vmatpush2.msra.mxu0 0.0
    %1851 = vmatprep.subr.mxu0 0.0
    %1852 = vmatpush2.msra.mxu0 0.0
    %1853 = vmatprep.subr.mxu0 0.0
    %1854 = vmatpush2.msra.mxu0 0.0
    %1855 = vmatprep.subr.mxu0 0.0
    %1856 = vmatpush2.msra.mxu0 0.0
    %1857 = vmatprep.subr.mxu0 0.0
    %1858 = vmatpush2.msra.mxu0 0.0
    %1859 = vmatprep.subr.mxu0 0.0
    %1860 = vmatpush2.msra.mxu0 0.0
    %1861 = vmatprep.mubr.f32.mxu0 0.0
    %1862 = vmatmul.mubr.f32.gmra.mxu0 %v1792
    %v1863 = vpop.f32.mrf.mxu0
    %v1864 = vadd.f32 0.0, %v1863
    %v1865 = vpop.f32.mrf.mxu0
    %1866 = vmatprep.mubr.f32.mxu0 0.0
    %1867 = vmatmul.mubr.f32.gmra.mxu0 %v1795
    %v1868 = vpop.f32.mrf.mxu0
    %v1869 = vadd.f32 0.0, %v1868
    %v1870 = vpop.f32.mrf.mxu0
    %1871 = vdwg.mxu0
    %1872 = vrot.lane.b32.xlu0 %v320, 118
    %v1873 = vpop.permute.xlu0 %1872
    %1874 = vrot.lane.b32.xlu0 %v326, 118
    %v1875 = vpop.permute.xlu0 %1874
    %1876 = vrot.lane.b32.xlu0 %v322, 118
    %v1877 = vpop.permute.xlu0 %1876
    %1878 = vrot.lane.b32.xlu0 %v328, 118
    %v1879 = vpop.permute.xlu0 %1878
    %v1880 = vsel %vm420, %v1873, 0
    %v1882 = vsel %vm420, %v1875, 0
    %v1884 = vsel %vm420, %v1877, 0
    %v1886 = vsel %vm420, %v1879, 0
    %1888 = vmatprep.subr.mxu0 0.0
    %1889 = vmatpush1.xpose.msra.mxu0 0.0
    %1890 = vmatprep.subr.mxu0 0.0
    %1891 = vmatpush1.xpose.msra.mxu0 0.0
    %1892 = vmatprep.subr.mxu0 0.0
    %1893 = vmatpush1.xpose.msra.mxu0 0.0
    %1894 = vmatprep.subr.mxu0 0.0
    %1895 = vmatpush1.xpose.msra.mxu0 0.0
    %1896 = vmatprep.subr.mxu0 0.0
    %1897 = vmatpush1.xpose.msra.mxu0 0.0
    %1898 = vmatprep.subr.mxu0 0.0
    %1899 = vmatpush1.xpose.msra.mxu0 0.0
    %1900 = vmatprep.subr.mxu0 0.0
    %1901 = vmatpush1.xpose.msra.mxu0 0.0
    %1902 = vmatprep.subr.mxu0 0.0
    %1903 = vmatpush1.xpose.msra.mxu0 0.0
    %1904 = vmatprep.subr.mxu0 0.0
    %1905 = vmatpush1.xpose.msra.mxu0 0.0
    %1906 = vmatprep.subr.mxu0 0.0
    %1907 = vmatpush1.xpose.msra.mxu0 0.0
    %1908 = vmatprep.subr.mxu0 0.0
    %1909 = vmatpush1.xpose.msra.mxu0 0.0
    %1910 = vmatprep.subr.mxu0 0.0
    %1911 = vmatpush1.xpose.msra.mxu0 0.0
    %1912 = vmatprep.subr.mxu0 0.0
    %1913 = vmatpush1.xpose.msra.mxu0 0.0
    %1914 = vmatprep.subr.mxu0 0.0
    %1915 = vmatpush1.xpose.msra.mxu0 0.0
    %1916 = vmatprep.subr.mxu0 0.0
    %1917 = vmatpush1.xpose.msra.mxu0 %v1886
    %1918 = vmatprep.subr.mxu0 0.0
    %1919 = vmatpush1.xpose.msra.mxu0 %v1884
    %1920 = vmatprep.subr.mxu0 0.0
    %1921 = vmatpush2.xpose.msra.mxu0 0.0
    %1922 = vmatprep.subr.mxu0 0.0
    %1923 = vmatpush2.xpose.msra.mxu0 0.0
    %1924 = vmatprep.subr.mxu0 0.0
    %1925 = vmatpush2.xpose.msra.mxu0 0.0
    %1926 = vmatprep.subr.mxu0 0.0
    %1927 = vmatpush2.xpose.msra.mxu0 0.0
    %1928 = vmatprep.subr.mxu0 0.0
    %1929 = vmatpush2.xpose.msra.mxu0 0.0
    %1930 = vmatprep.subr.mxu0 0.0
    %1931 = vmatpush2.xpose.msra.mxu0 0.0
    %1932 = vmatprep.subr.mxu0 0.0
    %1933 = vmatpush2.xpose.msra.mxu0 0.0
    %1934 = vmatprep.subr.mxu0 0.0
    %1935 = vmatpush2.xpose.msra.mxu0 0.0
    %1936 = vmatprep.subr.mxu0 0.0
    %1937 = vmatpush2.xpose.msra.mxu0 0.0
    %1938 = vmatprep.subr.mxu0 0.0
    %1939 = vmatpush2.xpose.msra.mxu0 0.0
    %1940 = vmatprep.subr.mxu0 0.0
    %1941 = vmatpush2.xpose.msra.mxu0 0.0
    %1942 = vmatprep.subr.mxu0 0.0
    %1943 = vmatpush2.xpose.msra.mxu0 0.0
    %1944 = vmatprep.subr.mxu0 0.0
    %1945 = vmatpush2.xpose.msra.mxu0 0.0
    %1946 = vmatprep.subr.mxu0 0.0
    %1947 = vmatpush2.xpose.msra.mxu0 0.0
    %1948 = vmatprep.subr.mxu0 0.0
    %1949 = vmatpush2.xpose.msra.mxu0 0.0
    %1950 = vmatprep.subr.mxu0 0.0
    %1951 = vmatpush2.xpose.msra.mxu0 0.0
    %1952 = vmatprep.mubr.f32.mxu0 0.0
    %1953 = vmatmul.mubr.f32.gmra.mxu0 %v1880
    %v1954 = vpop.f32.mrf.mxu0
    %v1955 = vadd.f32 0.0, %v1954
    %v1956 = vpop.f32.mrf.mxu0
    %1957 = vmatprep.mubr.f32.mxu0 0.0
    %1958 = vmatmul.mubr.f32.gmra.mxu0 %v1882
    %v1959 = vpop.f32.mrf.mxu0
    %v1960 = vadd.f32 0.0, %v1959
    %v1961 = vpop.f32.mrf.mxu0
    %1962 = vdwg.mxu0
    %v1963 = vsel %vm418, %v1955, -inf
    %v1964 = vsel %vm419, %v1960, -inf
    %v1965 = vsel %vm510, %v1963, -inf
    %1966 = vmax.xlane.f32.xlu0 %v1965
    %v1967 = vpop.xlane.xlu0 %1966
    %v1968 = vsel %vm510, %v1964, -inf
    %1969 = vmax.xlane.f32.xlu0 %v1968
    %v1970 = vpop.xlane.xlu0 %1969
    %v1971 = vsub.f32 %v1963, %v1967
    %v1972 = vsub.f32 %v1964, %v1970
    %v1973 = vmul.f32 %v1971, 1.442695
    %v1974 = vpow.pop %v1973
    %v1975 = vmul.f32 %v1972, 1.442695
    %v1976 = vpow.pop %v1975
    %v1977 = vsel %vm510, %v1974, 0.0
    %1978 = vadd.xlane.f32.xlu0 %v1977
    %v1979 = vpop.xlane.xlu0 %1978
    %v1980 = vsel %vm510, %v1976, 0.0
    %1981 = vadd.xlane.f32.xlu0 %v1980
    %v1982 = vpop.xlane.xlu0 %1981
    %v1983 = vrcp.pop %v1979
    %v1984 = vrcp.pop %v1982
    %v1985 = vmul.f32 %v1974, %v1983
    %v1986 = vmul.f32 %v1976, %v1984
    %1989 = vrot.lane.b32.xlu0 %v407, 118
    %v1990 = vpop.permute.xlu0 %1989
    %1991 = vrot.lane.b32.xlu0 %v412, 118
    %v1992 = vpop.permute.xlu0 %1991
    %v1996 = vsel %vm510, %v1985, 0
    %v1999 = vsel %vm510, %v1986, 0
    %2001 = vmatprep.subr.mxu0 0.0
    %2002 = vmatpush1.msra.mxu0 0.0
    %2003 = vmatprep.subr.mxu0 0.0
    %2004 = vmatpush1.msra.mxu0 0.0
    %2005 = vmatprep.subr.mxu0 0.0
    %2006 = vmatpush1.msra.mxu0 0.0
    %2007 = vmatprep.subr.mxu0 0.0
    %2008 = vmatpush1.msra.mxu0 0.0
    %2009 = vmatprep.subr.mxu0 0.0
    %2010 = vmatpush1.msra.mxu0 0.0
    %2011 = vmatprep.subr.mxu0 0.0
    %2012 = vmatpush1.msra.mxu0 0.0
    %2013 = vmatprep.subr.mxu0 0.0
    %2014 = vmatpush1.msra.mxu0 0.0
    %2015 = vmatprep.subr.mxu0 0.0
    %2016 = vmatpush1.msra.mxu0 0.0
    %2017 = vmatprep.subr.mxu0 0.0
    %2018 = vmatpush1.msra.mxu0 0.0
    %2019 = vmatprep.subr.mxu0 0.0
    %2020 = vmatpush1.msra.mxu0 0.0
    %2021 = vmatprep.subr.mxu0 0.0
    %2022 = vmatpush1.msra.mxu0 0.0
    %2023 = vmatprep.subr.mxu0 0.0
    %2024 = vmatpush1.msra.mxu0 0.0
    %2025 = vmatprep.subr.mxu0 0.0
    %2026 = vmatpush1.msra.mxu0 0.0
    %2027 = vmatprep.subr.mxu0 0.0
    %2028 = vmatpush1.msra.mxu0 0.0
    %2029 = vmatprep.subr.mxu0 0.0
    %2030 = vmatpush1.msra.mxu0 %v1992
    %2031 = vmatprep.subr.mxu0 0.0
    %2032 = vmatpush1.msra.mxu0 %v1990
    %2033 = vmatprep.subr.mxu0 0.0
    %2034 = vmatpush2.msra.mxu0 0.0
    %2035 = vmatprep.subr.mxu0 0.0
    %2036 = vmatpush2.msra.mxu0 0.0
    %2037 = vmatprep.subr.mxu0 0.0
    %2038 = vmatpush2.msra.mxu0 0.0
    %2039 = vmatprep.subr.mxu0 0.0
    %2040 = vmatpush2.msra.mxu0 0.0
    %2041 = vmatprep.subr.mxu0 0.0
    %2042 = vmatpush2.msra.mxu0 0.0
    %2043 = vmatprep.subr.mxu0 0.0
    %2044 = vmatpush2.msra.mxu0 0.0
    %2045 = vmatprep.subr.mxu0 0.0
    %2046 = vmatpush2.msra.mxu0 0.0
    %2047 = vmatprep.subr.mxu0 0.0
    %2048 = vmatpush2.msra.mxu0 0.0
    %2049 = vmatprep.subr.mxu0 0.0
    %2050 = vmatpush2.msra.mxu0 0.0
    %2051 = vmatprep.subr.mxu0 0.0
    %2052 = vmatpush2.msra.mxu0 0.0
    %2053 = vmatprep.subr.mxu0 0.0
    %2054 = vmatpush2.msra.mxu0 0.0
    %2055 = vmatprep.subr.mxu0 0.0
    %2056 = vmatpush2.msra.mxu0 0.0
    %2057 = vmatprep.subr.mxu0 0.0
    %2058 = vmatpush2.msra.mxu0 0.0
    %2059 = vmatprep.subr.mxu0 0.0
    %2060 = vmatpush2.msra.mxu0 0.0
    %2061 = vmatprep.subr.mxu0 0.0
    %2062 = vmatpush2.msra.mxu0 0.0
    %2063 = vmatprep.subr.mxu0 0.0
    %2064 = vmatpush2.msra.mxu0 0.0
    %2065 = vmatprep.mubr.f32.mxu0 0.0
    %2066 = vmatmul.mubr.f32.gmra.mxu0 %v1996
    %v2067 = vpop.f32.mrf.mxu0
    %v2068 = vadd.f32 0.0, %v2067
    %v2069 = vpop.f32.mrf.mxu0
    %2070 = vmatprep.mubr.f32.mxu0 0.0
    %2071 = vmatmul.mubr.f32.gmra.mxu0 %v1999
    %v2072 = vpop.f32.mrf.mxu0
    %v2073 = vadd.f32 0.0, %v2072
    %v2074 = vpop.f32.mrf.mxu0
    %2075 = vdwg.mxu0
    %2076 = vrot.lane.b32.xlu0 %v320, 108
    %v2077 = vpop.permute.xlu0 %2076
    %2078 = vrot.lane.b32.xlu0 %v326, 108
    %v2079 = vpop.permute.xlu0 %2078
    %2080 = vrot.lane.b32.xlu0 %v322, 108
    %v2081 = vpop.permute.xlu0 %2080
    %2082 = vrot.lane.b32.xlu0 %v328, 108
    %v2083 = vpop.permute.xlu0 %2082
    %v2084 = vsel %vm420, %v2077, 0
    %v2086 = vsel %vm420, %v2079, 0
    %v2088 = vsel %vm420, %v2081, 0
    %v2090 = vsel %vm420, %v2083, 0
    %2092 = vmatprep.subr.mxu0 0.0
    %2093 = vmatpush1.xpose.msra.mxu0 0.0
    %2094 = vmatprep.subr.mxu0 0.0
    %2095 = vmatpush1.xpose.msra.mxu0 0.0
    %2096 = vmatprep.subr.mxu0 0.0
    %2097 = vmatpush1.xpose.msra.mxu0 0.0
    %2098 = vmatprep.subr.mxu0 0.0
    %2099 = vmatpush1.xpose.msra.mxu0 0.0
    %2100 = vmatprep.subr.mxu0 0.0
    %2101 = vmatpush1.xpose.msra.mxu0 0.0
    %2102 = vmatprep.subr.mxu0 0.0
    %2103 = vmatpush1.xpose.msra.mxu0 0.0
    %2104 = vmatprep.subr.mxu0 0.0
    %2105 = vmatpush1.xpose.msra.mxu0 0.0
    %2106 = vmatprep.subr.mxu0 0.0
    %2107 = vmatpush1.xpose.msra.mxu0 0.0
    %2108 = vmatprep.subr.mxu0 0.0
    %2109 = vmatpush1.xpose.msra.mxu0 0.0
    %2110 = vmatprep.subr.mxu0 0.0
    %2111 = vmatpush1.xpose.msra.mxu0 0.0
    %2112 = vmatprep.subr.mxu0 0.0
    %2113 = vmatpush1.xpose.msra.mxu0 0.0
    %2114 = vmatprep.subr.mxu0 0.0
    %2115 = vmatpush1.xpose.msra.mxu0 0.0
    %2116 = vmatprep.subr.mxu0 0.0
    %2117 = vmatpush1.xpose.msra.mxu0 0.0
    %2118 = vmatprep.subr.mxu0 0.0
    %2119 = vmatpush1.xpose.msra.mxu0 0.0
    %2120 = vmatprep.subr.mxu0 0.0
    %2121 = vmatpush1.xpose.msra.mxu0 %v2090
    %2122 = vmatprep.subr.mxu0 0.0
    %2123 = vmatpush1.xpose.msra.mxu0 %v2088
    %2124 = vmatprep.subr.mxu0 0.0
    %2125 = vmatpush2.xpose.msra.mxu0 0.0
    %2126 = vmatprep.subr.mxu0 0.0
    %2127 = vmatpush2.xpose.msra.mxu0 0.0
    %2128 = vmatprep.subr.mxu0 0.0
    %2129 = vmatpush2.xpose.msra.mxu0 0.0
    %2130 = vmatprep.subr.mxu0 0.0
    %2131 = vmatpush2.xpose.msra.mxu0 0.0
    %2132 = vmatprep.subr.mxu0 0.0
    %2133 = vmatpush2.xpose.msra.mxu0 0.0
    %2134 = vmatprep.subr.mxu0 0.0
    %2135 = vmatpush2.xpose.msra.mxu0 0.0
    %2136 = vmatprep.subr.mxu0 0.0
    %2137 = vmatpush2.xpose.msra.mxu0 0.0
    %2138 = vmatprep.subr.mxu0 0.0
    %2139 = vmatpush2.xpose.msra.mxu0 0.0
    %2140 = vmatprep.subr.mxu0 0.0
    %2141 = vmatpush2.xpose.msra.mxu0 0.0
    %2142 = vmatprep.subr.mxu0 0.0
    %2143 = vmatpush2.xpose.msra.mxu0 0.0
    %2144 = vmatprep.subr.mxu0 0.0
    %2145 = vmatpush2.xpose.msra.mxu0 0.0
    %2146 = vmatprep.subr.mxu0 0.0
    %2147 = vmatpush2.xpose.msra.mxu0 0.0
    %2148 = vmatprep.subr.mxu0 0.0
    %2149 = vmatpush2.xpose.msra.mxu0 0.0
    %2150 = vmatprep.subr.mxu0 0.0
    %2151 = vmatpush2.xpose.msra.mxu0 0.0
    %2152 = vmatprep.subr.mxu0 0.0
    %2153 = vmatpush2.xpose.msra.mxu0 0.0
    %2154 = vmatprep.subr.mxu0 0.0
    %2155 = vmatpush2.xpose.msra.mxu0 0.0
    %2156 = vmatprep.mubr.f32.mxu0 0.0
    %2157 = vmatmul.mubr.f32.gmra.mxu0 %v2084
    %v2158 = vpop.f32.mrf.mxu0
    %v2159 = vadd.f32 0.0, %v2158
    %v2160 = vpop.f32.mrf.mxu0
    %2161 = vmatprep.mubr.f32.mxu0 0.0
    %2162 = vmatmul.mubr.f32.gmra.mxu0 %v2086
    %v2163 = vpop.f32.mrf.mxu0
    %v2164 = vadd.f32 0.0, %v2163
    %v2165 = vpop.f32.mrf.mxu0
    %2166 = vdwg.mxu0
    %v2167 = vsel %vm418, %v2159, -inf
    %v2168 = vsel %vm419, %v2164, -inf
    %v2169 = vsel %vm510, %v2167, -inf
    %2170 = vmax.xlane.f32.xlu0 %v2169
    %v2171 = vpop.xlane.xlu0 %2170
    %v2172 = vsel %vm510, %v2168, -inf
    %2173 = vmax.xlane.f32.xlu0 %v2172
    %v2174 = vpop.xlane.xlu0 %2173
    %v2175 = vsub.f32 %v2167, %v2171
    %v2176 = vsub.f32 %v2168, %v2174
    %v2177 = vmul.f32 %v2175, 1.442695
    %v2178 = vpow.pop %v2177
    %v2179 = vmul.f32 %v2176, 1.442695
    %v2180 = vpow.pop %v2179
    %v2181 = vsel %vm510, %v2178, 0.0
    %2182 = vadd.xlane.f32.xlu0 %v2181
    %v2183 = vpop.xlane.xlu0 %2182
    %v2184 = vsel %vm510, %v2180, 0.0
    %2185 = vadd.xlane.f32.xlu0 %v2184
    %v2186 = vpop.xlane.xlu0 %2185
    %v2187 = vrcp.pop %v2183
    %v2188 = vrcp.pop %v2186
    %v2189 = vmul.f32 %v2178, %v2187
    %v2190 = vmul.f32 %v2180, %v2188
    %2191 = vrot.lane.b32.xlu0 %v407, 108
    %v2192 = vpop.permute.xlu0 %2191
    %2193 = vrot.lane.b32.xlu0 %v412, 108
    %v2194 = vpop.permute.xlu0 %2193
    %v2198 = vsel %vm510, %v2189, 0
    %v2201 = vsel %vm510, %v2190, 0
    %2203 = vmatprep.subr.mxu0 0.0
    %2204 = vmatpush1.msra.mxu0 0.0
    %2205 = vmatprep.subr.mxu0 0.0
    %2206 = vmatpush1.msra.mxu0 0.0
    %2207 = vmatprep.subr.mxu0 0.0
    %2208 = vmatpush1.msra.mxu0 0.0
    %2209 = vmatprep.subr.mxu0 0.0
    %2210 = vmatpush1.msra.mxu0 0.0
    %2211 = vmatprep.subr.mxu0 0.0
    %2212 = vmatpush1.msra.mxu0 0.0
    %2213 = vmatprep.subr.mxu0 0.0
    %2214 = vmatpush1.msra.mxu0 0.0
    %2215 = vmatprep.subr.mxu0 0.0
    %2216 = vmatpush1.msra.mxu0 0.0
    %2217 = vmatprep.subr.mxu0 0.0
    %2218 = vmatpush1.msra.mxu0 0.0
    %2219 = vmatprep.subr.mxu0 0.0
    %2220 = vmatpush1.msra.mxu0 0.0
    %2221 = vmatprep.subr.mxu0 0.0
    %2222 = vmatpush1.msra.mxu0 0.0
    %2223 = vmatprep.subr.mxu0 0.0
    %2224 = vmatpush1.msra.mxu0 0.0
    %2225 = vmatprep.subr.mxu0 0.0
    %2226 = vmatpush1.msra.mxu0 0.0
    %2227 = vmatprep.subr.mxu0 0.0
    %2228 = vmatpush1.msra.mxu0 0.0
    %2229 = vmatprep.subr.mxu0 0.0
    %2230 = vmatpush1.msra.mxu0 0.0
    %2231 = vmatprep.subr.mxu0 0.0
    %2232 = vmatpush1.msra.mxu0 %v2194
    %2233 = vmatprep.subr.mxu0 0.0
    %2234 = vmatpush1.msra.mxu0 %v2192
    %2235 = vmatprep.subr.mxu0 0.0
    %2236 = vmatpush2.msra.mxu0 0.0
    %2237 = vmatprep.subr.mxu0 0.0
    %2238 = vmatpush2.msra.mxu0 0.0
    %2239 = vmatprep.subr.mxu0 0.0
    %2240 = vmatpush2.msra.mxu0 0.0
    %2241 = vmatprep.subr.mxu0 0.0
    %2242 = vmatpush2.msra.mxu0 0.0
    %2243 = vmatprep.subr.mxu0 0.0
    %2244 = vmatpush2.msra.mxu0 0.0
    %2245 = vmatprep.subr.mxu0 0.0
    %2246 = vmatpush2.msra.mxu0 0.0
    %2247 = vmatprep.subr.mxu0 0.0
    %2248 = vmatpush2.msra.mxu0 0.0
    %2249 = vmatprep.subr.mxu0 0.0
    %2250 = vmatpush2.msra.mxu0 0.0
    %2251 = vmatprep.subr.mxu0 0.0
    %2252 = vmatpush2.msra.mxu0 0.0
    %2253 = vmatprep.subr.mxu0 0.0
    %2254 = vmatpush2.msra.mxu0 0.0
    %2255 = vmatprep.subr.mxu0 0.0
    %2256 = vmatpush2.msra.mxu0 0.0
    %2257 = vmatprep.subr.mxu0 0.0
    %2258 = vmatpush2.msra.mxu0 0.0
    %2259 = vmatprep.subr.mxu0 0.0
    %2260 = vmatpush2.msra.mxu0 0.0
    %2261 = vmatprep.subr.mxu0 0.0
    %2262 = vmatpush2.msra.mxu0 0.0
    %2263 = vmatprep.subr.mxu0 0.0
    %2264 = vmatpush2.msra.mxu0 0.0
    %2265 = vmatprep.subr.mxu0 0.0
    %2266 = vmatpush2.msra.mxu0 0.0
    %2267 = vmatprep.mubr.f32.mxu0 0.0
    %2268 = vmatmul.mubr.f32.gmra.mxu0 %v2198
    %v2269 = vpop.f32.mrf.mxu0
    %v2270 = vadd.f32 0.0, %v2269
    %v2271 = vpop.f32.mrf.mxu0
    %2272 = vmatprep.mubr.f32.mxu0 0.0
    %2273 = vmatmul.mubr.f32.gmra.mxu0 %v2201
    %v2274 = vpop.f32.mrf.mxu0
    %v2275 = vadd.f32 0.0, %v2274
    %v2276 = vpop.f32.mrf.mxu0
    %2277 = vdwg.mxu0
    %2278 = vrot.lane.b32.xlu0 %v320, 98
    %v2279 = vpop.permute.xlu0 %2278
    %2280 = vrot.lane.b32.xlu0 %v326, 98
    %v2281 = vpop.permute.xlu0 %2280
    %2282 = vrot.lane.b32.xlu0 %v322, 98
    %v2283 = vpop.permute.xlu0 %2282
    %2284 = vrot.lane.b32.xlu0 %v328, 98
    %v2285 = vpop.permute.xlu0 %2284
    %v2286 = vsel %vm420, %v2279, 0
    %v2288 = vsel %vm420, %v2281, 0
    %v2290 = vsel %vm420, %v2283, 0
    %v2292 = vsel %vm420, %v2285, 0
    %2294 = vmatprep.subr.mxu0 0.0
    %2295 = vmatpush1.xpose.msra.mxu0 0.0
    %2296 = vmatprep.subr.mxu0 0.0
    %2297 = vmatpush1.xpose.msra.mxu0 0.0
    %2298 = vmatprep.subr.mxu0 0.0
    %2299 = vmatpush1.xpose.msra.mxu0 0.0
    %2300 = vmatprep.subr.mxu0 0.0
    %2301 = vmatpush1.xpose.msra.mxu0 0.0
    %2302 = vmatprep.subr.mxu0 0.0
    %2303 = vmatpush1.xpose.msra.mxu0 0.0
    %2304 = vmatprep.subr.mxu0 0.0
    %2305 = vmatpush1.xpose.msra.mxu0 0.0
    %2306 = vmatprep.subr.mxu0 0.0
    %2307 = vmatpush1.xpose.msra.mxu0 0.0
    %2308 = vmatprep.subr.mxu0 0.0
    %2309 = vmatpush1.xpose.msra.mxu0 0.0
    %2310 = vmatprep.subr.mxu0 0.0
    %2311 = vmatpush1.xpose.msra.mxu0 0.0
    %2312 = vmatprep.subr.mxu0 0.0
    %2313 = vmatpush1.xpose.msra.mxu0 0.0
    %2314 = vmatprep.subr.mxu0 0.0
    %2315 = vmatpush1.xpose.msra.mxu0 0.0
    %2316 = vmatprep.subr.mxu0 0.0
    %2317 = vmatpush1.xpose.msra.mxu0 0.0
    %2318 = vmatprep.subr.mxu0 0.0
    %2319 = vmatpush1.xpose.msra.mxu0 0.0
    %2320 = vmatprep.subr.mxu0 0.0
    %2321 = vmatpush1.xpose.msra.mxu0 0.0
    %2322 = vmatprep.subr.mxu0 0.0
    %2323 = vmatpush1.xpose.msra.mxu0 %v2292
    %2324 = vmatprep.subr.mxu0 0.0
    %2325 = vmatpush1.xpose.msra.mxu0 %v2290
    %2326 = vmatprep.subr.mxu0 0.0
    %2327 = vmatpush2.xpose.msra.mxu0 0.0
    %2328 = vmatprep.subr.mxu0 0.0
    %2329 = vmatpush2.xpose.msra.mxu0 0.0
    %2330 = vmatprep.subr.mxu0 0.0
    %2331 = vmatpush2.xpose.msra.mxu0 0.0
    %2332 = vmatprep.subr.mxu0 0.0
    %2333 = vmatpush2.xpose.msra.mxu0 0.0
    %2334 = vmatprep.subr.mxu0 0.0
    %2335 = vmatpush2.xpose.msra.mxu0 0.0
    %2336 = vmatprep.subr.mxu0 0.0
    %2337 = vmatpush2.xpose.msra.mxu0 0.0
    %2338 = vmatprep.subr.mxu0 0.0
    %2339 = vmatpush2.xpose.msra.mxu0 0.0
    %2340 = vmatprep.subr.mxu0 0.0
    %2341 = vmatpush2.xpose.msra.mxu0 0.0
    %2342 = vmatprep.subr.mxu0 0.0
    %2343 = vmatpush2.xpose.msra.mxu0 0.0
    %2344 = vmatprep.subr.mxu0 0.0
    %2345 = vmatpush2.xpose.msra.mxu0 0.0
    %2346 = vmatprep.subr.mxu0 0.0
    %2347 = vmatpush2.xpose.msra.mxu0 0.0
    %2348 = vmatprep.subr.mxu0 0.0
    %2349 = vmatpush2.xpose.msra.mxu0 0.0
    %2350 = vmatprep.subr.mxu0 0.0
    %2351 = vmatpush2.xpose.msra.mxu0 0.0
    %2352 = vmatprep.subr.mxu0 0.0
    %2353 = vmatpush2.xpose.msra.mxu0 0.0
    %2354 = vmatprep.subr.mxu0 0.0
    %2355 = vmatpush2.xpose.msra.mxu0 0.0
    %2356 = vmatprep.subr.mxu0 0.0
    %2357 = vmatpush2.xpose.msra.mxu0 0.0
    %2358 = vmatprep.mubr.f32.mxu0 0.0
    %2359 = vmatmul.mubr.f32.gmra.mxu0 %v2286
    %v2360 = vpop.f32.mrf.mxu0
    %v2361 = vadd.f32 0.0, %v2360
    %v2362 = vpop.f32.mrf.mxu0
    %2363 = vmatprep.mubr.f32.mxu0 0.0
    %2364 = vmatmul.mubr.f32.gmra.mxu0 %v2288
    %v2365 = vpop.f32.mrf.mxu0
    %v2366 = vadd.f32 0.0, %v2365
    %v2367 = vpop.f32.mrf.mxu0
    %2368 = vdwg.mxu0
    %v2369 = vsel %vm418, %v2361, -inf
    %v2370 = vsel %vm419, %v2366, -inf
    %v2371 = vsel %vm510, %v2369, -inf
    %2372 = vmax.xlane.f32.xlu0 %v2371
    %v2373 = vpop.xlane.xlu0 %2372
    %v2374 = vsel %vm510, %v2370, -inf
    %2375 = vmax.xlane.f32.xlu0 %v2374
    %v2376 = vpop.xlane.xlu0 %2375
    %v2377 = vsub.f32 %v2369, %v2373
    %v2378 = vsub.f32 %v2370, %v2376
    %v2379 = vmul.f32 %v2377, 1.442695
    %v2380 = vpow.pop %v2379
    %v2381 = vmul.f32 %v2378, 1.442695
    %v2382 = vpow.pop %v2381
    %v2383 = vsel %vm510, %v2380, 0.0
    %2384 = vadd.xlane.f32.xlu0 %v2383
    %v2385 = vpop.xlane.xlu0 %2384
    %v2386 = vsel %vm510, %v2382, 0.0
    %2387 = vadd.xlane.f32.xlu0 %v2386
    %v2388 = vpop.xlane.xlu0 %2387
    %v2389 = vrcp.pop %v2385
    %v2390 = vrcp.pop %v2388
    %v2391 = vmul.f32 %v2380, %v2389
    %v2392 = vmul.f32 %v2382, %v2390
    %2393 = vrot.lane.b32.xlu0 %v407, 98
    %v2394 = vpop.permute.xlu0 %2393
    %2395 = vrot.lane.b32.xlu0 %v412, 98
    %v2396 = vpop.permute.xlu0 %2395
    %v2400 = vsel %vm510, %v2391, 0
    %v2403 = vsel %vm510, %v2392, 0
    %2405 = vmatprep.subr.mxu0 0.0
    %2406 = vmatpush1.msra.mxu0 0.0
    %2407 = vmatprep.subr.mxu0 0.0
    %2408 = vmatpush1.msra.mxu0 0.0
    %2409 = vmatprep.subr.mxu0 0.0
    %2410 = vmatpush1.msra.mxu0 0.0
    %2411 = vmatprep.subr.mxu0 0.0
    %2412 = vmatpush1.msra.mxu0 0.0
    %2413 = vmatprep.subr.mxu0 0.0
    %2414 = vmatpush1.msra.mxu0 0.0
    %2415 = vmatprep.subr.mxu0 0.0
    %2416 = vmatpush1.msra.mxu0 0.0
    %2417 = vmatprep.subr.mxu0 0.0
    %2418 = vmatpush1.msra.mxu0 0.0
    %2419 = vmatprep.subr.mxu0 0.0
    %2420 = vmatpush1.msra.mxu0 0.0
    %2421 = vmatprep.subr.mxu0 0.0
    %2422 = vmatpush1.msra.mxu0 0.0
    %2423 = vmatprep.subr.mxu0 0.0
    %2424 = vmatpush1.msra.mxu0 0.0
    %2425 = vmatprep.subr.mxu0 0.0
    %2426 = vmatpush1.msra.mxu0 0.0
    %2427 = vmatprep.subr.mxu0 0.0
    %2428 = vmatpush1.msra.mxu0 0.0
    %2429 = vmatprep.subr.mxu0 0.0
    %2430 = vmatpush1.msra.mxu0 0.0
    %2431 = vmatprep.subr.mxu0 0.0
    %2432 = vmatpush1.msra.mxu0 0.0
    %2433 = vmatprep.subr.mxu0 0.0
    %2434 = vmatpush1.msra.mxu0 %v2396
    %2435 = vmatprep.subr.mxu0 0.0
    %2436 = vmatpush1.msra.mxu0 %v2394
    %2437 = vmatprep.subr.mxu0 0.0
    %2438 = vmatpush2.msra.mxu0 0.0
    %2439 = vmatprep.subr.mxu0 0.0
    %2440 = vmatpush2.msra.mxu0 0.0
    %2441 = vmatprep.subr.mxu0 0.0
    %2442 = vmatpush2.msra.mxu0 0.0
    %2443 = vmatprep.subr.mxu0 0.0
    %2444 = vmatpush2.msra.mxu0 0.0
    %2445 = vmatprep.subr.mxu0 0.0
    %2446 = vmatpush2.msra.mxu0 0.0
    %2447 = vmatprep.subr.mxu0 0.0
    %2448 = vmatpush2.msra.mxu0 0.0
    %2449 = vmatprep.subr.mxu0 0.0
    %2450 = vmatpush2.msra.mxu0 0.0
    %2451 = vmatprep.subr.mxu0 0.0
    %2452 = vmatpush2.msra.mxu0 0.0
    %2453 = vmatprep.subr.mxu0 0.0
    %2454 = vmatpush2.msra.mxu0 0.0
    %2455 = vmatprep.subr.mxu0 0.0
    %2456 = vmatpush2.msra.mxu0 0.0
    %2457 = vmatprep.subr.mxu0 0.0
    %2458 = vmatpush2.msra.mxu0 0.0
    %2459 = vmatprep.subr.mxu0 0.0
    %2460 = vmatpush2.msra.mxu0 0.0
    %2461 = vmatprep.subr.mxu0 0.0
    %2462 = vmatpush2.msra.mxu0 0.0
    %2463 = vmatprep.subr.mxu0 0.0
    %2464 = vmatpush2.msra.mxu0 0.0
    %2465 = vmatprep.subr.mxu0 0.0
    %2466 = vmatpush2.msra.mxu0 0.0
    %2467 = vmatprep.subr.mxu0 0.0
    %2468 = vmatpush2.msra.mxu0 0.0
    %2469 = vmatprep.mubr.f32.mxu0 0.0
    %2470 = vmatmul.mubr.f32.gmra.mxu0 %v2400
    %v2471 = vpop.f32.mrf.mxu0
    %v2472 = vadd.f32 0.0, %v2471
    %v2473 = vpop.f32.mrf.mxu0
    %2474 = vmatprep.mubr.f32.mxu0 0.0
    %2475 = vmatmul.mubr.f32.gmra.mxu0 %v2403
    %v2476 = vpop.f32.mrf.mxu0
    %v2477 = vadd.f32 0.0, %v2476
    %v2478 = vpop.f32.mrf.mxu0
    %2479 = vdwg.mxu0
    %2480 = vrot.lane.b32.xlu0 %v320, 88
    %v2481 = vpop.permute.xlu0 %2480
    %2482 = vrot.lane.b32.xlu0 %v326, 88
    %v2483 = vpop.permute.xlu0 %2482
    %2484 = vrot.lane.b32.xlu0 %v322, 88
    %v2485 = vpop.permute.xlu0 %2484
    %2486 = vrot.lane.b32.xlu0 %v328, 88
    %v2487 = vpop.permute.xlu0 %2486
    %v2488 = vsel %vm420, %v2481, 0
    %v2490 = vsel %vm420, %v2483, 0
    %v2492 = vsel %vm420, %v2485, 0
    %v2494 = vsel %vm420, %v2487, 0
    %2496 = vmatprep.subr.mxu0 0.0
    %2497 = vmatpush1.xpose.msra.mxu0 0.0
    %2498 = vmatprep.subr.mxu0 0.0
    %2499 = vmatpush1.xpose.msra.mxu0 0.0
    %2500 = vmatprep.subr.mxu0 0.0
    %2501 = vmatpush1.xpose.msra.mxu0 0.0
    %2502 = vmatprep.subr.mxu0 0.0
    %2503 = vmatpush1.xpose.msra.mxu0 0.0
    %2504 = vmatprep.subr.mxu0 0.0
    %2505 = vmatpush1.xpose.msra.mxu0 0.0
    %2506 = vmatprep.subr.mxu0 0.0
    %2507 = vmatpush1.xpose.msra.mxu0 0.0
    %2508 = vmatprep.subr.mxu0 0.0
    %2509 = vmatpush1.xpose.msra.mxu0 0.0
    %2510 = vmatprep.subr.mxu0 0.0
    %2511 = vmatpush1.xpose.msra.mxu0 0.0
    %2512 = vmatprep.subr.mxu0 0.0
    %2513 = vmatpush1.xpose.msra.mxu0 0.0
    %2514 = vmatprep.subr.mxu0 0.0
    %2515 = vmatpush1.xpose.msra.mxu0 0.0
    %2516 = vmatprep.subr.mxu0 0.0
    %2517 = vmatpush1.xpose.msra.mxu0 0.0
    %2518 = vmatprep.subr.mxu0 0.0
    %2519 = vmatpush1.xpose.msra.mxu0 0.0
    %2520 = vmatprep.subr.mxu0 0.0
    %2521 = vmatpush1.xpose.msra.mxu0 0.0
    %2522 = vmatprep.subr.mxu0 0.0
    %2523 = vmatpush1.xpose.msra.mxu0 0.0
    %2524 = vmatprep.subr.mxu0 0.0
    %2525 = vmatpush1.xpose.msra.mxu0 %v2494
    %2526 = vmatprep.subr.mxu0 0.0
    %2527 = vmatpush1.xpose.msra.mxu0 %v2492
    %2528 = vmatprep.subr.mxu0 0.0
    %2529 = vmatpush2.xpose.msra.mxu0 0.0
    %2530 = vmatprep.subr.mxu0 0.0
    %2531 = vmatpush2.xpose.msra.mxu0 0.0
    %2532 = vmatprep.subr.mxu0 0.0
    %2533 = vmatpush2.xpose.msra.mxu0 0.0
    %2534 = vmatprep.subr.mxu0 0.0
    %2535 = vmatpush2.xpose.msra.mxu0 0.0
    %2536 = vmatprep.subr.mxu0 0.0
    %2537 = vmatpush2.xpose.msra.mxu0 0.0
    %2538 = vmatprep.subr.mxu0 0.0
    %2539 = vmatpush2.xpose.msra.mxu0 0.0
    %2540 = vmatprep.subr.mxu0 0.0
    %2541 = vmatpush2.xpose.msra.mxu0 0.0
    %2542 = vmatprep.subr.mxu0 0.0
    %2543 = vmatpush2.xpose.msra.mxu0 0.0
    %2544 = vmatprep.subr.mxu0 0.0
    %2545 = vmatpush2.xpose.msra.mxu0 0.0
    %2546 = vmatprep.subr.mxu0 0.0
    %2547 = vmatpush2.xpose.msra.mxu0 0.0
    %2548 = vmatprep.subr.mxu0 0.0
    %2549 = vmatpush2.xpose.msra.mxu0 0.0
    %2550 = vmatprep.subr.mxu0 0.0
    %2551 = vmatpush2.xpose.msra.mxu0 0.0
    %2552 = vmatprep.subr.mxu0 0.0
    %2553 = vmatpush2.xpose.msra.mxu0 0.0
    %2554 = vmatprep.subr.mxu0 0.0
    %2555 = vmatpush2.xpose.msra.mxu0 0.0
    %2556 = vmatprep.subr.mxu0 0.0
    %2557 = vmatpush2.xpose.msra.mxu0 0.0
    %2558 = vmatprep.subr.mxu0 0.0
    %2559 = vmatpush2.xpose.msra.mxu0 0.0
    %2560 = vmatprep.mubr.f32.mxu0 0.0
    %2561 = vmatmul.mubr.f32.gmra.mxu0 %v2488
    %v2562 = vpop.f32.mrf.mxu0
    %v2563 = vadd.f32 0.0, %v2562
    %v2564 = vpop.f32.mrf.mxu0
    %2565 = vmatprep.mubr.f32.mxu0 0.0
    %2566 = vmatmul.mubr.f32.gmra.mxu0 %v2490
    %v2567 = vpop.f32.mrf.mxu0
    %v2568 = vadd.f32 0.0, %v2567
    %v2569 = vpop.f32.mrf.mxu0
    %2570 = vdwg.mxu0
    %v2571 = vsel %vm418, %v2563, -inf
    %v2572 = vsel %vm419, %v2568, -inf
    %v2573 = vsel %vm510, %v2571, -inf
    %2574 = vmax.xlane.f32.xlu0 %v2573
    %v2575 = vpop.xlane.xlu0 %2574
    %v2576 = vsel %vm510, %v2572, -inf
    %2577 = vmax.xlane.f32.xlu0 %v2576
    %v2578 = vpop.xlane.xlu0 %2577
    %v2579 = vsub.f32 %v2571, %v2575
    %v2580 = vsub.f32 %v2572, %v2578
    %v2581 = vmul.f32 %v2579, 1.442695
    %v2582 = vpow.pop %v2581
    %v2583 = vmul.f32 %v2580, 1.442695
    %v2584 = vpow.pop %v2583
    %v2585 = vsel %vm510, %v2582, 0.0
    %2586 = vadd.xlane.f32.xlu0 %v2585
    %v2587 = vpop.xlane.xlu0 %2586
    %v2588 = vsel %vm510, %v2584, 0.0
    %2589 = vadd.xlane.f32.xlu0 %v2588
    %v2590 = vpop.xlane.xlu0 %2589
    %v2591 = vrcp.pop %v2587
    %v2592 = vrcp.pop %v2590
    %v2593 = vmul.f32 %v2582, %v2591
    %v2594 = vmul.f32 %v2584, %v2592
    %2595 = vrot.lane.b32.xlu0 %v407, 88
    %v2596 = vpop.permute.xlu0 %2595
    %2597 = vrot.lane.b32.xlu0 %v412, 88
    %v2598 = vpop.permute.xlu0 %2597
    %v2602 = vsel %vm510, %v2593, 0
    %v2605 = vsel %vm510, %v2594, 0
    %2607 = vmatprep.subr.mxu0 0.0
    %2608 = vmatpush1.msra.mxu0 0.0
    %2609 = vmatprep.subr.mxu0 0.0
    %2610 = vmatpush1.msra.mxu0 0.0
    %2611 = vmatprep.subr.mxu0 0.0
    %2612 = vmatpush1.msra.mxu0 0.0
    %2613 = vmatprep.subr.mxu0 0.0
    %2614 = vmatpush1.msra.mxu0 0.0
    %2615 = vmatprep.subr.mxu0 0.0
    %2616 = vmatpush1.msra.mxu0 0.0
    %2617 = vmatprep.subr.mxu0 0.0
    %2618 = vmatpush1.msra.mxu0 0.0
    %2619 = vmatprep.subr.mxu0 0.0
    %2620 = vmatpush1.msra.mxu0 0.0
    %2621 = vmatprep.subr.mxu0 0.0
    %2622 = vmatpush1.msra.mxu0 0.0
    %2623 = vmatprep.subr.mxu0 0.0
    %2624 = vmatpush1.msra.mxu0 0.0
    %2625 = vmatprep.subr.mxu0 0.0
    %2626 = vmatpush1.msra.mxu0 0.0
    %2627 = vmatprep.subr.mxu0 0.0
    %2628 = vmatpush1.msra.mxu0 0.0
    %2629 = vmatprep.subr.mxu0 0.0
    %2630 = vmatpush1.msra.mxu0 0.0
    %2631 = vmatprep.subr.mxu0 0.0
    %2632 = vmatpush1.msra.mxu0 0.0
    %2633 = vmatprep.subr.mxu0 0.0
    %2634 = vmatpush1.msra.mxu0 0.0
    %2635 = vmatprep.subr.mxu0 0.0
    %2636 = vmatpush1.msra.mxu0 %v2598
    %2637 = vmatprep.subr.mxu0 0.0
    %2638 = vmatpush1.msra.mxu0 %v2596
    %2639 = vmatprep.subr.mxu0 0.0
    %2640 = vmatpush2.msra.mxu0 0.0
    %2641 = vmatprep.subr.mxu0 0.0
    %2642 = vmatpush2.msra.mxu0 0.0
    %2643 = vmatprep.subr.mxu0 0.0
    %2644 = vmatpush2.msra.mxu0 0.0
    %2645 = vmatprep.subr.mxu0 0.0
    %2646 = vmatpush2.msra.mxu0 0.0
    %2647 = vmatprep.subr.mxu0 0.0
    %2648 = vmatpush2.msra.mxu0 0.0
    %2649 = vmatprep.subr.mxu0 0.0
    %2650 = vmatpush2.msra.mxu0 0.0
    %2651 = vmatprep.subr.mxu0 0.0
    %2652 = vmatpush2.msra.mxu0 0.0
    %2653 = vmatprep.subr.mxu0 0.0
    %2654 = vmatpush2.msra.mxu0 0.0
    %2655 = vmatprep.subr.mxu0 0.0
    %2656 = vmatpush2.msra.mxu0 0.0
    %2657 = vmatprep.subr.mxu0 0.0
    %2658 = vmatpush2.msra.mxu0 0.0
    %2659 = vmatprep.subr.mxu0 0.0
    %2660 = vmatpush2.msra.mxu0 0.0
    %2661 = vmatprep.subr.mxu0 0.0
    %2662 = vmatpush2.msra.mxu0 0.0
    %2663 = vmatprep.subr.mxu0 0.0
    %2664 = vmatpush2.msra.mxu0 0.0
    %2665 = vmatprep.subr.mxu0 0.0
    %2666 = vmatpush2.msra.mxu0 0.0
    %2667 = vmatprep.subr.mxu0 0.0
    %2668 = vmatpush2.msra.mxu0 0.0
    %2669 = vmatprep.subr.mxu0 0.0
    %2670 = vmatpush2.msra.mxu0 0.0
    %2671 = vmatprep.mubr.f32.mxu0 0.0
    %2672 = vmatmul.mubr.f32.gmra.mxu0 %v2602
    %v2673 = vpop.f32.mrf.mxu0
    %v2674 = vadd.f32 0.0, %v2673
    %v2675 = vpop.f32.mrf.mxu0
    %2676 = vmatprep.mubr.f32.mxu0 0.0
    %2677 = vmatmul.mubr.f32.gmra.mxu0 %v2605
    %v2678 = vpop.f32.mrf.mxu0
    %v2679 = vadd.f32 0.0, %v2678
    %v2680 = vpop.f32.mrf.mxu0
    %2681 = vdwg.mxu0
    %2682 = vrot.lane.b32.xlu0 %v320, 78
    %v2683 = vpop.permute.xlu0 %2682
    %2684 = vrot.lane.b32.xlu0 %v326, 78
    %v2685 = vpop.permute.xlu0 %2684
    %2686 = vrot.lane.b32.xlu0 %v322, 78
    %v2687 = vpop.permute.xlu0 %2686
    %2688 = vrot.lane.b32.xlu0 %v328, 78
    %v2689 = vpop.permute.xlu0 %2688
    %v2690 = vsel %vm420, %v2683, 0
    %v2692 = vsel %vm420, %v2685, 0
    %v2694 = vsel %vm420, %v2687, 0
    %v2696 = vsel %vm420, %v2689, 0
    %2698 = vmatprep.subr.mxu0 0.0
    %2699 = vmatpush1.xpose.msra.mxu0 0.0
    %2700 = vmatprep.subr.mxu0 0.0
    %2701 = vmatpush1.xpose.msra.mxu0 0.0
    %2702 = vmatprep.subr.mxu0 0.0
    %2703 = vmatpush1.xpose.msra.mxu0 0.0
    %2704 = vmatprep.subr.mxu0 0.0
    %2705 = vmatpush1.xpose.msra.mxu0 0.0
    %2706 = vmatprep.subr.mxu0 0.0
    %2707 = vmatpush1.xpose.msra.mxu0 0.0
    %2708 = vmatprep.subr.mxu0 0.0
    %2709 = vmatpush1.xpose.msra.mxu0 0.0
    %2710 = vmatprep.subr.mxu0 0.0
    %2711 = vmatpush1.xpose.msra.mxu0 0.0
    %2712 = vmatprep.subr.mxu0 0.0
    %2713 = vmatpush1.xpose.msra.mxu0 0.0
    %2714 = vmatprep.subr.mxu0 0.0
    %2715 = vmatpush1.xpose.msra.mxu0 0.0
    %2716 = vmatprep.subr.mxu0 0.0
    %2717 = vmatpush1.xpose.msra.mxu0 0.0
    %2718 = vmatprep.subr.mxu0 0.0
    %2719 = vmatpush1.xpose.msra.mxu0 0.0
    %2720 = vmatprep.subr.mxu0 0.0
    %2721 = vmatpush1.xpose.msra.mxu0 0.0
    %2722 = vmatprep.subr.mxu0 0.0
    %2723 = vmatpush1.xpose.msra.mxu0 0.0
    %2724 = vmatprep.subr.mxu0 0.0
    %2725 = vmatpush1.xpose.msra.mxu0 0.0
    %2726 = vmatprep.subr.mxu0 0.0
    %2727 = vmatpush1.xpose.msra.mxu0 %v2696
    %2728 = vmatprep.subr.mxu0 0.0
    %2729 = vmatpush1.xpose.msra.mxu0 %v2694
    %2730 = vmatprep.subr.mxu0 0.0
    %2731 = vmatpush2.xpose.msra.mxu0 0.0
    %2732 = vmatprep.subr.mxu0 0.0
    %2733 = vmatpush2.xpose.msra.mxu0 0.0
    %2734 = vmatprep.subr.mxu0 0.0
    %2735 = vmatpush2.xpose.msra.mxu0 0.0
    %2736 = vmatprep.subr.mxu0 0.0
    %2737 = vmatpush2.xpose.msra.mxu0 0.0
    %2738 = vmatprep.subr.mxu0 0.0
    %2739 = vmatpush2.xpose.msra.mxu0 0.0
    %2740 = vmatprep.subr.mxu0 0.0
    %2741 = vmatpush2.xpose.msra.mxu0 0.0
    %2742 = vmatprep.subr.mxu0 0.0
    %2743 = vmatpush2.xpose.msra.mxu0 0.0
    %2744 = vmatprep.subr.mxu0 0.0
    %2745 = vmatpush2.xpose.msra.mxu0 0.0
    %2746 = vmatprep.subr.mxu0 0.0
    %2747 = vmatpush2.xpose.msra.mxu0 0.0
    %2748 = vmatprep.subr.mxu0 0.0
    %2749 = vmatpush2.xpose.msra.mxu0 0.0
    %2750 = vmatprep.subr.mxu0 0.0
    %2751 = vmatpush2.xpose.msra.mxu0 0.0
    %2752 = vmatprep.subr.mxu0 0.0
    %2753 = vmatpush2.xpose.msra.mxu0 0.0
    %2754 = vmatprep.subr.mxu0 0.0
    %2755 = vmatpush2.xpose.msra.mxu0 0.0
    %2756 = vmatprep.subr.mxu0 0.0
    %2757 = vmatpush2.xpose.msra.mxu0 0.0
    %2758 = vmatprep.subr.mxu0 0.0
    %2759 = vmatpush2.xpose.msra.mxu0 0.0
    %2760 = vmatprep.subr.mxu0 0.0
    %2761 = vmatpush2.xpose.msra.mxu0 0.0
    %2762 = vmatprep.mubr.f32.mxu0 0.0
    %2763 = vmatmul.mubr.f32.gmra.mxu0 %v2690
    %v2764 = vpop.f32.mrf.mxu0
    %v2765 = vadd.f32 0.0, %v2764
    %v2766 = vpop.f32.mrf.mxu0
    %2767 = vmatprep.mubr.f32.mxu0 0.0
    %2768 = vmatmul.mubr.f32.gmra.mxu0 %v2692
    %v2769 = vpop.f32.mrf.mxu0
    %v2770 = vadd.f32 0.0, %v2769
    %v2771 = vpop.f32.mrf.mxu0
    %2772 = vdwg.mxu0
    %v2773 = vsel %vm418, %v2765, -inf
    %v2774 = vsel %vm419, %v2770, -inf
    %v2775 = vsel %vm510, %v2773, -inf
    %2776 = vmax.xlane.f32.xlu0 %v2775
    %v2777 = vpop.xlane.xlu0 %2776
    %v2778 = vsel %vm510, %v2774, -inf
    %2779 = vmax.xlane.f32.xlu0 %v2778
    %v2780 = vpop.xlane.xlu0 %2779
    %v2781 = vsub.f32 %v2773, %v2777
    %v2782 = vsub.f32 %v2774, %v2780
    %v2783 = vmul.f32 %v2781, 1.442695
    %v2784 = vpow.pop %v2783
    %v2785 = vmul.f32 %v2782, 1.442695
    %v2786 = vpow.pop %v2785
    %v2787 = vsel %vm510, %v2784, 0.0
    %2788 = vadd.xlane.f32.xlu0 %v2787
    %v2789 = vpop.xlane.xlu0 %2788
    %v2790 = vsel %vm510, %v2786, 0.0
    %2791 = vadd.xlane.f32.xlu0 %v2790
    %v2792 = vpop.xlane.xlu0 %2791
    %v2793 = vrcp.pop %v2789
    %v2794 = vrcp.pop %v2792
    %v2795 = vmul.f32 %v2784, %v2793
    %v2796 = vmul.f32 %v2786, %v2794
    %2797 = vrot.lane.b32.xlu0 %v407, 78
    %v2798 = vpop.permute.xlu0 %2797
    %2799 = vrot.lane.b32.xlu0 %v412, 78
    %v2800 = vpop.permute.xlu0 %2799
    %v2804 = vsel %vm510, %v2795, 0
    %v2807 = vsel %vm510, %v2796, 0
    %2809 = vmatprep.subr.mxu0 0.0
    %2810 = vmatpush1.msra.mxu0 0.0
    %2811 = vmatprep.subr.mxu0 0.0
    %2812 = vmatpush1.msra.mxu0 0.0
    %2813 = vmatprep.subr.mxu0 0.0
    %2814 = vmatpush1.msra.mxu0 0.0
    %2815 = vmatprep.subr.mxu0 0.0
    %2816 = vmatpush1.msra.mxu0 0.0
    %2817 = vmatprep.subr.mxu0 0.0
    %2818 = vmatpush1.msra.mxu0 0.0
    %2819 = vmatprep.subr.mxu0 0.0
    %2820 = vmatpush1.msra.mxu0 0.0
    %2821 = vmatprep.subr.mxu0 0.0
    %2822 = vmatpush1.msra.mxu0 0.0
    %2823 = vmatprep.subr.mxu0 0.0
    %2824 = vmatpush1.msra.mxu0 0.0
    %2825 = vmatprep.subr.mxu0 0.0
    %2826 = vmatpush1.msra.mxu0 0.0
    %2827 = vmatprep.subr.mxu0 0.0
    %2828 = vmatpush1.msra.mxu0 0.0
    %2829 = vmatprep.subr.mxu0 0.0
    %2830 = vmatpush1.msra.mxu0 0.0
    %2831 = vmatprep.subr.mxu0 0.0
    %2832 = vmatpush1.msra.mxu0 0.0
    %2833 = vmatprep.subr.mxu0 0.0
    %2834 = vmatpush1.msra.mxu0 0.0
    %2835 = vmatprep.subr.mxu0 0.0
    %2836 = vmatpush1.msra.mxu0 0.0
    %2837 = vmatprep.subr.mxu0 0.0
    %2838 = vmatpush1.msra.mxu0 %v2800
    %2839 = vmatprep.subr.mxu0 0.0
    %2840 = vmatpush1.msra.mxu0 %v2798
    %2841 = vmatprep.subr.mxu0 0.0
    %2842 = vmatpush2.msra.mxu0 0.0
    %2843 = vmatprep.subr.mxu0 0.0
    %2844 = vmatpush2.msra.mxu0 0.0
    %2845 = vmatprep.subr.mxu0 0.0
    %2846 = vmatpush2.msra.mxu0 0.0
    %2847 = vmatprep.subr.mxu0 0.0
    %2848 = vmatpush2.msra.mxu0 0.0
    %2849 = vmatprep.subr.mxu0 0.0
    %2850 = vmatpush2.msra.mxu0 0.0
    %2851 = vmatprep.subr.mxu0 0.0
    %2852 = vmatpush2.msra.mxu0 0.0
    %2853 = vmatprep.subr.mxu0 0.0
    %2854 = vmatpush2.msra.mxu0 0.0
    %2855 = vmatprep.subr.mxu0 0.0
    %2856 = vmatpush2.msra.mxu0 0.0
    %2857 = vmatprep.subr.mxu0 0.0
    %2858 = vmatpush2.msra.mxu0 0.0
    %2859 = vmatprep.subr.mxu0 0.0
    %2860 = vmatpush2.msra.mxu0 0.0
    %2861 = vmatprep.subr.mxu0 0.0
    %2862 = vmatpush2.msra.mxu0 0.0
    %2863 = vmatprep.subr.mxu0 0.0
    %2864 = vmatpush2.msra.mxu0 0.0
    %2865 = vmatprep.subr.mxu0 0.0
    %2866 = vmatpush2.msra.mxu0 0.0
    %2867 = vmatprep.subr.mxu0 0.0
    %2868 = vmatpush2.msra.mxu0 0.0
    %2869 = vmatprep.subr.mxu0 0.0
    %2870 = vmatpush2.msra.mxu0 0.0
    %2871 = vmatprep.subr.mxu0 0.0
    %2872 = vmatpush2.msra.mxu0 0.0
    %2873 = vmatprep.mubr.f32.mxu0 0.0
    %2874 = vmatmul.mubr.f32.gmra.mxu0 %v2804
    %v2875 = vpop.f32.mrf.mxu0
    %v2876 = vadd.f32 0.0, %v2875
    %v2877 = vpop.f32.mrf.mxu0
    %2878 = vmatprep.mubr.f32.mxu0 0.0
    %2879 = vmatmul.mubr.f32.gmra.mxu0 %v2807
    %v2880 = vpop.f32.mrf.mxu0
    %v2881 = vadd.f32 0.0, %v2880
    %v2882 = vpop.f32.mrf.mxu0
    %2883 = vdwg.mxu0
    %2886 = vrot.lane.b32.xlu0 %v2068, 10
    %v2887 = vpop.permute.xlu0 %2886
    %2888 = vrot.lane.b32.xlu0 %v2073, 10
    %v2889 = vpop.permute.xlu0 %2888
    %2894 = vrot.lane.b32.xlu0 %v2270, 20
    %v2895 = vpop.permute.xlu0 %2894
    %2896 = vrot.lane.b32.xlu0 %v2275, 20
    %v2897 = vpop.permute.xlu0 %2896
    %2902 = vrot.lane.b32.xlu0 %v2472, 30
    %v2903 = vpop.permute.xlu0 %2902
    %2904 = vrot.lane.b32.xlu0 %v2477, 30
    %v2905 = vpop.permute.xlu0 %2904
    %2910 = vrot.lane.b32.xlu0 %v2674, 40
    %v2911 = vpop.permute.xlu0 %2910
    %2912 = vrot.lane.b32.xlu0 %v2679, 40
    %v2913 = vpop.permute.xlu0 %2912
    %2918 = vrot.lane.b32.xlu0 %v2876, 50
    %v2919 = vpop.permute.xlu0 %2918
    %2920 = vrot.lane.b32.xlu0 %v2881, 50
    %v2921 = vpop.permute.xlu0 %2920
    %v2924 = vsel %vm420, %v1864, %v2887
    %v2925 = vsel %vm420, %v1869, %v2889
    %v2926 = vsel %vm1668, %v2924, %v2895
    %v2927 = vsel %vm1668, %v2925, %v2897
    %v2928 = vsel %vm1671, %v2926, %v2903
    %v2929 = vsel %vm1671, %v2927, %v2905
    %v2930 = vsel %vm1674, %v2928, %v2911
    %v2931 = vsel %vm1674, %v2929, %v2913
    %v2932 = vsel %vm1677, %v2930, %v2919
    %v2933 = vsel %vm1677, %v2931, %v2921
    %v2934 = vld [vmem:[#allocation8] sm:$0xff]
    %v2935 = vld [vmem:[#allocation8 + $0x8] sm:$0xff]
    %v2936 = vld [vmem:[#allocation8 + $0x10] sm:$0xff]
    %v2937 = vld [vmem:[#allocation8 + $0x18] sm:$0xff]
    %v2938 = vld [vmem:[#allocation8 + $0x20] sm:$0xff]
    %v2939 = vld [vmem:[#allocation8 + $0x28] sm:$0xff]
    %v2940 = vld [vmem:[#allocation8 + $0x30] sm:$0xff]
    %v2941 = vld [vmem:[#allocation8 + $0x38] sm:$0xf]
    %v2942 = vld [vmem:[%s5] sm:$0x1]
    %v2944 = vlaneseq
    %v2945 = vshrl.u32 %v2944, 7
    %v2946 = vsub.s32 0, %v2945
    %v2947 = vrot.slane %v2942, %v2946
    %vm2949 = vcmask 490496
    %v2951 = vsel %vm2949, %v1678, 0
    %v2954 = vsel %vm2949, %v1679, 0
    %v2957 = vsel %vm2949, %v2932, 0
    %v2960 = vsel %vm2949, %v2933, 0
    %vm2962 = vcmask 1043456
    %v2964 = vsel %vm2962, %v2941, 0
    %2966 = vmatprep.subr.mxu0 0.0
    %2967 = vmatpush1.msra.mxu0 0.0
    %2968 = vmatprep.subr.mxu0 0.0
    %2969 = vmatpush1.msra.mxu0 0.0
    %2970 = vmatprep.subr.mxu0 0.0
    %2971 = vmatpush1.msra.mxu0 0.0
    %2972 = vmatprep.subr.mxu0 0.0
    %2973 = vmatpush1.msra.mxu0 0.0
    %2974 = vmatprep.subr.mxu0 0.0
    %2975 = vmatpush1.msra.mxu0 0.0
    %2976 = vmatprep.subr.mxu0 0.0
    %2977 = vmatpush1.msra.mxu0 0.0
    %2978 = vmatprep.subr.mxu0 0.0
    %2979 = vmatpush1.msra.mxu0 0.0
    %2980 = vmatprep.subr.mxu0 0.0
    %2981 = vmatpush1.msra.mxu0 0.0
    %2982 = vmatprep.subr.mxu0 0.0
    %2983 = vmatpush1.msra.mxu0 %v2964
    %2984 = vmatprep.subr.mxu0 0.0
    %2985 = vmatpush1.msra.mxu0 %v2940
    %2986 = vmatprep.subr.mxu0 0.0
    %2987 = vmatpush1.msra.mxu0 %v2939
    %2988 = vmatprep.subr.mxu0 0.0
    %2989 = vmatpush1.msra.mxu0 %v2938
    %2990 = vmatprep.subr.mxu0 0.0
    %2991 = vmatpush1.msra.mxu0 %v2937
    %2992 = vmatprep.subr.mxu0 0.0
    %2993 = vmatpush1.msra.mxu0 %v2936
    %2994 = vmatprep.subr.mxu0 0.0
    %2995 = vmatpush1.msra.mxu0 %v2935
    %2996 = vmatprep.subr.mxu0 0.0
    %2997 = vmatpush1.msra.mxu0 %v2934
    %2998 = vmatprep.subr.mxu0 0.0
    %2999 = vmatpush2.msra.mxu0 0.0
    %3000 = vmatprep.subr.mxu0 0.0
    %3001 = vmatpush2.msra.mxu0 0.0
    %3002 = vmatprep.subr.mxu0 0.0
    %3003 = vmatpush2.msra.mxu0 0.0
    %3004 = vmatprep.subr.mxu0 0.0
    %3005 = vmatpush2.msra.mxu0 0.0
    %3006 = vmatprep.subr.mxu0 0.0
    %3007 = vmatpush2.msra.mxu0 0.0
    %3008 = vmatprep.subr.mxu0 0.0
    %3009 = vmatpush2.msra.mxu0 0.0
    %3010 = vmatprep.subr.mxu0 0.0
    %3011 = vmatpush2.msra.mxu0 0.0
    %3012 = vmatprep.subr.mxu0 0.0
    %3013 = vmatpush2.msra.mxu0 0.0
    %3014 = vmatprep.subr.mxu0 0.0
    %3015 = vmatpush2.msra.mxu0 0.0
    %3016 = vmatprep.subr.mxu0 0.0
    %3017 = vmatpush2.msra.mxu0 0.0
    %3018 = vmatprep.subr.mxu0 0.0
    %3019 = vmatpush2.msra.mxu0 0.0
    %3020 = vmatprep.subr.mxu0 0.0
    %3021 = vmatpush2.msra.mxu0 0.0
    %3022 = vmatprep.subr.mxu0 0.0
    %3023 = vmatpush2.msra.mxu0 0.0
    %3024 = vmatprep.subr.mxu0 0.0
    %3025 = vmatpush2.msra.mxu0 0.0
    %3026 = vmatprep.subr.mxu0 0.0
    %3027 = vmatpush2.msra.mxu0 0.0
    %3028 = vmatprep.subr.mxu0 0.0
    %3029 = vmatpush2.msra.mxu0 0.0
    %3030 = vmatprep.mubr.f32.mxu0 0.0
    %3031 = vmatmul.mubr.f32.gmra.mxu0 %v2951
    %v3032 = vpop.f32.mrf.mxu0
    %v3033 = vadd.f32 %v2947, %v3032
    %v3034 = vpop.f32.mrf.mxu0
    %3035 = vmatprep.mubr.f32.mxu0 0.0
    %3036 = vmatmul.mubr.f32.gmra.mxu0 %v2954
    %v3037 = vpop.f32.mrf.mxu0
    %v3038 = vadd.f32 %v2947, %v3037
    %v3039 = vpop.f32.mrf.mxu0
    %3040 = vmatprep.mubr.f32.mxu0 0.0
    %3041 = vmatmul.mubr.f32.gmra.mxu0 %v2957
    %v3042 = vpop.f32.mrf.mxu0
    %v3043 = vadd.f32 %v2947, %v3042
    %v3044 = vpop.f32.mrf.mxu0
    %3045 = vmatprep.mubr.f32.mxu0 0.0
    %3046 = vmatmul.mubr.f32.gmra.mxu0 %v2960
    %v3047 = vpop.f32.mrf.mxu0
    %v3048 = vadd.f32 %v2947, %v3047
    %v3049 = vpop.f32.mrf.mxu0
    %3050 = vdwg.mxu0
    %v3051 = vadd.f32 %v116, %v3033
    %v3052 = vadd.f32 %v117, %v3038
    %v3053 = vadd.f32 %v118, %v3043
    %v3054 = vadd.f32 %v119, %v3048
    %3055 = vadd.xlane.f32.xlu0 %v3051
    %v3056 = vpop.xlane.xlu0 %3055
    %3057 = vadd.xlane.f32.xlu0 %v3052
    %v3058 = vpop.xlane.xlu0 %3057
    %3059 = vadd.xlane.f32.xlu0 %v3053
    %v3060 = vpop.xlane.xlu0 %3059
    %3061 = vadd.xlane.f32.xlu0 %v3054
    %v3062 = vpop.xlane.xlu0 %3061
    %v3063 = vmul.f32 %v3056, 0.016666668
    %v3064 = vmul.f32 %v3058, 0.016666668
    %v3065 = vmul.f32 %v3060, 0.016666668
    %v3066 = vmul.f32 %v3062, 0.016666668
    %v3067 = vsub.f32 %v3051, %v3063
    %v3068 = vsub.f32 %v3052, %v3064
    %v3069 = vsub.f32 %v3053, %v3065
    %v3070 = vsub.f32 %v3054, %v3066
    %v3071 = vsel %vm122, %v3067, 0.0
    %v3072 = vsel %vm122, %v3068, 0.0
    %v3073 = vsel %vm122, %v3069, 0.0
    %v3074 = vsel %vm122, %v3070, 0.0
    %v3075 = vmul.f32 %v3071, %v3071
    %v3076 = vmul.f32 %v3072, %v3072
    %v3077 = vmul.f32 %v3073, %v3073
    %v3078 = vmul.f32 %v3074, %v3074
    %3079 = vadd.xlane.f32.xlu0 %v3075
    %v3080 = vpop.xlane.xlu0 %3079
    %3081 = vadd.xlane.f32.xlu0 %v3076
    %v3082 = vpop.xlane.xlu0 %3081
    %3083 = vadd.xlane.f32.xlu0 %v3077
    %v3084 = vpop.xlane.xlu0 %3083
    %3085 = vadd.xlane.f32.xlu0 %v3078
    %v3086 = vpop.xlane.xlu0 %3085
    %v3087 = vmul.f32 %v3080, 0.016666668
    %v3088 = vmul.f32 %v3082, 0.016666668
    %v3089 = vmul.f32 %v3084, 0.016666668
    %v3090 = vmul.f32 %v3086, 0.016666668
    %v3091 = vadd.f32 %v3087, 1e-05
    %v3092 = vadd.f32 %v3088, 1e-05
    %v3093 = vadd.f32 %v3089, 1e-05
    %v3094 = vadd.f32 %v3090, 1e-05
    %v3095 = vrsqrt.pop %v3091
    %v3096 = vrsqrt.pop %v3092
    %v3097 = vrsqrt.pop %v3093
    %v3098 = vrsqrt.pop %v3094
    %v3099 = vmul.f32 %v3071, %v3095
    %v3100 = vmul.f32 %v3072, %v3096
    %v3101 = vmul.f32 %v3073, %v3097
    %v3102 = vmul.f32 %v3074, %v3098
    %v3103 = vld [vmem:[#allocation10] sm:$0xff]
    %v3104 = vld [vmem:[#allocation10 + $0x8] sm:$0xff]
    %v3105 = vld [vmem:[#allocation10 + $0x10] sm:$0xff]
    %v3106 = vld [vmem:[#allocation10 + $0x18] sm:$0xff]
    %v3107 = vld [vmem:[#allocation10 + $0x20] sm:$0xff]
    %v3108 = vld [vmem:[#allocation10 + $0x28] sm:$0xff]
    %v3109 = vld [vmem:[#allocation10 + $0x30] sm:$0xff]
    %v3110 = vld [vmem:[#allocation10 + $0x38] sm:$0xff]
    %v3111 = vld [vmem:[#allocation10 + $0x40] sm:$0xff]
    %v3112 = vld [vmem:[#allocation10 + $0x48] sm:$0xff]
    %v3113 = vld [vmem:[#allocation10 + $0x50] sm:$0xff]
    %v3114 = vld [vmem:[#allocation10 + $0x58] sm:$0xff]
    %v3115 = vld [vmem:[#allocation10 + $0x60] sm:$0xff]
    %v3116 = vld [vmem:[#allocation10 + $0x68] sm:$0xff]
    %v3117 = vld [vmem:[#allocation10 + $0x70] sm:$0xff]
    %v3118 = vld [vmem:[#allocation10 + $0x78] sm:$0xff]
    %v3119 = vld [vmem:[#allocation10 + $0x80] sm:$0xff]
    %v3120 = vld [vmem:[#allocation10 + $0x88] sm:$0xff]
    %v3121 = vld [vmem:[#allocation10 + $0x90] sm:$0xff]
    %v3122 = vld [vmem:[#allocation10 + $0x98] sm:$0xff]
    %v3123 = vld [vmem:[#allocation10 + $0xa0] sm:$0xff]
    %v3124 = vld [vmem:[#allocation10 + $0xa8] sm:$0xff]
    %v3125 = vld [vmem:[#allocation10 + $0xb0] sm:$0xff]
    %v3126 = vld [vmem:[#allocation10 + $0xb8] sm:$0xff]
    %v3127 = vld [vmem:[#allocation10 + $0xc0] sm:$0xff]
    %v3128 = vld [vmem:[#allocation10 + $0xc8] sm:$0xff]
    %v3129 = vld [vmem:[#allocation10 + $0xd0] sm:$0xff]
    %v3130 = vld [vmem:[#allocation10 + $0xd8] sm:$0xff]
    %v3131 = vld [vmem:[#allocation10 + $0xe0] sm:$0xff]
    %v3132 = vld [vmem:[#allocation10 + $0xe8] sm:$0xff]
    %v3133 = vld [vmem:[#allocation10 + $0xf0] sm:$0xff]
    %v3134 = vld [vmem:[#allocation10 + $0xf8] sm:$0xff]
    %v3135 = vld [vmem:[%s7] sm:$0x3]
    %v3137 = vlaneseq
    %v3138 = vshrl.u32 %v3137, 7
    %v3139 = vsub.s32 0, %v3138
    %v3140 = vrot.slane %v3135, %v3139
    %v3141 = vlaneseq
    %v3142 = vshrl.u32 %v3141, 7
    %v3143 = vsub.s32 1, %v3142
    %v3144 = vrot.slane %v3135, %v3143
    %3147 = vmatprep.subr.mxu0 %v3134
    %3148 = vmatpush1.msra.mxu0 %v3133
    %3149 = vmatprep.subr.mxu0 %v3132
    %3150 = vmatpush1.msra.mxu0 %v3131
    %3151 = vmatprep.subr.mxu0 %v3130
    %3152 = vmatpush1.msra.mxu0 %v3129
    %3153 = vmatprep.subr.mxu0 %v3128
    %3154 = vmatpush1.msra.mxu0 %v3127
    %3155 = vmatprep.subr.mxu0 %v3126
    %3156 = vmatpush1.msra.mxu0 %v3125
    %3157 = vmatprep.subr.mxu0 %v3124
    %3158 = vmatpush1.msra.mxu0 %v3123
    %3159 = vmatprep.subr.mxu0 %v3122
    %3160 = vmatpush1.msra.mxu0 %v3121
    %3161 = vmatprep.subr.mxu0 %v3120
    %3162 = vmatpush1.msra.mxu0 %v3119
    %3163 = vmatprep.subr.mxu0 %v3118
    %3164 = vmatpush1.msra.mxu0 %v3117
    %3165 = vmatprep.subr.mxu0 %v3116
    %3166 = vmatpush1.msra.mxu0 %v3115
    %3167 = vmatprep.subr.mxu0 %v3114
    %3168 = vmatpush1.msra.mxu0 %v3113
    %3169 = vmatprep.subr.mxu0 %v3112
    %3170 = vmatpush1.msra.mxu0 %v3111
    %3171 = vmatprep.subr.mxu0 %v3110
    %3172 = vmatpush1.msra.mxu0 %v3109
    %3173 = vmatprep.subr.mxu0 %v3108
    %3174 = vmatpush1.msra.mxu0 %v3107
    %3175 = vmatprep.subr.mxu0 %v3106
    %3176 = vmatpush1.msra.mxu0 %v3105
    %3177 = vmatprep.subr.mxu0 %v3104
    %3178 = vmatpush1.msra.mxu0 %v3103
    %3179 = vmatprep.subr.mxu0 0.0
    %3180 = vmatpush2.msra.mxu0 0.0
    %3181 = vmatprep.subr.mxu0 0.0
    %3182 = vmatpush2.msra.mxu0 0.0
    %3183 = vmatprep.subr.mxu0 0.0
    %3184 = vmatpush2.msra.mxu0 0.0
    %3185 = vmatprep.subr.mxu0 0.0
    %3186 = vmatpush2.msra.mxu0 0.0
    %3187 = vmatprep.subr.mxu0 0.0
    %3188 = vmatpush2.msra.mxu0 0.0
    %3189 = vmatprep.subr.mxu0 0.0
    %3190 = vmatpush2.msra.mxu0 0.0
    %3191 = vmatprep.subr.mxu0 0.0
    %3192 = vmatpush2.msra.mxu0 0.0
    %3193 = vmatprep.subr.mxu0 0.0
    %3194 = vmatpush2.msra.mxu0 0.0
    %3195 = vmatprep.subr.mxu0 0.0
    %3196 = vmatpush2.msra.mxu0 0.0
    %3197 = vmatprep.subr.mxu0 0.0
    %3198 = vmatpush2.msra.mxu0 0.0
    %3199 = vmatprep.subr.mxu0 0.0
    %3200 = vmatpush2.msra.mxu0 0.0
    %3201 = vmatprep.subr.mxu0 0.0
    %3202 = vmatpush2.msra.mxu0 0.0
    %3203 = vmatprep.subr.mxu0 0.0
    %3204 = vmatpush2.msra.mxu0 0.0
    %3205 = vmatprep.subr.mxu0 0.0
    %3206 = vmatpush2.msra.mxu0 0.0
    %3207 = vmatprep.subr.mxu0 0.0
    %3208 = vmatpush2.msra.mxu0 0.0
    %3209 = vmatprep.subr.mxu0 0.0
    %3210 = vmatpush2.msra.mxu0 0.0
    %3211 = vmatprep.mubr.f32.mxu0 0.0
    %3212 = vmatmul.mubr.f32.gmra.mxu0 %v3099
    %v3213 = vpop.f32.mrf.mxu0
    %v3214 = vadd.f32 %v3140, %v3213
    %v3215 = vpop.f32.mrf.mxu0
    %v3216 = vadd.f32 %v3144, %v3215
    %3217 = vmatprep.mubr.f32.mxu0 0.0
    %3218 = vmatmul.mubr.f32.gmra.mxu0 %v3100
    %v3219 = vpop.f32.mrf.mxu0
    %v3220 = vadd.f32 %v3140, %v3219
    %v3221 = vpop.f32.mrf.mxu0
    %v3222 = vadd.f32 %v3144, %v3221
    %3223 = vmatprep.mubr.f32.mxu0 0.0
    %3224 = vmatmul.mubr.f32.gmra.mxu0 %v3101
    %v3225 = vpop.f32.mrf.mxu0
    %v3226 = vadd.f32 %v3140, %v3225
    %v3227 = vpop.f32.mrf.mxu0
    %v3228 = vadd.f32 %v3144, %v3227
    %3229 = vmatprep.mubr.f32.mxu0 0.0
    %3230 = vmatmul.mubr.f32.gmra.mxu0 %v3102
    %v3231 = vpop.f32.mrf.mxu0
    %v3232 = vadd.f32 %v3140, %v3231
    %v3233 = vpop.f32.mrf.mxu0
    %v3234 = vadd.f32 %v3144, %v3233
    %3235 = vdwg.mxu0
    %v3236 = vmax.f32 %v3214, 0.0
    %v3237 = vmax.f32 %v3216, 0.0
    %v3238 = vmax.f32 %v3220, 0.0
    %v3239 = vmax.f32 %v3222, 0.0
    %v3240 = vmax.f32 %v3226, 0.0
    %v3241 = vmax.f32 %v3228, 0.0
    %v3242 = vmax.f32 %v3232, 0.0
    %v3243 = vmax.f32 %v3234, 0.0
    %v3244 = vld [vmem:[#allocation11] sm:$0xff]
    %v3245 = vld [vmem:[#allocation11 + $0x8] sm:$0xff]
    %v3246 = vld [vmem:[#allocation11 + $0x10] sm:$0xff]
    %v3247 = vld [vmem:[#allocation11 + $0x18] sm:$0xff]
    %v3248 = vld [vmem:[#allocation11 + $0x20] sm:$0xff]
    %v3249 = vld [vmem:[#allocation11 + $0x28] sm:$0xff]
    %v3250 = vld [vmem:[#allocation11 + $0x30] sm:$0xff]
    %v3251 = vld [vmem:[#allocation11 + $0x38] sm:$0xff]
    %v3252 = vld [vmem:[#allocation11 + $0x40] sm:$0xff]
    %v3253 = vld [vmem:[#allocation11 + $0x48] sm:$0xff]
    %v3254 = vld [vmem:[#allocation11 + $0x50] sm:$0xff]
    %v3255 = vld [vmem:[#allocation11 + $0x58] sm:$0xff]
    %v3256 = vld [vmem:[#allocation11 + $0x60] sm:$0xff]
    %v3257 = vld [vmem:[#allocation11 + $0x68] sm:$0xff]
    %v3258 = vld [vmem:[#allocation11 + $0x70] sm:$0xff]
    %v3259 = vld [vmem:[#allocation11 + $0x78] sm:$0xff]
    %v3260 = vld [vmem:[#allocation11 + $0x80] sm:$0xff]
    %v3261 = vld [vmem:[#allocation11 + $0x88] sm:$0xff]
    %v3262 = vld [vmem:[#allocation11 + $0x90] sm:$0xff]
    %v3263 = vld [vmem:[#allocation11 + $0x98] sm:$0xff]
    %v3264 = vld [vmem:[#allocation11 + $0xa0] sm:$0xff]
    %v3265 = vld [vmem:[#allocation11 + $0xa8] sm:$0xff]
    %v3266 = vld [vmem:[#allocation11 + $0xb0] sm:$0xff]
    %v3267 = vld [vmem:[#allocation11 + $0xb8] sm:$0xff]
    %v3268 = vld [vmem:[#allocation11 + $0xc0] sm:$0xff]
    %v3269 = vld [vmem:[#allocation11 + $0xc8] sm:$0xff]
    %v3270 = vld [vmem:[#allocation11 + $0xd0] sm:$0xff]
    %v3271 = vld [vmem:[#allocation11 + $0xd8] sm:$0xff]
    %v3272 = vld [vmem:[#allocation11 + $0xe0] sm:$0xff]
    %v3273 = vld [vmem:[#allocation11 + $0xe8] sm:$0xff]
    %v3274 = vld [vmem:[#allocation11 + $0xf0] sm:$0xff]
    %v3275 = vld [vmem:[#allocation11 + $0xf8] sm:$0xff]
    %v3276 = vld [vmem:[%s9] sm:$0x1]
    %v3278 = vlaneseq
    %v3279 = vshrl.u32 %v3278, 7
    %v3280 = vsub.s32 0, %v3279
    %v3281 = vrot.slane %v3276, %v3280
    %3283 = vmatprep.subr.mxu0 0.0
    %3284 = vmatpush1.msra.mxu0 %v3259
    %3285 = vmatprep.subr.mxu0 0.0
    %3286 = vmatpush1.msra.mxu0 %v3258
    %3287 = vmatprep.subr.mxu0 0.0
    %3288 = vmatpush1.msra.mxu0 %v3257
    %3289 = vmatprep.subr.mxu0 0.0
    %3290 = vmatpush1.msra.mxu0 %v3256
    %3291 = vmatprep.subr.mxu0 0.0
    %3292 = vmatpush1.msra.mxu0 %v3255
    %3293 = vmatprep.subr.mxu0 0.0
    %3294 = vmatpush1.msra.mxu0 %v3254
    %3295 = vmatprep.subr.mxu0 0.0
    %3296 = vmatpush1.msra.mxu0 %v3253
    %3297 = vmatprep.subr.mxu0 0.0
    %3298 = vmatpush1.msra.mxu0 %v3252
    %3299 = vmatprep.subr.mxu0 0.0
    %3300 = vmatpush1.msra.mxu0 %v3251
    %3301 = vmatprep.subr.mxu0 0.0
    %3302 = vmatpush1.msra.mxu0 %v3250
    %3303 = vmatprep.subr.mxu0 0.0
    %3304 = vmatpush1.msra.mxu0 %v3249
    %3305 = vmatprep.subr.mxu0 0.0
    %3306 = vmatpush1.msra.mxu0 %v3248
    %3307 = vmatprep.subr.mxu0 0.0
    %3308 = vmatpush1.msra.mxu0 %v3247
    %3309 = vmatprep.subr.mxu0 0.0
    %3310 = vmatpush1.msra.mxu0 %v3246
    %3311 = vmatprep.subr.mxu0 0.0
    %3312 = vmatpush1.msra.mxu0 %v3245
    %3313 = vmatprep.subr.mxu0 0.0
    %3314 = vmatpush1.msra.mxu0 %v3244
    %3315 = vmatprep.subr.mxu0 0.0
    %3316 = vmatpush2.msra.mxu0 %v3275
    %3317 = vmatprep.subr.mxu0 0.0
    %3318 = vmatpush2.msra.mxu0 %v3274
    %3319 = vmatprep.subr.mxu0 0.0
    %3320 = vmatpush2.msra.mxu0 %v3273
    %3321 = vmatprep.subr.mxu0 0.0
    %3322 = vmatpush2.msra.mxu0 %v3272
    %3323 = vmatprep.subr.mxu0 0.0
    %3324 = vmatpush2.msra.mxu0 %v3271
    %3325 = vmatprep.subr.mxu0 0.0
    %3326 = vmatpush2.msra.mxu0 %v3270
    %3327 = vmatprep.subr.mxu0 0.0
    %3328 = vmatpush2.msra.mxu0 %v3269
    %3329 = vmatprep.subr.mxu0 0.0
    %3330 = vmatpush2.msra.mxu0 %v3268
    %3331 = vmatprep.subr.mxu0 0.0
    %3332 = vmatpush2.msra.mxu0 %v3267
    %3333 = vmatprep.subr.mxu0 0.0
    %3334 = vmatpush2.msra.mxu0 %v3266
    %3335 = vmatprep.subr.mxu0 0.0
    %3336 = vmatpush2.msra.mxu0 %v3265
    %3337 = vmatprep.subr.mxu0 0.0
    %3338 = vmatpush2.msra.mxu0 %v3264
    %3339 = vmatprep.subr.mxu0 0.0
    %3340 = vmatpush2.msra.mxu0 %v3263
    %3341 = vmatprep.subr.mxu0 0.0
    %3342 = vmatpush2.msra.mxu0 %v3262
    %3343 = vmatprep.subr.mxu0 0.0
    %3344 = vmatpush2.msra.mxu0 %v3261
    %3345 = vmatprep.subr.mxu0 0.0
    %3346 = vmatpush2.msra.mxu0 %v3260
    %3347 = vmatprep.mubr.f32.mxu0 %v3237
    %3348 = vmatmul.mubr.f32.gmra.mxu0 %v3236
    %v3349 = vpop.f32.mrf.mxu0
    %v3350 = vadd.f32 %v3281, %v3349
    %v3351 = vpop.f32.mrf.mxu0
    %3352 = vmatprep.mubr.f32.mxu0 %v3239
    %3353 = vmatmul.mubr.f32.gmra.mxu0 %v3238
    %v3354 = vpop.f32.mrf.mxu0
    %v3355 = vadd.f32 %v3281, %v3354
    %v3356 = vpop.f32.mrf.mxu0
    %3357 = vmatprep.mubr.f32.mxu0 %v3241
    %3358 = vmatmul.mubr.f32.gmra.mxu0 %v3240
    %v3359 = vpop.f32.mrf.mxu0
    %v3360 = vadd.f32 %v3281, %v3359
    %v3361 = vpop.f32.mrf.mxu0
    %3362 = vmatprep.mubr.f32.mxu0 %v3243
    %3363 = vmatmul.mubr.f32.gmra.mxu0 %v3242
    %v3364 = vpop.f32.mrf.mxu0
    %v3365 = vadd.f32 %v3281, %v3364
    %v3366 = vpop.f32.mrf.mxu0
    %3367 = vdwg.mxu0
    %v3368 = vadd.f32 %v3051, %v3350
    %v3369 = vadd.f32 %v3052, %v3355
    %v3370 = vadd.f32 %v3053, %v3360
    %v3371 = vadd.f32 %v3054, %v3365
    %3372 = vst [vmem:[#allocation13] sm:$0xff] %v3368
    %3373 = vst [vmem:[#allocation13 + $0x8] sm:$0xff] %v3369
    %3374 = vst [vmem:[#allocation13 + $0x10] sm:$0xff] %v3370
    %3375 = vst [vmem:[#allocation13 + $0x18] sm:$0xff] %v3371
    // Predicated region
    $region66: #{tpu_custom_call.1} parent=1 // pred_check
      _
    $region67: #{tpu_custom_call.1} parent=1 // pred_check_branch
      %3377 = sbr.rel (0) target = $region69
    $region68: #{tpu_custom_call.1} parent=1 // pred_region
      %s3379 = ssub.s32 512, 512
      %3380 = vsyncadd [#allocation4], %s3379
      %s3381 = sshll.u32 [#allocation13], 4
      %s3382 = int_to_ptr.vmem [resolvable:$true] %s3381
      %3387 = dma.vmem_to_hbm [thread:$0]  %s3382, 512, %s10, [#allocation4], 128, 128, 8
    $region69: #{tpu_custom_call.1} parent=1 // pred_fallthru
      _
    // Predicated region
    $region70: #{tpu_custom_call.1} parent=1 // pred_check
      _
    $region71: #{tpu_custom_call.1} parent=1 // pred_check_branch
      %3389 = sbr.rel (0) target = $region73
    $region72: #{tpu_custom_call.1} parent=1 // pred_region
      %3390 = dma.done [#allocation4], 512
    $region73: #{tpu_custom_call.1} parent=1 // pred_fallthru
      _
    %3391 = vsyncpa [#allocation3], 1
    %3392 = vsyncpa [#allocation6], 1
    %3393 = vsyncpa [#allocation9], 1
    %3394 = vsyncpa [#allocation12], 1
    %3395 = vsyncpa [#allocation4], 1

</llo_original>
